<compile_context>
chip_gen: v7x
topology: tpu7x:2x2x1
jax: 0.10.0
libtpu: 0.0.40
codegen_flags: <defaults>
</compile_context>

<pallas_src>
import functools
import math

import jax
import jax.numpy as jnp
from jax.experimental import pallas as pl
from jax.experimental.pallas import tpu as pltpu

EPS = 1e-5


def _round_up(v, m):
    return ((v + m - 1) // m) * m


# ------------------------------------------------------------------ kernel --
def _mha_fused_kernel(x_ref, wqkv_ref, bqkv_ref,
                      dwa_ref, dsha_ref, pwa_ref, psha_ref,
                      dwb_ref, dshb_ref, pwb_ref, pshb_ref,
                      wp_ref, bp_ref,
                      o_ref,
                      xpa_ref, xpb_ref,
                      *, N, E, D, Ka, Kb, base_a, base_b, scale):
    ED = E * D
    n_half = N // 2
    E3 = 3 * E

    # ---- fused q/k/v projection: one lane-dense (N,E)@(E,3E) matmul --------
    xall = (jnp.dot(x_ref[...], wqkv_ref[...],
                    preferred_element_type=jnp.float32) + bqkv_ref[...])

    def msc_branch(K, base, xp_ref, dw_ref, dsh_ref, pw_ref, psh_ref):
        pad = (K - 1) // 2                       # 'same' padding (odd K)
        # Zero-pad the sequence in VMEM scratch; the live rows sit at an
        # 8-aligned sublane offset so the fill store is unmasked.
        xp_ref[...] = jnp.zeros_like(xp_ref)
        xp_ref[base:base + N, :] = xall
        # Only taps whose window overlaps real rows contribute; the rest
        # multiply zero padding.  Hoist the tap weights out of the loop.
        t_lo = max(0, pad - (N - 1))
        t_hi = min(K - 1, pad + N - 1)
        dw = dw_ref[t_lo:t_hi + 1, :]            # (n_taps, 3E)
        # 4 accumulators break the serial VALU dependency chain.
        accs = [jnp.zeros((N, E3), jnp.float32) for _ in range(4)]
        # TODO(synk): for long sequences, group taps by 8 + pltpu.roll to keep
        # the sublane reads aligned instead of per-tap shifted slices.
        for i, t in enumerate(range(t_lo, t_hi + 1)):
            off = base - pad + t                 # static
            accs[i % 4] = accs[i % 4] + xp_ref[off:off + N, :] * dw[i:i + 1, :]
        acc = (accs[0] + accs[1]) + (accs[2] + accs[3])
        r = jnp.maximum(acc + dsh_ref[...], 0.0)           # folded BN1 + ReLU
        # 1x1 conv (heads -> emb) for q|k|v at once: block-diagonal expanded
        # weight, one lane-dense (N,3E)@(3E,3ED) MXU pass; folded BN2 + ReLU.
        z = jnp.dot(r, pw_ref[...], preferred_element_type=jnp.float32)
        z = jnp.maximum(z + psh_ref[...], 0.0)             # (N, 3*ED)
        # AvgPool2d((2,1)) on the value: mean of adjacent sequence rows.
        zr = z.reshape(n_half, 2, 3 * ED)
        return (zr[:, 0, :] + zr[:, 1, :]) * 0.5           # (N/2, 3*ED)

    # wise1 (K=Ka) fills rows [0, N/2); wise2 (K=Kb) fills rows [N/2, N).
    msc1 = msc_branch(Ka, base_a, xpa_ref, dwa_ref, dsha_ref, pwa_ref, psha_ref)
    msc2 = msc_branch(Kb, base_b, xpb_ref, dwb_ref, dshb_ref, pwb_ref, pshb_ref)
    msc = jnp.concatenate([msc1, msc2], axis=0)            # (N, 3*ED)

    q = msc[:, 0:ED] * scale          # fold 1/sqrt(E) into q (N*ED mults)
    k = msc[:, ED:2 * ED]
    v = msc[:, 2 * ED:3 * ED]
    wp = wp_ref[...]                  # (ED, E), hoisted

    # ---- per-head attention fused with the output projection ---------------
    # TODO(synk): mask is None in this module test; add a masked-fill path if
    # the optional boolean mask input is ever used.
    # TODO(synk): at larger N, batch the E per-head (N,N) score matmuls into a
    # single lane-dense (N,ED)@(ED,E*N) block-diagonal matmul (E*N=128 here).
    y_parts = [jnp.zeros((N, E), jnp.float32) for _ in range(4)]
    for h in range(E):                # heads = E channels of the 1x1 conv
        lo = h * D
        qh = q[:, lo:lo + D]
        kh = k[:, lo:lo + D]
        vh = v[:, lo:lo + D]
        s = jax.lax.dot_general(qh, kh, (((1,), (1,)), ((), ())),
                                preferred_element_type=jnp.float32)   # (N, N)
        s = s - jnp.max(s, axis=-1, keepdims=True)
        ex = jnp.exp(s)
        att = ex / jnp.sum(ex, axis=-1, keepdims=True)
        ch = jnp.dot(att, vh, preferred_element_type=jnp.float32)     # (N, D)
        y_parts[h % 4] = y_parts[h % 4] + jnp.dot(
            ch, wp[lo:lo + D, :], preferred_element_type=jnp.float32)
    y = (y_parts[0] + y_parts[1]) + (y_parts[2] + y_parts[3]) + bp_ref[...]
    o_ref[...] = y.astype(o_ref.dtype)


# -------------------------------------------------------------------- entry --
def multi_head_attention_forward(x, params, num_heads):
    """x: (B, N, E) -> (B, N, E).  Heads in the attention are the E channels
    of the MSC 1x1 conv (dim D = E // num_heads), matching the PyTorch module."""
    B, N, E = x.shape
    assert N % 2 == 0, "AvgPool2d((2,1)) requires even sequence length"
    D = params['D']
    ED = E * D
    E3, ED3 = 3 * E, 3 * ED
    br1, br2 = params['wise1'], params['wise2']
    Ka, Kb = br1['K'], br2['K']
    pad_a, pad_b = (Ka - 1) // 2, (Kb - 1) // 2
    base_a, base_b = _round_up(pad_a, 8), _round_up(pad_b, 8)
    rows_a = _round_up(base_a - pad_a + min(Ka - 1, pad_a + N - 1) + N, 8)
    rows_b = _round_up(base_b - pad_b + min(Kb - 1, pad_b + N - 1) + N, 8)
    scale = 1.0 / math.sqrt(E)

    kern = functools.partial(_mha_fused_kernel, N=N, E=E, D=D, Ka=Ka, Kb=Kb,
                             base_a=base_a, base_b=base_b, scale=scale)
    const2 = lambda b: (0, 0)
    return pl.pallas_call(
        kern,
        out_shape=jax.ShapeDtypeStruct((B, N, E), x.dtype),
        grid=(B,),
        in_specs=[
            pl.BlockSpec((None, N, E), lambda b: (b, 0, 0)),   # x_b
            pl.BlockSpec((E, E3), const2),                     # W_q|W_k|W_v
            pl.BlockSpec((1, E3), const2),                     # b_q|b_k|b_v
            pl.BlockSpec((Ka, E3), const2),                    # branch1 conv taps
            pl.BlockSpec((1, E3), const2),                     # branch1 BN1 shift
            pl.BlockSpec((E3, ED3), const2),                   # branch1 1x1 conv
            pl.BlockSpec((1, ED3), const2),                    # branch1 BN2 shift
            pl.BlockSpec((Kb, E3), const2),                    # branch2 conv taps
            pl.BlockSpec((1, E3), const2),
            pl.BlockSpec((E3, ED3), const2),
            pl.BlockSpec((1, ED3), const2),
            pl.BlockSpec((ED, E), const2),                     # W_proj
            pl.BlockSpec((1, E), const2),                      # b_proj
        ],
        out_specs=pl.BlockSpec((None, N, E), lambda b: (b, 0, 0)),
        scratch_shapes=[
            pltpu.VMEM((rows_a, E3), jnp.float32),   # padded seq, branch 1
            pltpu.VMEM((rows_b, E3), jnp.float32),   # padded seq, branch 2
        ],
        compiler_params=pltpu.CompilerParams(
            dimension_semantics=("parallel",)),
    )(x, params['wqkv_cat'], params['bqkv_cat'],
      br1['dw3'], br1['dsh3'], br1['pw3'], br1['psh3'],
      br2['dw3'], br2['dsh3'], br2['pw3'], br2['psh3'],
      params['wproj'], params['bproj2d'])


# --------------------------------------------------------------- parameters --
def init_params(key, E, H, D):
    keys = jax.random.split(key, 40)
    ki = iter(keys)

    def nrm(shape, s=0.1):
        return jax.random.normal(next(ki), shape, jnp.float32) * s

    ED = E * D
    eye_d = jnp.eye(D, dtype=jnp.float32)

    wq = nrm((E, E)); bq = nrm((E,))
    wk = nrm((E, E)); bk = nrm((E,))
    wv = nrm((E, E)); bv = nrm((E,))
    wproj = nrm((E * D, E)); bproj = nrm((E,))

    def make_branch(K):
        wd = nrm((H, K)); bd = nrm((H,))
        g1 = 1.0 + nrm((H,)); b1 = nrm((H,)); m1 = nrm((H,))
        v1 = 1.0 + jnp.abs(nrm((H,)))
        w2 = nrm((E, H)); b2 = nrm((E,))
        g2 = 1.0 + nrm((E,)); b2bn = nrm((E,)); m2 = nrm((E,))
        v2 = 1.0 + jnp.abs(nrm((E,)))
        # fold eval-mode BN (+ conv biases) into conv weights / shifts
        s1 = g1 / jnp.sqrt(v1 + EPS)                                 # (H,)
        dw = jnp.repeat(wd.T * s1[None, :], D, axis=1)               # (K, E)
        dsh = jnp.repeat((bd - m1) * s1 + b1, D).reshape(1, E)       # (1, E)
        s2 = g2 / jnp.sqrt(v2 + EPS)                                 # (E,)
        w2s = w2 * s2[:, None]                                       # (E, H)
        # block-diagonal expansion: pw[h*D+d', e*D+d] = w2s[e,h] * delta(d',d)
        pw = jnp.einsum('eh,xd->hxed', w2s, eye_d).reshape(H * D, E * D)
        psh = jnp.repeat((b2 - m2) * s2 + b2bn, D).reshape(1, ED)    # (1, E*D)
        # q|k|v lane-stacked variants for the fused kernel
        # TODO(synk): at scaled sizes, expand pw3 in-kernel from the compact
        # (E,H) weight instead of DMA-ing the D*3-inflated block-diagonal.
        dw3 = jnp.tile(dw, (1, 3))                                   # (K, 3E)
        dsh3 = jnp.tile(dsh, (1, 3))                                 # (1, 3E)
        pw3 = jnp.kron(jnp.eye(3, dtype=jnp.float32), pw)            # (3E, 3ED)
        psh3 = jnp.tile(psh, (1, 3))                                 # (1, 3ED)
        return dict(K=K, wd=wd, bd=bd, g1=g1, b1=b1, m1=m1, v1=v1,
                    w2=w2, b2=b2, g2=g2, b2bn=b2bn, m2=m2, v2=v2,
                    dw3=dw3, dsh3=dsh3, pw3=pw3, psh3=psh3)

    return dict(
        D=D,
        wq=wq, bq=bq, wk=wk, bk=bk, wv=wv, bv=bv,
        wqkv_cat=jnp.concatenate([wq, wk, wv], axis=1),            # (E, 3E)
        bqkv_cat=jnp.concatenate([bq, bk, bv]).reshape(1, 3 * E),  # (1, 3E)
        wise1=make_branch(25), wise2=make_branch(75),
        wproj=wproj, bproj=bproj, bproj2d=bproj.reshape(1, E),
    )


# ---------------------------------------------------------- pure-JAX reference
def _msc_ref(x_lin, params, B, N, H, D, E):
    x4 = x_lin.reshape(B, N, H, D).transpose(0, 2, 1, 3)        # (B, H, N, D)
    outs = []
    for name in ('wise1', 'wise2'):
        br = params[name]
        K = br['K']; pad = (K - 1) // 2
        xp = jnp.pad(x4, ((0, 0), (0, 0), (pad, pad), (0, 0)))
        y = jnp.zeros((B, H, N, D), jnp.float32)
        for t in range(K):
            y = y + xp[:, :, t:t + N, :] * br['wd'][None, :, t, None, None]
        y = y + br['bd'][None, :, None, None]
        y = ((y - br['m1'][None, :, None, None])
             / jnp.sqrt(br['v1'] + EPS)[None, :, None, None]
             * br['g1'][None, :, None, None] + br['b1'][None, :, None, None])
        y = jnp.maximum(y, 0.0)
        z = jnp.einsum('bhnj,eh->benj', y, br['w2']) + br['b2'][None, :, None, None]
        z = ((z - br['m2'][None, :, None, None])
             / jnp.sqrt(br['v2'] + EPS)[None, :, None, None]
             * br['g2'][None, :, None, None] + br['b2bn'][None, :, None, None])
        z = jnp.maximum(z, 0.0)
        outs.append(z.reshape(B, E, N // 2, 2, D).mean(axis=3))
    return jnp.concatenate(outs, axis=2)


def reference_forward(x, params, num_heads):
    B, N, E = x.shape
    H = num_heads
    D = E // H
    q = x @ params['wq'] + params['bq']
    k = x @ params['wk'] + params['bk']
    v = x @ params['wv'] + params['bv']
    qm = _msc_ref(q, params, B, N, H, D, E)
    km = _msc_ref(k, params, B, N, H, D, E)
    vm = _msc_ref(v, params, B, N, H, D, E)
    en = jnp.einsum('bhqd,bhkd->bhqk', qm, km)
    att = jax.nn.softmax(en / (E ** 0.5), axis=-1)
    o = jnp.einsum('bhqk,bhkd->bhqd', att, vm)
    o = o.transpose(0, 2, 1, 3).reshape(B, N, E * D)
    return o @ params['wproj'] + params['bproj']


# --------------------------------------------------------------------- main --
if __name__ == "__main__":
    B, N, E, H = 2, 8, 16, 4          # batch, seq, emb_size, num_heads
    D = E // H
    key = jax.random.PRNGKey(0)
    kx, kp = jax.random.split(key)
    x = jax.random.normal(kx, (B, N, E), jnp.float32)
    params = init_params(kp, E, H, D)

    out = multi_head_attention_forward(x, params, H)
    out = jax.block_until_ready(out)

    ref = reference_forward(x, params, H)
    assert out.shape == (B, N, E)
    assert bool(jnp.all(jnp.isfinite(out)))
    max_err = float(jnp.max(jnp.abs(out - ref)))
    assert bool(jnp.allclose(out, ref, atol=1e-3, rtol=1e-2)), max_err
    print("KERNEL_OK")
</pallas_src>

<mosaic_0001>
module attributes {stable_mosaic.version = 11 : i64} {
  func.func @_mha_fused_kernel(%arg0: i32, %arg1: memref<1x8x16xf32, #tpu.memory_space<vmem>>, %arg2: memref<16x48xf32, #tpu.memory_space<vmem>>, %arg3: memref<1x48xf32, #tpu.memory_space<vmem>>, %arg4: memref<25x48xf32, #tpu.memory_space<vmem>>, %arg5: memref<1x48xf32, #tpu.memory_space<vmem>>, %arg6: memref<48x192xf32, #tpu.memory_space<vmem>>, %arg7: memref<1x192xf32, #tpu.memory_space<vmem>>, %arg8: memref<75x48xf32, #tpu.memory_space<vmem>>, %arg9: memref<1x48xf32, #tpu.memory_space<vmem>>, %arg10: memref<48x192xf32, #tpu.memory_space<vmem>>, %arg11: memref<1x192xf32, #tpu.memory_space<vmem>>, %arg12: memref<64x16xf32, #tpu.memory_space<vmem>>, %arg13: memref<1x16xf32, #tpu.memory_space<vmem>>, %arg14: memref<1x8x16xf32, #tpu.memory_space<vmem>>, %arg15: memref<32x48xf32, #tpu.memory_space<vmem>>, %arg16: memref<56x48xf32, #tpu.memory_space<vmem>>) attributes {dimension_semantics = [#tpu.dimension_semantics<parallel>], iteration_bounds = array<i64: 2>, scalar_prefetch = 0 : i64, scratch_operands = 2 : i64, tpu.core_type = #tpu.core_type<tc>, window_params = [{transform_indices = @transform_0, window_bounds = array<i64: 1, 8, 16>}, {pipeline_mode = #tpu.pipeline_mode<synchronous>, transform_indices = @transform_1, window_bounds = array<i64: 16, 48>}, {pipeline_mode = #tpu.pipeline_mode<synchronous>, transform_indices = @transform_2, window_bounds = array<i64: 1, 48>}, {pipeline_mode = #tpu.pipeline_mode<synchronous>, transform_indices = @transform_3, window_bounds = array<i64: 25, 48>}, {pipeline_mode = #tpu.pipeline_mode<synchronous>, transform_indices = @transform_4, window_bounds = array<i64: 1, 48>}, {pipeline_mode = #tpu.pipeline_mode<synchronous>, transform_indices = @transform_5, window_bounds = array<i64: 48, 192>}, {pipeline_mode = #tpu.pipeline_mode<synchronous>, transform_indices = @transform_6, window_bounds = array<i64: 1, 192>}, {pipeline_mode = #tpu.pipeline_mode<synchronous>, transform_indices = @transform_7, window_bounds = array<i64: 75, 48>}, {pipeline_mode = #tpu.pipeline_mode<synchronous>, transform_indices = @transform_8, window_bounds = array<i64: 1, 48>}, {pipeline_mode = #tpu.pipeline_mode<synchronous>, transform_indices = @transform_9, window_bounds = array<i64: 48, 192>}, {pipeline_mode = #tpu.pipeline_mode<synchronous>, transform_indices = @transform_10, window_bounds = array<i64: 1, 192>}, {pipeline_mode = #tpu.pipeline_mode<synchronous>, transform_indices = @transform_11, window_bounds = array<i64: 64, 16>}, {pipeline_mode = #tpu.pipeline_mode<synchronous>, transform_indices = @transform_12, window_bounds = array<i64: 1, 16>}, {transform_indices = @transform_13, window_bounds = array<i64: 1, 8, 16>}]} {
    %c0 = arith.constant 0 : index
    %c0_0 = arith.constant 0 : index
    %c0_1 = arith.constant 0 : index
    %0 = vector.load %arg1[%c0, %c0_0, %c0_1] : memref<1x8x16xf32, #tpu.memory_space<vmem>>, vector<1x8x16xf32>
    %1 = vector.shape_cast %0 : vector<1x8x16xf32> to vector<8x16xf32>
    %c0_2 = arith.constant 0 : index
    %c0_3 = arith.constant 0 : index
    %2 = vector.load %arg2[%c0_2, %c0_3] : memref<16x48xf32, #tpu.memory_space<vmem>>, vector<16x48xf32>
    %cst = arith.constant dense<0.000000e+00> : vector<8x48xf32>
    %3 = tpu.matmul %1, %2, %cst {dimension_numbers = #tpu.dot_dimension_numbers<[1], [0], [0], [1], [0, 0, 1, 1], [], []>} : vector<8x16xf32>, vector<16x48xf32>, vector<8x48xf32> -> vector<8x48xf32>
    %c0_4 = arith.constant 0 : index
    %c0_5 = arith.constant 0 : index
    %4 = vector.load %arg3[%c0_4, %c0_5] : memref<1x48xf32, #tpu.memory_space<vmem>>, vector<1x48xf32>
    %5 = vector.broadcast %4 : vector<1x48xf32> to vector<8x48xf32>
    %6 = arith.addf %3, %5 : vector<8x48xf32>
    %cst_6 = arith.constant 0.000000e+00 : f32
    %7 = vector.broadcast %cst_6 : f32 to vector<32x48xf32>
    %c0_7 = arith.constant 0 : index
    %c0_8 = arith.constant 0 : index
    %8 = vector.load %arg15[%c0_7, %c0_8] : memref<32x48xf32, #tpu.memory_space<vmem>>, vector<32x48xf32>
    tpu.vector_store %arg15[%c0_7, %c0_8], %7 {strides = array<i32>} : memref<32x48xf32, #tpu.memory_space<vmem>>, vector<32x48xf32>,
    %c16 = arith.constant 16 : index
    %c0_9 = arith.constant 0 : index
    %9 = vector.load %arg15[%c16, %c0_9] : memref<32x48xf32, #tpu.memory_space<vmem>>, vector<8x48xf32>
    tpu.vector_store %arg15[%c16, %c0_9], %6 {strides = array<i32>} : memref<32x48xf32, #tpu.memory_space<vmem>>, vector<8x48xf32>,
    %c5 = arith.constant 5 : index
    %c0_10 = arith.constant 0 : index
    %10 = vector.load %arg4[%c5, %c0_10] : memref<25x48xf32, #tpu.memory_space<vmem>>, vector<15x48xf32>
    %cst_11 = arith.constant 0.000000e+00 : f32
    %11 = vector.broadcast %cst_11 : f32 to vector<8x48xf32>
    %cst_12 = arith.constant 0.000000e+00 : f32
    %12 = vector.broadcast %cst_12 : f32 to vector<8x48xf32>
    %cst_13 = arith.constant 0.000000e+00 : f32
    %13 = vector.broadcast %cst_13 : f32 to vector<8x48xf32>
    %cst_14 = arith.constant 0.000000e+00 : f32
    %14 = vector.broadcast %cst_14 : f32 to vector<8x48xf32>
    %c9 = arith.constant 9 : index
    %c0_15 = arith.constant 0 : index
    %15 = vector.load %arg15[%c9, %c0_15] : memref<32x48xf32, #tpu.memory_space<vmem>>, vector<8x48xf32>
    %16 = vector.extract_strided_slice %10 {offsets = [0, 0], sizes = [1, 48], strides = [1, 1]} : vector<15x48xf32> to vector<1x48xf32>
    %17 = vector.broadcast %16 : vector<1x48xf32> to vector<8x48xf32>
    %18 = arith.mulf %15, %17 : vector<8x48xf32>
    %19 = arith.addf %11, %18 : vector<8x48xf32>
    %c10 = arith.constant 10 : index
    %c0_16 = arith.constant 0 : index
    %20 = vector.load %arg15[%c10, %c0_16] : memref<32x48xf32, #tpu.memory_space<vmem>>, vector<8x48xf32>
    %21 = vector.extract_strided_slice %10 {offsets = [1, 0], sizes = [1, 48], strides = [1, 1]} : vector<15x48xf32> to vector<1x48xf32>
    %22 = vector.broadcast %21 : vector<1x48xf32> to vector<8x48xf32>
    %23 = arith.mulf %20, %22 : vector<8x48xf32>
    %24 = arith.addf %12, %23 : vector<8x48xf32>
    %c11 = arith.constant 11 : index
    %c0_17 = arith.constant 0 : index
    %25 = vector.load %arg15[%c11, %c0_17] : memref<32x48xf32, #tpu.memory_space<vmem>>, vector<8x48xf32>
    %26 = vector.extract_strided_slice %10 {offsets = [2, 0], sizes = [1, 48], strides = [1, 1]} : vector<15x48xf32> to vector<1x48xf32>
    %27 = vector.broadcast %26 : vector<1x48xf32> to vector<8x48xf32>
    %28 = arith.mulf %25, %27 : vector<8x48xf32>
    %29 = arith.addf %13, %28 : vector<8x48xf32>
    %c12 = arith.constant 12 : index
    %c0_18 = arith.constant 0 : index
    %30 = vector.load %arg15[%c12, %c0_18] : memref<32x48xf32, #tpu.memory_space<vmem>>, vector<8x48xf32>
    %31 = vector.extract_strided_slice %10 {offsets = [3, 0], sizes = [1, 48], strides = [1, 1]} : vector<15x48xf32> to vector<1x48xf32>
    %32 = vector.broadcast %31 : vector<1x48xf32> to vector<8x48xf32>
    %33 = arith.mulf %30, %32 : vector<8x48xf32>
    %34 = arith.addf %14, %33 : vector<8x48xf32>
    %c13 = arith.constant 13 : index
    %c0_19 = arith.constant 0 : index
    %35 = vector.load %arg15[%c13, %c0_19] : memref<32x48xf32, #tpu.memory_space<vmem>>, vector<8x48xf32>
    %36 = vector.extract_strided_slice %10 {offsets = [4, 0], sizes = [1, 48], strides = [1, 1]} : vector<15x48xf32> to vector<1x48xf32>
    %37 = vector.broadcast %36 : vector<1x48xf32> to vector<8x48xf32>
    %38 = arith.mulf %35, %37 : vector<8x48xf32>
    %39 = arith.addf %19, %38 : vector<8x48xf32>
    %c14 = arith.constant 14 : index
    %c0_20 = arith.constant 0 : index
    %40 = vector.load %arg15[%c14, %c0_20] : memref<32x48xf32, #tpu.memory_space<vmem>>, vector<8x48xf32>
    %41 = vector.extract_strided_slice %10 {offsets = [5, 0], sizes = [1, 48], strides = [1, 1]} : vector<15x48xf32> to vector<1x48xf32>
    %42 = vector.broadcast %41 : vector<1x48xf32> to vector<8x48xf32>
    %43 = arith.mulf %40, %42 : vector<8x48xf32>
    %44 = arith.addf %24, %43 : vector<8x48xf32>
    %c15 = arith.constant 15 : index
    %c0_21 = arith.constant 0 : index
    %45 = vector.load %arg15[%c15, %c0_21] : memref<32x48xf32, #tpu.memory_space<vmem>>, vector<8x48xf32>
    %46 = vector.extract_strided_slice %10 {offsets = [6, 0], sizes = [1, 48], strides = [1, 1]} : vector<15x48xf32> to vector<1x48xf32>
    %47 = vector.broadcast %46 : vector<1x48xf32> to vector<8x48xf32>
    %48 = arith.mulf %45, %47 : vector<8x48xf32>
    %49 = arith.addf %29, %48 : vector<8x48xf32>
    %c16_22 = arith.constant 16 : index
    %c0_23 = arith.constant 0 : index
    %50 = vector.load %arg15[%c16_22, %c0_23] : memref<32x48xf32, #tpu.memory_space<vmem>>, vector<8x48xf32>
    %51 = vector.extract_strided_slice %10 {offsets = [7, 0], sizes = [1, 48], strides = [1, 1]} : vector<15x48xf32> to vector<1x48xf32>
    %52 = vector.broadcast %51 : vector<1x48xf32> to vector<8x48xf32>
    %53 = arith.mulf %50, %52 : vector<8x48xf32>
    %54 = arith.addf %34, %53 : vector<8x48xf32>
    %c17 = arith.constant 17 : index
    %c0_24 = arith.constant 0 : index
    %55 = vector.load %arg15[%c17, %c0_24] : memref<32x48xf32, #tpu.memory_space<vmem>>, vector<8x48xf32>
    %56 = vector.extract_strided_slice %10 {offsets = [8, 0], sizes = [1, 48], strides = [1, 1]} : vector<15x48xf32> to vector<1x48xf32>
    %57 = vector.broadcast %56 : vector<1x48xf32> to vector<8x48xf32>
    %58 = arith.mulf %55, %57 : vector<8x48xf32>
    %59 = arith.addf %39, %58 : vector<8x48xf32>
    %c18 = arith.constant 18 : index
    %c0_25 = arith.constant 0 : index
    %60 = vector.load %arg15[%c18, %c0_25] : memref<32x48xf32, #tpu.memory_space<vmem>>, vector<8x48xf32>
    %61 = vector.extract_strided_slice %10 {offsets = [9, 0], sizes = [1, 48], strides = [1, 1]} : vector<15x48xf32> to vector<1x48xf32>
    %62 = vector.broadcast %61 : vector<1x48xf32> to vector<8x48xf32>
    %63 = arith.mulf %60, %62 : vector<8x48xf32>
    %64 = arith.addf %44, %63 : vector<8x48xf32>
    %c19 = arith.constant 19 : index
    %c0_26 = arith.constant 0 : index
    %65 = vector.load %arg15[%c19, %c0_26] : memref<32x48xf32, #tpu.memory_space<vmem>>, vector<8x48xf32>
    %66 = vector.extract_strided_slice %10 {offsets = [10, 0], sizes = [1, 48], strides = [1, 1]} : vector<15x48xf32> to vector<1x48xf32>
    %67 = vector.broadcast %66 : vector<1x48xf32> to vector<8x48xf32>
    %68 = arith.mulf %65, %67 : vector<8x48xf32>
    %69 = arith.addf %49, %68 : vector<8x48xf32>
    %c20 = arith.constant 20 : index
    %c0_27 = arith.constant 0 : index
    %70 = vector.load %arg15[%c20, %c0_27] : memref<32x48xf32, #tpu.memory_space<vmem>>, vector<8x48xf32>
    %71 = vector.extract_strided_slice %10 {offsets = [11, 0], sizes = [1, 48], strides = [1, 1]} : vector<15x48xf32> to vector<1x48xf32>
    %72 = vector.broadcast %71 : vector<1x48xf32> to vector<8x48xf32>
    %73 = arith.mulf %70, %72 : vector<8x48xf32>
    %74 = arith.addf %54, %73 : vector<8x48xf32>
    %c21 = arith.constant 21 : index
    %c0_28 = arith.constant 0 : index
    %75 = vector.load %arg15[%c21, %c0_28] : memref<32x48xf32, #tpu.memory_space<vmem>>, vector<8x48xf32>
    %76 = vector.extract_strided_slice %10 {offsets = [12, 0], sizes = [1, 48], strides = [1, 1]} : vector<15x48xf32> to vector<1x48xf32>
    %77 = vector.broadcast %76 : vector<1x48xf32> to vector<8x48xf32>
    %78 = arith.mulf %75, %77 : vector<8x48xf32>
    %79 = arith.addf %59, %78 : vector<8x48xf32>
    %c22 = arith.constant 22 : index
    %c0_29 = arith.constant 0 : index
    %80 = vector.load %arg15[%c22, %c0_29] : memref<32x48xf32, #tpu.memory_space<vmem>>, vector<8x48xf32>
    %81 = vector.extract_strided_slice %10 {offsets = [13, 0], sizes = [1, 48], strides = [1, 1]} : vector<15x48xf32> to vector<1x48xf32>
    %82 = vector.broadcast %81 : vector<1x48xf32> to vector<8x48xf32>
    %83 = arith.mulf %80, %82 : vector<8x48xf32>
    %84 = arith.addf %64, %83 : vector<8x48xf32>
    %c23 = arith.constant 23 : index
    %c0_30 = arith.constant 0 : index
    %85 = vector.load %arg15[%c23, %c0_30] : memref<32x48xf32, #tpu.memory_space<vmem>>, vector<8x48xf32>
    %86 = vector.extract_strided_slice %10 {offsets = [14, 0], sizes = [1, 48], strides = [1, 1]} : vector<15x48xf32> to vector<1x48xf32>
    %87 = vector.broadcast %86 : vector<1x48xf32> to vector<8x48xf32>
    %88 = arith.mulf %85, %87 : vector<8x48xf32>
    %89 = arith.addf %69, %88 : vector<8x48xf32>
    %90 = arith.addf %79, %84 : vector<8x48xf32>
    %91 = arith.addf %89, %74 : vector<8x48xf32>
    %92 = arith.addf %90, %91 : vector<8x48xf32>
    %c0_31 = arith.constant 0 : index
    %c0_32 = arith.constant 0 : index
    %93 = vector.load %arg5[%c0_31, %c0_32] : memref<1x48xf32, #tpu.memory_space<vmem>>, vector<1x48xf32>
    %94 = vector.broadcast %93 : vector<1x48xf32> to vector<8x48xf32>
    %95 = arith.addf %92, %94 : vector<8x48xf32>
    %cst_33 = arith.constant 0.000000e+00 : f32
    %96 = vector.broadcast %cst_33 : f32 to vector<8x48xf32>
    %97 = arith.maximumf %95, %96 : vector<8x48xf32>
    %c0_34 = arith.constant 0 : index
    %c0_35 = arith.constant 0 : index
    %98 = vector.load %arg6[%c0_34, %c0_35] : memref<48x192xf32, #tpu.memory_space<vmem>>, vector<48x192xf32>
    %cst_36 = arith.constant dense<0.000000e+00> : vector<8x192xf32>
    %99 = tpu.matmul %97, %98, %cst_36 {dimension_numbers = #tpu.dot_dimension_numbers<[1], [0], [0], [1], [0, 0, 1, 1], [], []>} : vector<8x48xf32>, vector<48x192xf32>, vector<8x192xf32> -> vector<8x192xf32>
    %c0_37 = arith.constant 0 : index
    %c0_38 = arith.constant 0 : index
    %100 = vector.load %arg7[%c0_37, %c0_38] : memref<1x192xf32, #tpu.memory_space<vmem>>, vector<1x192xf32>
    %101 = vector.broadcast %100 : vector<1x192xf32> to vector<8x192xf32>
    %102 = arith.addf %99, %101 : vector<8x192xf32>
    %cst_39 = arith.constant 0.000000e+00 : f32
    %103 = vector.broadcast %cst_39 : f32 to vector<8x192xf32>
    %104 = arith.maximumf %102, %103 : vector<8x192xf32>
    %105 = vector.shape_cast %104 : vector<8x192xf32> to vector<4x2x192xf32>
    %106 = vector.extract_strided_slice %105 {offsets = [0, 0, 0], sizes = [4, 1, 192], strides = [1, 1, 1]} : vector<4x2x192xf32> to vector<4x1x192xf32>
    %107 = vector.shape_cast %106 : vector<4x1x192xf32> to vector<4x192xf32>
    %108 = vector.extract_strided_slice %105 {offsets = [0, 1, 0], sizes = [4, 1, 192], strides = [1, 1, 1]} : vector<4x2x192xf32> to vector<4x1x192xf32>
    %109 = vector.shape_cast %108 : vector<4x1x192xf32> to vector<4x192xf32>
    %110 = arith.addf %107, %109 : vector<4x192xf32>
    %cst_40 = arith.constant 5.000000e-01 : f32
    %111 = vector.broadcast %cst_40 : f32 to vector<4x192xf32>
    %112 = arith.mulf %110, %111 : vector<4x192xf32>
    %cst_41 = arith.constant 0.000000e+00 : f32
    %113 = vector.broadcast %cst_41 : f32 to vector<56x48xf32>
    %c0_42 = arith.constant 0 : index
    %c0_43 = arith.constant 0 : index
    %114 = vector.load %arg16[%c0_42, %c0_43] : memref<56x48xf32, #tpu.memory_space<vmem>>, vector<56x48xf32>
    tpu.vector_store %arg16[%c0_42, %c0_43], %113 {strides = array<i32>} : memref<56x48xf32, #tpu.memory_space<vmem>>, vector<56x48xf32>,
    %c40 = arith.constant 40 : index
    %c0_44 = arith.constant 0 : index
    %115 = vector.load %arg16[%c40, %c0_44] : memref<56x48xf32, #tpu.memory_space<vmem>>, vector<8x48xf32>
    tpu.vector_store %arg16[%c40, %c0_44], %6 {strides = array<i32>} : memref<56x48xf32, #tpu.memory_space<vmem>>, vector<8x48xf32>,
    %c30 = arith.constant 30 : index
    %c0_45 = arith.constant 0 : index
    %116 = vector.load %arg8[%c30, %c0_45] : memref<75x48xf32, #tpu.memory_space<vmem>>, vector<15x48xf32>
    %cst_46 = arith.constant 0.000000e+00 : f32
    %117 = vector.broadcast %cst_46 : f32 to vector<8x48xf32>
    %cst_47 = arith.constant 0.000000e+00 : f32
    %118 = vector.broadcast %cst_47 : f32 to vector<8x48xf32>
    %cst_48 = arith.constant 0.000000e+00 : f32
    %119 = vector.broadcast %cst_48 : f32 to vector<8x48xf32>
    %cst_49 = arith.constant 0.000000e+00 : f32
    %120 = vector.broadcast %cst_49 : f32 to vector<8x48xf32>
    %c33 = arith.constant 33 : index
    %c0_50 = arith.constant 0 : index
    %121 = vector.load %arg16[%c33, %c0_50] : memref<56x48xf32, #tpu.memory_space<vmem>>, vector<8x48xf32>
    %122 = vector.extract_strided_slice %116 {offsets = [0, 0], sizes = [1, 48], strides = [1, 1]} : vector<15x48xf32> to vector<1x48xf32>
    %123 = vector.broadcast %122 : vector<1x48xf32> to vector<8x48xf32>
    %124 = arith.mulf %121, %123 : vector<8x48xf32>
    %125 = arith.addf %117, %124 : vector<8x48xf32>
    %c34 = arith.constant 34 : index
    %c0_51 = arith.constant 0 : index
    %126 = vector.load %arg16[%c34, %c0_51] : memref<56x48xf32, #tpu.memory_space<vmem>>, vector<8x48xf32>
    %127 = vector.extract_strided_slice %116 {offsets = [1, 0], sizes = [1, 48], strides = [1, 1]} : vector<15x48xf32> to vector<1x48xf32>
    %128 = vector.broadcast %127 : vector<1x48xf32> to vector<8x48xf32>
    %129 = arith.mulf %126, %128 : vector<8x48xf32>
    %130 = arith.addf %118, %129 : vector<8x48xf32>
    %c35 = arith.constant 35 : index
    %c0_52 = arith.constant 0 : index
    %131 = vector.load %arg16[%c35, %c0_52] : memref<56x48xf32, #tpu.memory_space<vmem>>, vector<8x48xf32>
    %132 = vector.extract_strided_slice %116 {offsets = [2, 0], sizes = [1, 48], strides = [1, 1]} : vector<15x48xf32> to vector<1x48xf32>
    %133 = vector.broadcast %132 : vector<1x48xf32> to vector<8x48xf32>
    %134 = arith.mulf %131, %133 : vector<8x48xf32>
    %135 = arith.addf %119, %134 : vector<8x48xf32>
    %c36 = arith.constant 36 : index
    %c0_53 = arith.constant 0 : index
    %136 = vector.load %arg16[%c36, %c0_53] : memref<56x48xf32, #tpu.memory_space<vmem>>, vector<8x48xf32>
    %137 = vector.extract_strided_slice %116 {offsets = [3, 0], sizes = [1, 48], strides = [1, 1]} : vector<15x48xf32> to vector<1x48xf32>
    %138 = vector.broadcast %137 : vector<1x48xf32> to vector<8x48xf32>
    %139 = arith.mulf %136, %138 : vector<8x48xf32>
    %140 = arith.addf %120, %139 : vector<8x48xf32>
    %c37 = arith.constant 37 : index
    %c0_54 = arith.constant 0 : index
    %141 = vector.load %arg16[%c37, %c0_54] : memref<56x48xf32, #tpu.memory_space<vmem>>, vector<8x48xf32>
    %142 = vector.extract_strided_slice %116 {offsets = [4, 0], sizes = [1, 48], strides = [1, 1]} : vector<15x48xf32> to vector<1x48xf32>
    %143 = vector.broadcast %142 : vector<1x48xf32> to vector<8x48xf32>
    %144 = arith.mulf %141, %143 : vector<8x48xf32>
    %145 = arith.addf %125, %144 : vector<8x48xf32>
    %c38 = arith.constant 38 : index
    %c0_55 = arith.constant 0 : index
    %146 = vector.load %arg16[%c38, %c0_55] : memref<56x48xf32, #tpu.memory_space<vmem>>, vector<8x48xf32>
    %147 = vector.extract_strided_slice %116 {offsets = [5, 0], sizes = [1, 48], strides = [1, 1]} : vector<15x48xf32> to vector<1x48xf32>
    %148 = vector.broadcast %147 : vector<1x48xf32> to vector<8x48xf32>
    %149 = arith.mulf %146, %148 : vector<8x48xf32>
    %150 = arith.addf %130, %149 : vector<8x48xf32>
    %c39 = arith.constant 39 : index
    %c0_56 = arith.constant 0 : index
    %151 = vector.load %arg16[%c39, %c0_56] : memref<56x48xf32, #tpu.memory_space<vmem>>, vector<8x48xf32>
    %152 = vector.extract_strided_slice %116 {offsets = [6, 0], sizes = [1, 48], strides = [1, 1]} : vector<15x48xf32> to vector<1x48xf32>
    %153 = vector.broadcast %152 : vector<1x48xf32> to vector<8x48xf32>
    %154 = arith.mulf %151, %153 : vector<8x48xf32>
    %155 = arith.addf %135, %154 : vector<8x48xf32>
    %c40_57 = arith.constant 40 : index
    %c0_58 = arith.constant 0 : index
    %156 = vector.load %arg16[%c40_57, %c0_58] : memref<56x48xf32, #tpu.memory_space<vmem>>, vector<8x48xf32>
    %157 = vector.extract_strided_slice %116 {offsets = [7, 0], sizes = [1, 48], strides = [1, 1]} : vector<15x48xf32> to vector<1x48xf32>
    %158 = vector.broadcast %157 : vector<1x48xf32> to vector<8x48xf32>
    %159 = arith.mulf %156, %158 : vector<8x48xf32>
    %160 = arith.addf %140, %159 : vector<8x48xf32>
    %c41 = arith.constant 41 : index
    %c0_59 = arith.constant 0 : index
    %161 = vector.load %arg16[%c41, %c0_59] : memref<56x48xf32, #tpu.memory_space<vmem>>, vector<8x48xf32>
    %162 = vector.extract_strided_slice %116 {offsets = [8, 0], sizes = [1, 48], strides = [1, 1]} : vector<15x48xf32> to vector<1x48xf32>
    %163 = vector.broadcast %162 : vector<1x48xf32> to vector<8x48xf32>
    %164 = arith.mulf %161, %163 : vector<8x48xf32>
    %165 = arith.addf %145, %164 : vector<8x48xf32>
    %c42 = arith.constant 42 : index
    %c0_60 = arith.constant 0 : index
    %166 = vector.load %arg16[%c42, %c0_60] : memref<56x48xf32, #tpu.memory_space<vmem>>, vector<8x48xf32>
    %167 = vector.extract_strided_slice %116 {offsets = [9, 0], sizes = [1, 48], strides = [1, 1]} : vector<15x48xf32> to vector<1x48xf32>
    %168 = vector.broadcast %167 : vector<1x48xf32> to vector<8x48xf32>
    %169 = arith.mulf %166, %168 : vector<8x48xf32>
    %170 = arith.addf %150, %169 : vector<8x48xf32>
    %c43 = arith.constant 43 : index
    %c0_61 = arith.constant 0 : index
    %171 = vector.load %arg16[%c43, %c0_61] : memref<56x48xf32, #tpu.memory_space<vmem>>, vector<8x48xf32>
    %172 = vector.extract_strided_slice %116 {offsets = [10, 0], sizes = [1, 48], strides = [1, 1]} : vector<15x48xf32> to vector<1x48xf32>
    %173 = vector.broadcast %172 : vector<1x48xf32> to vector<8x48xf32>
    %174 = arith.mulf %171, %173 : vector<8x48xf32>
    %175 = arith.addf %155, %174 : vector<8x48xf32>
    %c44 = arith.constant 44 : index
    %c0_62 = arith.constant 0 : index
    %176 = vector.load %arg16[%c44, %c0_62] : memref<56x48xf32, #tpu.memory_space<vmem>>, vector<8x48xf32>
    %177 = vector.extract_strided_slice %116 {offsets = [11, 0], sizes = [1, 48], strides = [1, 1]} : vector<15x48xf32> to vector<1x48xf32>
    %178 = vector.broadcast %177 : vector<1x48xf32> to vector<8x48xf32>
    %179 = arith.mulf %176, %178 : vector<8x48xf32>
    %180 = arith.addf %160, %179 : vector<8x48xf32>
    %c45 = arith.constant 45 : index
    %c0_63 = arith.constant 0 : index
    %181 = vector.load %arg16[%c45, %c0_63] : memref<56x48xf32, #tpu.memory_space<vmem>>, vector<8x48xf32>
    %182 = vector.extract_strided_slice %116 {offsets = [12, 0], sizes = [1, 48], strides = [1, 1]} : vector<15x48xf32> to vector<1x48xf32>
    %183 = vector.broadcast %182 : vector<1x48xf32> to vector<8x48xf32>
    %184 = arith.mulf %181, %183 : vector<8x48xf32>
    %185 = arith.addf %165, %184 : vector<8x48xf32>
    %c46 = arith.constant 46 : index
    %c0_64 = arith.constant 0 : index
    %186 = vector.load %arg16[%c46, %c0_64] : memref<56x48xf32, #tpu.memory_space<vmem>>, vector<8x48xf32>
    %187 = vector.extract_strided_slice %116 {offsets = [13, 0], sizes = [1, 48], strides = [1, 1]} : vector<15x48xf32> to vector<1x48xf32>
    %188 = vector.broadcast %187 : vector<1x48xf32> to vector<8x48xf32>
    %189 = arith.mulf %186, %188 : vector<8x48xf32>
    %190 = arith.addf %170, %189 : vector<8x48xf32>
    %c47 = arith.constant 47 : index
    %c0_65 = arith.constant 0 : index
    %191 = vector.load %arg16[%c47, %c0_65] : memref<56x48xf32, #tpu.memory_space<vmem>>, vector<8x48xf32>
    %192 = vector.extract_strided_slice %116 {offsets = [14, 0], sizes = [1, 48], strides = [1, 1]} : vector<15x48xf32> to vector<1x48xf32>
    %193 = vector.broadcast %192 : vector<1x48xf32> to vector<8x48xf32>
    %194 = arith.mulf %191, %193 : vector<8x48xf32>
    %195 = arith.addf %175, %194 : vector<8x48xf32>
    %196 = arith.addf %185, %190 : vector<8x48xf32>
    %197 = arith.addf %195, %180 : vector<8x48xf32>
    %198 = arith.addf %196, %197 : vector<8x48xf32>
    %c0_66 = arith.constant 0 : index
    %c0_67 = arith.constant 0 : index
    %199 = vector.load %arg9[%c0_66, %c0_67] : memref<1x48xf32, #tpu.memory_space<vmem>>, vector<1x48xf32>
    %200 = vector.broadcast %199 : vector<1x48xf32> to vector<8x48xf32>
    %201 = arith.addf %198, %200 : vector<8x48xf32>
    %cst_68 = arith.constant 0.000000e+00 : f32
    %202 = vector.broadcast %cst_68 : f32 to vector<8x48xf32>
    %203 = arith.maximumf %201, %202 : vector<8x48xf32>
    %c0_69 = arith.constant 0 : index
    %c0_70 = arith.constant 0 : index
    %204 = vector.load %arg10[%c0_69, %c0_70] : memref<48x192xf32, #tpu.memory_space<vmem>>, vector<48x192xf32>
    %cst_71 = arith.constant dense<0.000000e+00> : vector<8x192xf32>
    %205 = tpu.matmul %203, %204, %cst_71 {dimension_numbers = #tpu.dot_dimension_numbers<[1], [0], [0], [1], [0, 0, 1, 1], [], []>} : vector<8x48xf32>, vector<48x192xf32>, vector<8x192xf32> -> vector<8x192xf32>
    %c0_72 = arith.constant 0 : index
    %c0_73 = arith.constant 0 : index
    %206 = vector.load %arg11[%c0_72, %c0_73] : memref<1x192xf32, #tpu.memory_space<vmem>>, vector<1x192xf32>
    %207 = vector.broadcast %206 : vector<1x192xf32> to vector<8x192xf32>
    %208 = arith.addf %205, %207 : vector<8x192xf32>
    %cst_74 = arith.constant 0.000000e+00 : f32
    %209 = vector.broadcast %cst_74 : f32 to vector<8x192xf32>
    %210 = arith.maximumf %208, %209 : vector<8x192xf32>
    %211 = vector.shape_cast %210 : vector<8x192xf32> to vector<4x2x192xf32>
    %212 = vector.extract_strided_slice %211 {offsets = [0, 0, 0], sizes = [4, 1, 192], strides = [1, 1, 1]} : vector<4x2x192xf32> to vector<4x1x192xf32>
    %213 = vector.shape_cast %212 : vector<4x1x192xf32> to vector<4x192xf32>
    %214 = vector.extract_strided_slice %211 {offsets = [0, 1, 0], sizes = [4, 1, 192], strides = [1, 1, 1]} : vector<4x2x192xf32> to vector<4x1x192xf32>
    %215 = vector.shape_cast %214 : vector<4x1x192xf32> to vector<4x192xf32>
    %216 = arith.addf %213, %215 : vector<4x192xf32>
    %cst_75 = arith.constant 5.000000e-01 : f32
    %217 = vector.broadcast %cst_75 : f32 to vector<4x192xf32>
    %218 = arith.mulf %216, %217 : vector<4x192xf32>
    %219 = tpu.concatenate %112, %218 in 0 : vector<4x192xf32>, vector<4x192xf32> -> vector<8x192xf32>
    %220 = vector.extract_strided_slice %219 {offsets = [0, 0], sizes = [8, 64], strides = [1, 1]} : vector<8x192xf32> to vector<8x64xf32>
    %cst_76 = arith.constant 2.500000e-01 : f32
    %221 = vector.broadcast %cst_76 : f32 to vector<8x64xf32>
    %222 = arith.mulf %220, %221 : vector<8x64xf32>
    %223 = vector.extract_strided_slice %219 {offsets = [0, 64], sizes = [8, 64], strides = [1, 1]} : vector<8x192xf32> to vector<8x64xf32>
    %224 = vector.extract_strided_slice %219 {offsets = [0, 128], sizes = [8, 64], strides = [1, 1]} : vector<8x192xf32> to vector<8x64xf32>
    %c0_77 = arith.constant 0 : index
    %c0_78 = arith.constant 0 : index
    %225 = vector.load %arg12[%c0_77, %c0_78] : memref<64x16xf32, #tpu.memory_space<vmem>>, vector<64x16xf32>
    %cst_79 = arith.constant 0.000000e+00 : f32
    %226 = vector.broadcast %cst_79 : f32 to vector<8x16xf32>
    %cst_80 = arith.constant 0.000000e+00 : f32
    %227 = vector.broadcast %cst_80 : f32 to vector<8x16xf32>
    %cst_81 = arith.constant 0.000000e+00 : f32
    %228 = vector.broadcast %cst_81 : f32 to vector<8x16xf32>
    %cst_82 = arith.constant 0.000000e+00 : f32
    %229 = vector.broadcast %cst_82 : f32 to vector<8x16xf32>
    %230 = vector.extract_strided_slice %222 {offsets = [0, 0], sizes = [8, 4], strides = [1, 1]} : vector<8x64xf32> to vector<8x4xf32>
    %231 = vector.extract_strided_slice %223 {offsets = [0, 0], sizes = [8, 4], strides = [1, 1]} : vector<8x64xf32> to vector<8x4xf32>
    %232 = vector.extract_strided_slice %224 {offsets = [0, 0], sizes = [8, 4], strides = [1, 1]} : vector<8x64xf32> to vector<8x4xf32>
    %cst_83 = arith.constant dense<0.000000e+00> : vector<8x8xf32>
    %233 = tpu.matmul %230, %231, %cst_83 {dimension_numbers = #tpu.dot_dimension_numbers<[1], [1], [0], [0], [0, 0, 1, 0], [], []>} : vector<8x4xf32>, vector<8x4xf32>, vector<8x8xf32> -> vector<8x8xf32>
    %cst_84 = arith.constant dense<0xFF800000> : vector<8xf32>
    %234 = vector.multi_reduction <maximumf>, %233, %cst_84 [1] : vector<8x8xf32> to vector<8xf32>
    %235 = vector.shape_cast %234 : vector<8xf32> to vector<8x1xf32>
    %236 = vector.broadcast %235 : vector<8x1xf32> to vector<8x8xf32>
    %237 = arith.subf %233, %236 : vector<8x8xf32>
    %238 = math.exp %237 : vector<8x8xf32>
    %cst_85 = arith.constant dense<0.000000e+00> : vector<8xf32>
    %239 = vector.multi_reduction <add>, %238, %cst_85 [1] : vector<8x8xf32> to vector<8xf32>
    %240 = vector.shape_cast %239 : vector<8xf32> to vector<8x1xf32>
    %241 = vector.broadcast %240 : vector<8x1xf32> to vector<8x8xf32>
    %242 = arith.divf %238, %241 : vector<8x8xf32>
    %cst_86 = arith.constant dense<0.000000e+00> : vector<8x4xf32>
    %243 = tpu.matmul %242, %232, %cst_86 {dimension_numbers = #tpu.dot_dimension_numbers<[1], [0], [0], [1], [0, 0, 1, 1], [], []>} : vector<8x8xf32>, vector<8x4xf32>, vector<8x4xf32> -> vector<8x4xf32>
    %244 = vector.extract_strided_slice %225 {offsets = [0, 0], sizes = [4, 16], strides = [1, 1]} : vector<64x16xf32> to vector<4x16xf32>
    %cst_87 = arith.constant dense<0.000000e+00> : vector<8x16xf32>
    %245 = tpu.matmul %243, %244, %cst_87 {dimension_numbers = #tpu.dot_dimension_numbers<[1], [0], [0], [1], [0, 0, 1, 1], [], []>} : vector<8x4xf32>, vector<4x16xf32>, vector<8x16xf32> -> vector<8x16xf32>
    %246 = arith.addf %226, %245 : vector<8x16xf32>
    %247 = vector.extract_strided_slice %222 {offsets = [0, 4], sizes = [8, 4], strides = [1, 1]} : vector<8x64xf32> to vector<8x4xf32>
    %248 = vector.extract_strided_slice %223 {offsets = [0, 4], sizes = [8, 4], strides = [1, 1]} : vector<8x64xf32> to vector<8x4xf32>
    %249 = vector.extract_strided_slice %224 {offsets = [0, 4], sizes = [8, 4], strides = [1, 1]} : vector<8x64xf32> to vector<8x4xf32>
    %cst_88 = arith.constant dense<0.000000e+00> : vector<8x8xf32>
    %250 = tpu.matmul %247, %248, %cst_88 {dimension_numbers = #tpu.dot_dimension_numbers<[1], [1], [0], [0], [0, 0, 1, 0], [], []>} : vector<8x4xf32>, vector<8x4xf32>, vector<8x8xf32> -> vector<8x8xf32>
    %cst_89 = arith.constant dense<0xFF800000> : vector<8xf32>
    %251 = vector.multi_reduction <maximumf>, %250, %cst_89 [1] : vector<8x8xf32> to vector<8xf32>
    %252 = vector.shape_cast %251 : vector<8xf32> to vector<8x1xf32>
    %253 = vector.broadcast %252 : vector<8x1xf32> to vector<8x8xf32>
    %254 = arith.subf %250, %253 : vector<8x8xf32>
    %255 = math.exp %254 : vector<8x8xf32>
    %cst_90 = arith.constant dense<0.000000e+00> : vector<8xf32>
    %256 = vector.multi_reduction <add>, %255, %cst_90 [1] : vector<8x8xf32> to vector<8xf32>
    %257 = vector.shape_cast %256 : vector<8xf32> to vector<8x1xf32>
    %258 = vector.broadcast %257 : vector<8x1xf32> to vector<8x8xf32>
    %259 = arith.divf %255, %258 : vector<8x8xf32>
    %cst_91 = arith.constant dense<0.000000e+00> : vector<8x4xf32>
    %260 = tpu.matmul %259, %249, %cst_91 {dimension_numbers = #tpu.dot_dimension_numbers<[1], [0], [0], [1], [0, 0, 1, 1], [], []>} : vector<8x8xf32>, vector<8x4xf32>, vector<8x4xf32> -> vector<8x4xf32>
    %261 = vector.extract_strided_slice %225 {offsets = [4, 0], sizes = [4, 16], strides = [1, 1]} : vector<64x16xf32> to vector<4x16xf32>
    %cst_92 = arith.constant dense<0.000000e+00> : vector<8x16xf32>
    %262 = tpu.matmul %260, %261, %cst_92 {dimension_numbers = #tpu.dot_dimension_numbers<[1], [0], [0], [1], [0, 0, 1, 1], [], []>} : vector<8x4xf32>, vector<4x16xf32>, vector<8x16xf32> -> vector<8x16xf32>
    %263 = arith.addf %227, %262 : vector<8x16xf32>
    %264 = vector.extract_strided_slice %222 {offsets = [0, 8], sizes = [8, 4], strides = [1, 1]} : vector<8x64xf32> to vector<8x4xf32>
    %265 = vector.extract_strided_slice %223 {offsets = [0, 8], sizes = [8, 4], strides = [1, 1]} : vector<8x64xf32> to vector<8x4xf32>
    %266 = vector.extract_strided_slice %224 {offsets = [0, 8], sizes = [8, 4], strides = [1, 1]} : vector<8x64xf32> to vector<8x4xf32>
    %cst_93 = arith.constant dense<0.000000e+00> : vector<8x8xf32>
    %267 = tpu.matmul %264, %265, %cst_93 {dimension_numbers = #tpu.dot_dimension_numbers<[1], [1], [0], [0], [0, 0, 1, 0], [], []>} : vector<8x4xf32>, vector<8x4xf32>, vector<8x8xf32> -> vector<8x8xf32>
    %cst_94 = arith.constant dense<0xFF800000> : vector<8xf32>
    %268 = vector.multi_reduction <maximumf>, %267, %cst_94 [1] : vector<8x8xf32> to vector<8xf32>
    %269 = vector.shape_cast %268 : vector<8xf32> to vector<8x1xf32>
    %270 = vector.broadcast %269 : vector<8x1xf32> to vector<8x8xf32>
    %271 = arith.subf %267, %270 : vector<8x8xf32>
    %272 = math.exp %271 : vector<8x8xf32>
    %cst_95 = arith.constant dense<0.000000e+00> : vector<8xf32>
    %273 = vector.multi_reduction <add>, %272, %cst_95 [1] : vector<8x8xf32> to vector<8xf32>
    %274 = vector.shape_cast %273 : vector<8xf32> to vector<8x1xf32>
    %275 = vector.broadcast %274 : vector<8x1xf32> to vector<8x8xf32>
    %276 = arith.divf %272, %275 : vector<8x8xf32>
    %cst_96 = arith.constant dense<0.000000e+00> : vector<8x4xf32>
    %277 = tpu.matmul %276, %266, %cst_96 {dimension_numbers = #tpu.dot_dimension_numbers<[1], [0], [0], [1], [0, 0, 1, 1], [], []>} : vector<8x8xf32>, vector<8x4xf32>, vector<8x4xf32> -> vector<8x4xf32>
    %278 = vector.extract_strided_slice %225 {offsets = [8, 0], sizes = [4, 16], strides = [1, 1]} : vector<64x16xf32> to vector<4x16xf32>
    %cst_97 = arith.constant dense<0.000000e+00> : vector<8x16xf32>
    %279 = tpu.matmul %277, %278, %cst_97 {dimension_numbers = #tpu.dot_dimension_numbers<[1], [0], [0], [1], [0, 0, 1, 1], [], []>} : vector<8x4xf32>, vector<4x16xf32>, vector<8x16xf32> -> vector<8x16xf32>
    %280 = arith.addf %228, %279 : vector<8x16xf32>
    %281 = vector.extract_strided_slice %222 {offsets = [0, 12], sizes = [8, 4], strides = [1, 1]} : vector<8x64xf32> to vector<8x4xf32>
    %282 = vector.extract_strided_slice %223 {offsets = [0, 12], sizes = [8, 4], strides = [1, 1]} : vector<8x64xf32> to vector<8x4xf32>
    %283 = vector.extract_strided_slice %224 {offsets = [0, 12], sizes = [8, 4], strides = [1, 1]} : vector<8x64xf32> to vector<8x4xf32>
    %cst_98 = arith.constant dense<0.000000e+00> : vector<8x8xf32>
    %284 = tpu.matmul %281, %282, %cst_98 {dimension_numbers = #tpu.dot_dimension_numbers<[1], [1], [0], [0], [0, 0, 1, 0], [], []>} : vector<8x4xf32>, vector<8x4xf32>, vector<8x8xf32> -> vector<8x8xf32>
    %cst_99 = arith.constant dense<0xFF800000> : vector<8xf32>
    %285 = vector.multi_reduction <maximumf>, %284, %cst_99 [1] : vector<8x8xf32> to vector<8xf32>
    %286 = vector.shape_cast %285 : vector<8xf32> to vector<8x1xf32>
    %287 = vector.broadcast %286 : vector<8x1xf32> to vector<8x8xf32>
    %288 = arith.subf %284, %287 : vector<8x8xf32>
    %289 = math.exp %288 : vector<8x8xf32>
    %cst_100 = arith.constant dense<0.000000e+00> : vector<8xf32>
    %290 = vector.multi_reduction <add>, %289, %cst_100 [1] : vector<8x8xf32> to vector<8xf32>
    %291 = vector.shape_cast %290 : vector<8xf32> to vector<8x1xf32>
    %292 = vector.broadcast %291 : vector<8x1xf32> to vector<8x8xf32>
    %293 = arith.divf %289, %292 : vector<8x8xf32>
    %cst_101 = arith.constant dense<0.000000e+00> : vector<8x4xf32>
    %294 = tpu.matmul %293, %283, %cst_101 {dimension_numbers = #tpu.dot_dimension_numbers<[1], [0], [0], [1], [0, 0, 1, 1], [], []>} : vector<8x8xf32>, vector<8x4xf32>, vector<8x4xf32> -> vector<8x4xf32>
    %295 = vector.extract_strided_slice %225 {offsets = [12, 0], sizes = [4, 16], strides = [1, 1]} : vector<64x16xf32> to vector<4x16xf32>
    %cst_102 = arith.constant dense<0.000000e+00> : vector<8x16xf32>
    %296 = tpu.matmul %294, %295, %cst_102 {dimension_numbers = #tpu.dot_dimension_numbers<[1], [0], [0], [1], [0, 0, 1, 1], [], []>} : vector<8x4xf32>, vector<4x16xf32>, vector<8x16xf32> -> vector<8x16xf32>
    %297 = arith.addf %229, %296 : vector<8x16xf32>
    %298 = vector.extract_strided_slice %222 {offsets = [0, 16], sizes = [8, 4], strides = [1, 1]} : vector<8x64xf32> to vector<8x4xf32>
    %299 = vector.extract_strided_slice %223 {offsets = [0, 16], sizes = [8, 4], strides = [1, 1]} : vector<8x64xf32> to vector<8x4xf32>
    %300 = vector.extract_strided_slice %224 {offsets = [0, 16], sizes = [8, 4], strides = [1, 1]} : vector<8x64xf32> to vector<8x4xf32>
    %cst_103 = arith.constant dense<0.000000e+00> : vector<8x8xf32>
    %301 = tpu.matmul %298, %299, %cst_103 {dimension_numbers = #tpu.dot_dimension_numbers<[1], [1], [0], [0], [0, 0, 1, 0], [], []>} : vector<8x4xf32>, vector<8x4xf32>, vector<8x8xf32> -> vector<8x8xf32>
    %cst_104 = arith.constant dense<0xFF800000> : vector<8xf32>
    %302 = vector.multi_reduction <maximumf>, %301, %cst_104 [1] : vector<8x8xf32> to vector<8xf32>
    %303 = vector.shape_cast %302 : vector<8xf32> to vector<8x1xf32>
    %304 = vector.broadcast %303 : vector<8x1xf32> to vector<8x8xf32>
    %305 = arith.subf %301, %304 : vector<8x8xf32>
    %306 = math.exp %305 : vector<8x8xf32>
    %cst_105 = arith.constant dense<0.000000e+00> : vector<8xf32>
    %307 = vector.multi_reduction <add>, %306, %cst_105 [1] : vector<8x8xf32> to vector<8xf32>
    %308 = vector.shape_cast %307 : vector<8xf32> to vector<8x1xf32>
    %309 = vector.broadcast %308 : vector<8x1xf32> to vector<8x8xf32>
    %310 = arith.divf %306, %309 : vector<8x8xf32>
    %cst_106 = arith.constant dense<0.000000e+00> : vector<8x4xf32>
    %311 = tpu.matmul %310, %300, %cst_106 {dimension_numbers = #tpu.dot_dimension_numbers<[1], [0], [0], [1], [0, 0, 1, 1], [], []>} : vector<8x8xf32>, vector<8x4xf32>, vector<8x4xf32> -> vector<8x4xf32>
    %312 = vector.extract_strided_slice %225 {offsets = [16, 0], sizes = [4, 16], strides = [1, 1]} : vector<64x16xf32> to vector<4x16xf32>
    %cst_107 = arith.constant dense<0.000000e+00> : vector<8x16xf32>
    %313 = tpu.matmul %311, %312, %cst_107 {dimension_numbers = #tpu.dot_dimension_numbers<[1], [0], [0], [1], [0, 0, 1, 1], [], []>} : vector<8x4xf32>, vector<4x16xf32>, vector<8x16xf32> -> vector<8x16xf32>
    %314 = arith.addf %246, %313 : vector<8x16xf32>
    %315 = vector.extract_strided_slice %222 {offsets = [0, 20], sizes = [8, 4], strides = [1, 1]} : vector<8x64xf32> to vector<8x4xf32>
    %316 = vector.extract_strided_slice %223 {offsets = [0, 20], sizes = [8, 4], strides = [1, 1]} : vector<8x64xf32> to vector<8x4xf32>
    %317 = vector.extract_strided_slice %224 {offsets = [0, 20], sizes = [8, 4], strides = [1, 1]} : vector<8x64xf32> to vector<8x4xf32>
    %cst_108 = arith.constant dense<0.000000e+00> : vector<8x8xf32>
    %318 = tpu.matmul %315, %316, %cst_108 {dimension_numbers = #tpu.dot_dimension_numbers<[1], [1], [0], [0], [0, 0, 1, 0], [], []>} : vector<8x4xf32>, vector<8x4xf32>, vector<8x8xf32> -> vector<8x8xf32>
    %cst_109 = arith.constant dense<0xFF800000> : vector<8xf32>
    %319 = vector.multi_reduction <maximumf>, %318, %cst_109 [1] : vector<8x8xf32> to vector<8xf32>
    %320 = vector.shape_cast %319 : vector<8xf32> to vector<8x1xf32>
    %321 = vector.broadcast %320 : vector<8x1xf32> to vector<8x8xf32>
    %322 = arith.subf %318, %321 : vector<8x8xf32>
    %323 = math.exp %322 : vector<8x8xf32>
    %cst_110 = arith.constant dense<0.000000e+00> : vector<8xf32>
    %324 = vector.multi_reduction <add>, %323, %cst_110 [1] : vector<8x8xf32> to vector<8xf32>
    %325 = vector.shape_cast %324 : vector<8xf32> to vector<8x1xf32>
    %326 = vector.broadcast %325 : vector<8x1xf32> to vector<8x8xf32>
    %327 = arith.divf %323, %326 : vector<8x8xf32>
    %cst_111 = arith.constant dense<0.000000e+00> : vector<8x4xf32>
    %328 = tpu.matmul %327, %317, %cst_111 {dimension_numbers = #tpu.dot_dimension_numbers<[1], [0], [0], [1], [0, 0, 1, 1], [], []>} : vector<8x8xf32>, vector<8x4xf32>, vector<8x4xf32> -> vector<8x4xf32>
    %329 = vector.extract_strided_slice %225 {offsets = [20, 0], sizes = [4, 16], strides = [1, 1]} : vector<64x16xf32> to vector<4x16xf32>
    %cst_112 = arith.constant dense<0.000000e+00> : vector<8x16xf32>
    %330 = tpu.matmul %328, %329, %cst_112 {dimension_numbers = #tpu.dot_dimension_numbers<[1], [0], [0], [1], [0, 0, 1, 1], [], []>} : vector<8x4xf32>, vector<4x16xf32>, vector<8x16xf32> -> vector<8x16xf32>
    %331 = arith.addf %263, %330 : vector<8x16xf32>
    %332 = vector.extract_strided_slice %222 {offsets = [0, 24], sizes = [8, 4], strides = [1, 1]} : vector<8x64xf32> to vector<8x4xf32>
    %333 = vector.extract_strided_slice %223 {offsets = [0, 24], sizes = [8, 4], strides = [1, 1]} : vector<8x64xf32> to vector<8x4xf32>
    %334 = vector.extract_strided_slice %224 {offsets = [0, 24], sizes = [8, 4], strides = [1, 1]} : vector<8x64xf32> to vector<8x4xf32>
    %cst_113 = arith.constant dense<0.000000e+00> : vector<8x8xf32>
    %335 = tpu.matmul %332, %333, %cst_113 {dimension_numbers = #tpu.dot_dimension_numbers<[1], [1], [0], [0], [0, 0, 1, 0], [], []>} : vector<8x4xf32>, vector<8x4xf32>, vector<8x8xf32> -> vector<8x8xf32>
    %cst_114 = arith.constant dense<0xFF800000> : vector<8xf32>
    %336 = vector.multi_reduction <maximumf>, %335, %cst_114 [1] : vector<8x8xf32> to vector<8xf32>
    %337 = vector.shape_cast %336 : vector<8xf32> to vector<8x1xf32>
    %338 = vector.broadcast %337 : vector<8x1xf32> to vector<8x8xf32>
    %339 = arith.subf %335, %338 : vector<8x8xf32>
    %340 = math.exp %339 : vector<8x8xf32>
    %cst_115 = arith.constant dense<0.000000e+00> : vector<8xf32>
    %341 = vector.multi_reduction <add>, %340, %cst_115 [1] : vector<8x8xf32> to vector<8xf32>
    %342 = vector.shape_cast %341 : vector<8xf32> to vector<8x1xf32>
    %343 = vector.broadcast %342 : vector<8x1xf32> to vector<8x8xf32>
    %344 = arith.divf %340, %343 : vector<8x8xf32>
    %cst_116 = arith.constant dense<0.000000e+00> : vector<8x4xf32>
    %345 = tpu.matmul %344, %334, %cst_116 {dimension_numbers = #tpu.dot_dimension_numbers<[1], [0], [0], [1], [0, 0, 1, 1], [], []>} : vector<8x8xf32>, vector<8x4xf32>, vector<8x4xf32> -> vector<8x4xf32>
    %346 = vector.extract_strided_slice %225 {offsets = [24, 0], sizes = [4, 16], strides = [1, 1]} : vector<64x16xf32> to vector<4x16xf32>
    %cst_117 = arith.constant dense<0.000000e+00> : vector<8x16xf32>
    %347 = tpu.matmul %345, %346, %cst_117 {dimension_numbers = #tpu.dot_dimension_numbers<[1], [0], [0], [1], [0, 0, 1, 1], [], []>} : vector<8x4xf32>, vector<4x16xf32>, vector<8x16xf32> -> vector<8x16xf32>
    %348 = arith.addf %280, %347 : vector<8x16xf32>
    %349 = vector.extract_strided_slice %222 {offsets = [0, 28], sizes = [8, 4], strides = [1, 1]} : vector<8x64xf32> to vector<8x4xf32>
    %350 = vector.extract_strided_slice %223 {offsets = [0, 28], sizes = [8, 4], strides = [1, 1]} : vector<8x64xf32> to vector<8x4xf32>
    %351 = vector.extract_strided_slice %224 {offsets = [0, 28], sizes = [8, 4], strides = [1, 1]} : vector<8x64xf32> to vector<8x4xf32>
    %cst_118 = arith.constant dense<0.000000e+00> : vector<8x8xf32>
    %352 = tpu.matmul %349, %350, %cst_118 {dimension_numbers = #tpu.dot_dimension_numbers<[1], [1], [0], [0], [0, 0, 1, 0], [], []>} : vector<8x4xf32>, vector<8x4xf32>, vector<8x8xf32> -> vector<8x8xf32>
    %cst_119 = arith.constant dense<0xFF800000> : vector<8xf32>
    %353 = vector.multi_reduction <maximumf>, %352, %cst_119 [1] : vector<8x8xf32> to vector<8xf32>
    %354 = vector.shape_cast %353 : vector<8xf32> to vector<8x1xf32>
    %355 = vector.broadcast %354 : vector<8x1xf32> to vector<8x8xf32>
    %356 = arith.subf %352, %355 : vector<8x8xf32>
    %357 = math.exp %356 : vector<8x8xf32>
    %cst_120 = arith.constant dense<0.000000e+00> : vector<8xf32>
    %358 = vector.multi_reduction <add>, %357, %cst_120 [1] : vector<8x8xf32> to vector<8xf32>
    %359 = vector.shape_cast %358 : vector<8xf32> to vector<8x1xf32>
    %360 = vector.broadcast %359 : vector<8x1xf32> to vector<8x8xf32>
    %361 = arith.divf %357, %360 : vector<8x8xf32>
    %cst_121 = arith.constant dense<0.000000e+00> : vector<8x4xf32>
    %362 = tpu.matmul %361, %351, %cst_121 {dimension_numbers = #tpu.dot_dimension_numbers<[1], [0], [0], [1], [0, 0, 1, 1], [], []>} : vector<8x8xf32>, vector<8x4xf32>, vector<8x4xf32> -> vector<8x4xf32>
    %363 = vector.extract_strided_slice %225 {offsets = [28, 0], sizes = [4, 16], strides = [1, 1]} : vector<64x16xf32> to vector<4x16xf32>
    %cst_122 = arith.constant dense<0.000000e+00> : vector<8x16xf32>
    %364 = tpu.matmul %362, %363, %cst_122 {dimension_numbers = #tpu.dot_dimension_numbers<[1], [0], [0], [1], [0, 0, 1, 1], [], []>} : vector<8x4xf32>, vector<4x16xf32>, vector<8x16xf32> -> vector<8x16xf32>
    %365 = arith.addf %297, %364 : vector<8x16xf32>
    %366 = vector.extract_strided_slice %222 {offsets = [0, 32], sizes = [8, 4], strides = [1, 1]} : vector<8x64xf32> to vector<8x4xf32>
    %367 = vector.extract_strided_slice %223 {offsets = [0, 32], sizes = [8, 4], strides = [1, 1]} : vector<8x64xf32> to vector<8x4xf32>
    %368 = vector.extract_strided_slice %224 {offsets = [0, 32], sizes = [8, 4], strides = [1, 1]} : vector<8x64xf32> to vector<8x4xf32>
    %cst_123 = arith.constant dense<0.000000e+00> : vector<8x8xf32>
    %369 = tpu.matmul %366, %367, %cst_123 {dimension_numbers = #tpu.dot_dimension_numbers<[1], [1], [0], [0], [0, 0, 1, 0], [], []>} : vector<8x4xf32>, vector<8x4xf32>, vector<8x8xf32> -> vector<8x8xf32>
    %cst_124 = arith.constant dense<0xFF800000> : vector<8xf32>
    %370 = vector.multi_reduction <maximumf>, %369, %cst_124 [1] : vector<8x8xf32> to vector<8xf32>
    %371 = vector.shape_cast %370 : vector<8xf32> to vector<8x1xf32>
    %372 = vector.broadcast %371 : vector<8x1xf32> to vector<8x8xf32>
    %373 = arith.subf %369, %372 : vector<8x8xf32>
    %374 = math.exp %373 : vector<8x8xf32>
    %cst_125 = arith.constant dense<0.000000e+00> : vector<8xf32>
    %375 = vector.multi_reduction <add>, %374, %cst_125 [1] : vector<8x8xf32> to vector<8xf32>
    %376 = vector.shape_cast %375 : vector<8xf32> to vector<8x1xf32>
    %377 = vector.broadcast %376 : vector<8x1xf32> to vector<8x8xf32>
    %378 = arith.divf %374, %377 : vector<8x8xf32>
    %cst_126 = arith.constant dense<0.000000e+00> : vector<8x4xf32>
    %379 = tpu.matmul %378, %368, %cst_126 {dimension_numbers = #tpu.dot_dimension_numbers<[1], [0], [0], [1], [0, 0, 1, 1], [], []>} : vector<8x8xf32>, vector<8x4xf32>, vector<8x4xf32> -> vector<8x4xf32>
    %380 = vector.extract_strided_slice %225 {offsets = [32, 0], sizes = [4, 16], strides = [1, 1]} : vector<64x16xf32> to vector<4x16xf32>
    %cst_127 = arith.constant dense<0.000000e+00> : vector<8x16xf32>
    %381 = tpu.matmul %379, %380, %cst_127 {dimension_numbers = #tpu.dot_dimension_numbers<[1], [0], [0], [1], [0, 0, 1, 1], [], []>} : vector<8x4xf32>, vector<4x16xf32>, vector<8x16xf32> -> vector<8x16xf32>
    %382 = arith.addf %314, %381 : vector<8x16xf32>
    %383 = vector.extract_strided_slice %222 {offsets = [0, 36], sizes = [8, 4], strides = [1, 1]} : vector<8x64xf32> to vector<8x4xf32>
    %384 = vector.extract_strided_slice %223 {offsets = [0, 36], sizes = [8, 4], strides = [1, 1]} : vector<8x64xf32> to vector<8x4xf32>
    %385 = vector.extract_strided_slice %224 {offsets = [0, 36], sizes = [8, 4], strides = [1, 1]} : vector<8x64xf32> to vector<8x4xf32>
    %cst_128 = arith.constant dense<0.000000e+00> : vector<8x8xf32>
    %386 = tpu.matmul %383, %384, %cst_128 {dimension_numbers = #tpu.dot_dimension_numbers<[1], [1], [0], [0], [0, 0, 1, 0], [], []>} : vector<8x4xf32>, vector<8x4xf32>, vector<8x8xf32> -> vector<8x8xf32>
    %cst_129 = arith.constant dense<0xFF800000> : vector<8xf32>
    %387 = vector.multi_reduction <maximumf>, %386, %cst_129 [1] : vector<8x8xf32> to vector<8xf32>
    %388 = vector.shape_cast %387 : vector<8xf32> to vector<8x1xf32>
    %389 = vector.broadcast %388 : vector<8x1xf32> to vector<8x8xf32>
    %390 = arith.subf %386, %389 : vector<8x8xf32>
    %391 = math.exp %390 : vector<8x8xf32>
    %cst_130 = arith.constant dense<0.000000e+00> : vector<8xf32>
    %392 = vector.multi_reduction <add>, %391, %cst_130 [1] : vector<8x8xf32> to vector<8xf32>
    %393 = vector.shape_cast %392 : vector<8xf32> to vector<8x1xf32>
    %394 = vector.broadcast %393 : vector<8x1xf32> to vector<8x8xf32>
    %395 = arith.divf %391, %394 : vector<8x8xf32>
    %cst_131 = arith.constant dense<0.000000e+00> : vector<8x4xf32>
    %396 = tpu.matmul %395, %385, %cst_131 {dimension_numbers = #tpu.dot_dimension_numbers<[1], [0], [0], [1], [0, 0, 1, 1], [], []>} : vector<8x8xf32>, vector<8x4xf32>, vector<8x4xf32> -> vector<8x4xf32>
    %397 = vector.extract_strided_slice %225 {offsets = [36, 0], sizes = [4, 16], strides = [1, 1]} : vector<64x16xf32> to vector<4x16xf32>
    %cst_132 = arith.constant dense<0.000000e+00> : vector<8x16xf32>
    %398 = tpu.matmul %396, %397, %cst_132 {dimension_numbers = #tpu.dot_dimension_numbers<[1], [0], [0], [1], [0, 0, 1, 1], [], []>} : vector<8x4xf32>, vector<4x16xf32>, vector<8x16xf32> -> vector<8x16xf32>
    %399 = arith.addf %331, %398 : vector<8x16xf32>
    %400 = vector.extract_strided_slice %222 {offsets = [0, 40], sizes = [8, 4], strides = [1, 1]} : vector<8x64xf32> to vector<8x4xf32>
    %401 = vector.extract_strided_slice %223 {offsets = [0, 40], sizes = [8, 4], strides = [1, 1]} : vector<8x64xf32> to vector<8x4xf32>
    %402 = vector.extract_strided_slice %224 {offsets = [0, 40], sizes = [8, 4], strides = [1, 1]} : vector<8x64xf32> to vector<8x4xf32>
    %cst_133 = arith.constant dense<0.000000e+00> : vector<8x8xf32>
    %403 = tpu.matmul %400, %401, %cst_133 {dimension_numbers = #tpu.dot_dimension_numbers<[1], [1], [0], [0], [0, 0, 1, 0], [], []>} : vector<8x4xf32>, vector<8x4xf32>, vector<8x8xf32> -> vector<8x8xf32>
    %cst_134 = arith.constant dense<0xFF800000> : vector<8xf32>
    %404 = vector.multi_reduction <maximumf>, %403, %cst_134 [1] : vector<8x8xf32> to vector<8xf32>
    %405 = vector.shape_cast %404 : vector<8xf32> to vector<8x1xf32>
    %406 = vector.broadcast %405 : vector<8x1xf32> to vector<8x8xf32>
    %407 = arith.subf %403, %406 : vector<8x8xf32>
    %408 = math.exp %407 : vector<8x8xf32>
    %cst_135 = arith.constant dense<0.000000e+00> : vector<8xf32>
    %409 = vector.multi_reduction <add>, %408, %cst_135 [1] : vector<8x8xf32> to vector<8xf32>
    %410 = vector.shape_cast %409 : vector<8xf32> to vector<8x1xf32>
    %411 = vector.broadcast %410 : vector<8x1xf32> to vector<8x8xf32>
    %412 = arith.divf %408, %411 : vector<8x8xf32>
    %cst_136 = arith.constant dense<0.000000e+00> : vector<8x4xf32>
    %413 = tpu.matmul %412, %402, %cst_136 {dimension_numbers = #tpu.dot_dimension_numbers<[1], [0], [0], [1], [0, 0, 1, 1], [], []>} : vector<8x8xf32>, vector<8x4xf32>, vector<8x4xf32> -> vector<8x4xf32>
    %414 = vector.extract_strided_slice %225 {offsets = [40, 0], sizes = [4, 16], strides = [1, 1]} : vector<64x16xf32> to vector<4x16xf32>
    %cst_137 = arith.constant dense<0.000000e+00> : vector<8x16xf32>
    %415 = tpu.matmul %413, %414, %cst_137 {dimension_numbers = #tpu.dot_dimension_numbers<[1], [0], [0], [1], [0, 0, 1, 1], [], []>} : vector<8x4xf32>, vector<4x16xf32>, vector<8x16xf32> -> vector<8x16xf32>
    %416 = arith.addf %348, %415 : vector<8x16xf32>
    %417 = vector.extract_strided_slice %222 {offsets = [0, 44], sizes = [8, 4], strides = [1, 1]} : vector<8x64xf32> to vector<8x4xf32>
    %418 = vector.extract_strided_slice %223 {offsets = [0, 44], sizes = [8, 4], strides = [1, 1]} : vector<8x64xf32> to vector<8x4xf32>
    %419 = vector.extract_strided_slice %224 {offsets = [0, 44], sizes = [8, 4], strides = [1, 1]} : vector<8x64xf32> to vector<8x4xf32>
    %cst_138 = arith.constant dense<0.000000e+00> : vector<8x8xf32>
    %420 = tpu.matmul %417, %418, %cst_138 {dimension_numbers = #tpu.dot_dimension_numbers<[1], [1], [0], [0], [0, 0, 1, 0], [], []>} : vector<8x4xf32>, vector<8x4xf32>, vector<8x8xf32> -> vector<8x8xf32>
    %cst_139 = arith.constant dense<0xFF800000> : vector<8xf32>
    %421 = vector.multi_reduction <maximumf>, %420, %cst_139 [1] : vector<8x8xf32> to vector<8xf32>
    %422 = vector.shape_cast %421 : vector<8xf32> to vector<8x1xf32>
    %423 = vector.broadcast %422 : vector<8x1xf32> to vector<8x8xf32>
    %424 = arith.subf %420, %423 : vector<8x8xf32>
    %425 = math.exp %424 : vector<8x8xf32>
    %cst_140 = arith.constant dense<0.000000e+00> : vector<8xf32>
    %426 = vector.multi_reduction <add>, %425, %cst_140 [1] : vector<8x8xf32> to vector<8xf32>
    %427 = vector.shape_cast %426 : vector<8xf32> to vector<8x1xf32>
    %428 = vector.broadcast %427 : vector<8x1xf32> to vector<8x8xf32>
    %429 = arith.divf %425, %428 : vector<8x8xf32>
    %cst_141 = arith.constant dense<0.000000e+00> : vector<8x4xf32>
    %430 = tpu.matmul %429, %419, %cst_141 {dimension_numbers = #tpu.dot_dimension_numbers<[1], [0], [0], [1], [0, 0, 1, 1], [], []>} : vector<8x8xf32>, vector<8x4xf32>, vector<8x4xf32> -> vector<8x4xf32>
    %431 = vector.extract_strided_slice %225 {offsets = [44, 0], sizes = [4, 16], strides = [1, 1]} : vector<64x16xf32> to vector<4x16xf32>
    %cst_142 = arith.constant dense<0.000000e+00> : vector<8x16xf32>
    %432 = tpu.matmul %430, %431, %cst_142 {dimension_numbers = #tpu.dot_dimension_numbers<[1], [0], [0], [1], [0, 0, 1, 1], [], []>} : vector<8x4xf32>, vector<4x16xf32>, vector<8x16xf32> -> vector<8x16xf32>
    %433 = arith.addf %365, %432 : vector<8x16xf32>
    %434 = vector.extract_strided_slice %222 {offsets = [0, 48], sizes = [8, 4], strides = [1, 1]} : vector<8x64xf32> to vector<8x4xf32>
    %435 = vector.extract_strided_slice %223 {offsets = [0, 48], sizes = [8, 4], strides = [1, 1]} : vector<8x64xf32> to vector<8x4xf32>
    %436 = vector.extract_strided_slice %224 {offsets = [0, 48], sizes = [8, 4], strides = [1, 1]} : vector<8x64xf32> to vector<8x4xf32>
    %cst_143 = arith.constant dense<0.000000e+00> : vector<8x8xf32>
    %437 = tpu.matmul %434, %435, %cst_143 {dimension_numbers = #tpu.dot_dimension_numbers<[1], [1], [0], [0], [0, 0, 1, 0], [], []>} : vector<8x4xf32>, vector<8x4xf32>, vector<8x8xf32> -> vector<8x8xf32>
    %cst_144 = arith.constant dense<0xFF800000> : vector<8xf32>
    %438 = vector.multi_reduction <maximumf>, %437, %cst_144 [1] : vector<8x8xf32> to vector<8xf32>
    %439 = vector.shape_cast %438 : vector<8xf32> to vector<8x1xf32>
    %440 = vector.broadcast %439 : vector<8x1xf32> to vector<8x8xf32>
    %441 = arith.subf %437, %440 : vector<8x8xf32>
    %442 = math.exp %441 : vector<8x8xf32>
    %cst_145 = arith.constant dense<0.000000e+00> : vector<8xf32>
    %443 = vector.multi_reduction <add>, %442, %cst_145 [1] : vector<8x8xf32> to vector<8xf32>
    %444 = vector.shape_cast %443 : vector<8xf32> to vector<8x1xf32>
    %445 = vector.broadcast %444 : vector<8x1xf32> to vector<8x8xf32>
    %446 = arith.divf %442, %445 : vector<8x8xf32>
    %cst_146 = arith.constant dense<0.000000e+00> : vector<8x4xf32>
    %447 = tpu.matmul %446, %436, %cst_146 {dimension_numbers = #tpu.dot_dimension_numbers<[1], [0], [0], [1], [0, 0, 1, 1], [], []>} : vector<8x8xf32>, vector<8x4xf32>, vector<8x4xf32> -> vector<8x4xf32>
    %448 = vector.extract_strided_slice %225 {offsets = [48, 0], sizes = [4, 16], strides = [1, 1]} : vector<64x16xf32> to vector<4x16xf32>
    %cst_147 = arith.constant dense<0.000000e+00> : vector<8x16xf32>
    %449 = tpu.matmul %447, %448, %cst_147 {dimension_numbers = #tpu.dot_dimension_numbers<[1], [0], [0], [1], [0, 0, 1, 1], [], []>} : vector<8x4xf32>, vector<4x16xf32>, vector<8x16xf32> -> vector<8x16xf32>
    %450 = arith.addf %382, %449 : vector<8x16xf32>
    %451 = vector.extract_strided_slice %222 {offsets = [0, 52], sizes = [8, 4], strides = [1, 1]} : vector<8x64xf32> to vector<8x4xf32>
    %452 = vector.extract_strided_slice %223 {offsets = [0, 52], sizes = [8, 4], strides = [1, 1]} : vector<8x64xf32> to vector<8x4xf32>
    %453 = vector.extract_strided_slice %224 {offsets = [0, 52], sizes = [8, 4], strides = [1, 1]} : vector<8x64xf32> to vector<8x4xf32>
    %cst_148 = arith.constant dense<0.000000e+00> : vector<8x8xf32>
    %454 = tpu.matmul %451, %452, %cst_148 {dimension_numbers = #tpu.dot_dimension_numbers<[1], [1], [0], [0], [0, 0, 1, 0], [], []>} : vector<8x4xf32>, vector<8x4xf32>, vector<8x8xf32> -> vector<8x8xf32>
    %cst_149 = arith.constant dense<0xFF800000> : vector<8xf32>
    %455 = vector.multi_reduction <maximumf>, %454, %cst_149 [1] : vector<8x8xf32> to vector<8xf32>
    %456 = vector.shape_cast %455 : vector<8xf32> to vector<8x1xf32>
    %457 = vector.broadcast %456 : vector<8x1xf32> to vector<8x8xf32>
    %458 = arith.subf %454, %457 : vector<8x8xf32>
    %459 = math.exp %458 : vector<8x8xf32>
    %cst_150 = arith.constant dense<0.000000e+00> : vector<8xf32>
    %460 = vector.multi_reduction <add>, %459, %cst_150 [1] : vector<8x8xf32> to vector<8xf32>
    %461 = vector.shape_cast %460 : vector<8xf32> to vector<8x1xf32>
    %462 = vector.broadcast %461 : vector<8x1xf32> to vector<8x8xf32>
    %463 = arith.divf %459, %462 : vector<8x8xf32>
    %cst_151 = arith.constant dense<0.000000e+00> : vector<8x4xf32>
    %464 = tpu.matmul %463, %453, %cst_151 {dimension_numbers = #tpu.dot_dimension_numbers<[1], [0], [0], [1], [0, 0, 1, 1], [], []>} : vector<8x8xf32>, vector<8x4xf32>, vector<8x4xf32> -> vector<8x4xf32>
    %465 = vector.extract_strided_slice %225 {offsets = [52, 0], sizes = [4, 16], strides = [1, 1]} : vector<64x16xf32> to vector<4x16xf32>
    %cst_152 = arith.constant dense<0.000000e+00> : vector<8x16xf32>
    %466 = tpu.matmul %464, %465, %cst_152 {dimension_numbers = #tpu.dot_dimension_numbers<[1], [0], [0], [1], [0, 0, 1, 1], [], []>} : vector<8x4xf32>, vector<4x16xf32>, vector<8x16xf32> -> vector<8x16xf32>
    %467 = arith.addf %399, %466 : vector<8x16xf32>
    %468 = vector.extract_strided_slice %222 {offsets = [0, 56], sizes = [8, 4], strides = [1, 1]} : vector<8x64xf32> to vector<8x4xf32>
    %469 = vector.extract_strided_slice %223 {offsets = [0, 56], sizes = [8, 4], strides = [1, 1]} : vector<8x64xf32> to vector<8x4xf32>
    %470 = vector.extract_strided_slice %224 {offsets = [0, 56], sizes = [8, 4], strides = [1, 1]} : vector<8x64xf32> to vector<8x4xf32>
    %cst_153 = arith.constant dense<0.000000e+00> : vector<8x8xf32>
    %471 = tpu.matmul %468, %469, %cst_153 {dimension_numbers = #tpu.dot_dimension_numbers<[1], [1], [0], [0], [0, 0, 1, 0], [], []>} : vector<8x4xf32>, vector<8x4xf32>, vector<8x8xf32> -> vector<8x8xf32>
    %cst_154 = arith.constant dense<0xFF800000> : vector<8xf32>
    %472 = vector.multi_reduction <maximumf>, %471, %cst_154 [1] : vector<8x8xf32> to vector<8xf32>
    %473 = vector.shape_cast %472 : vector<8xf32> to vector<8x1xf32>
    %474 = vector.broadcast %473 : vector<8x1xf32> to vector<8x8xf32>
    %475 = arith.subf %471, %474 : vector<8x8xf32>
    %476 = math.exp %475 : vector<8x8xf32>
    %cst_155 = arith.constant dense<0.000000e+00> : vector<8xf32>
    %477 = vector.multi_reduction <add>, %476, %cst_155 [1] : vector<8x8xf32> to vector<8xf32>
    %478 = vector.shape_cast %477 : vector<8xf32> to vector<8x1xf32>
    %479 = vector.broadcast %478 : vector<8x1xf32> to vector<8x8xf32>
    %480 = arith.divf %476, %479 : vector<8x8xf32>
    %cst_156 = arith.constant dense<0.000000e+00> : vector<8x4xf32>
    %481 = tpu.matmul %480, %470, %cst_156 {dimension_numbers = #tpu.dot_dimension_numbers<[1], [0], [0], [1], [0, 0, 1, 1], [], []>} : vector<8x8xf32>, vector<8x4xf32>, vector<8x4xf32> -> vector<8x4xf32>
    %482 = vector.extract_strided_slice %225 {offsets = [56, 0], sizes = [4, 16], strides = [1, 1]} : vector<64x16xf32> to vector<4x16xf32>
    %cst_157 = arith.constant dense<0.000000e+00> : vector<8x16xf32>
    %483 = tpu.matmul %481, %482, %cst_157 {dimension_numbers = #tpu.dot_dimension_numbers<[1], [0], [0], [1], [0, 0, 1, 1], [], []>} : vector<8x4xf32>, vector<4x16xf32>, vector<8x16xf32> -> vector<8x16xf32>
    %484 = arith.addf %416, %483 : vector<8x16xf32>
    %485 = vector.extract_strided_slice %222 {offsets = [0, 60], sizes = [8, 4], strides = [1, 1]} : vector<8x64xf32> to vector<8x4xf32>
    %486 = vector.extract_strided_slice %223 {offsets = [0, 60], sizes = [8, 4], strides = [1, 1]} : vector<8x64xf32> to vector<8x4xf32>
    %487 = vector.extract_strided_slice %224 {offsets = [0, 60], sizes = [8, 4], strides = [1, 1]} : vector<8x64xf32> to vector<8x4xf32>
    %cst_158 = arith.constant dense<0.000000e+00> : vector<8x8xf32>
    %488 = tpu.matmul %485, %486, %cst_158 {dimension_numbers = #tpu.dot_dimension_numbers<[1], [1], [0], [0], [0, 0, 1, 0], [], []>} : vector<8x4xf32>, vector<8x4xf32>, vector<8x8xf32> -> vector<8x8xf32>
    %cst_159 = arith.constant dense<0xFF800000> : vector<8xf32>
    %489 = vector.multi_reduction <maximumf>, %488, %cst_159 [1] : vector<8x8xf32> to vector<8xf32>
    %490 = vector.shape_cast %489 : vector<8xf32> to vector<8x1xf32>
    %491 = vector.broadcast %490 : vector<8x1xf32> to vector<8x8xf32>
    %492 = arith.subf %488, %491 : vector<8x8xf32>
    %493 = math.exp %492 : vector<8x8xf32>
    %cst_160 = arith.constant dense<0.000000e+00> : vector<8xf32>
    %494 = vector.multi_reduction <add>, %493, %cst_160 [1] : vector<8x8xf32> to vector<8xf32>
    %495 = vector.shape_cast %494 : vector<8xf32> to vector<8x1xf32>
    %496 = vector.broadcast %495 : vector<8x1xf32> to vector<8x8xf32>
    %497 = arith.divf %493, %496 : vector<8x8xf32>
    %cst_161 = arith.constant dense<0.000000e+00> : vector<8x4xf32>
    %498 = tpu.matmul %497, %487, %cst_161 {dimension_numbers = #tpu.dot_dimension_numbers<[1], [0], [0], [1], [0, 0, 1, 1], [], []>} : vector<8x8xf32>, vector<8x4xf32>, vector<8x4xf32> -> vector<8x4xf32>
    %499 = vector.extract_strided_slice %225 {offsets = [60, 0], sizes = [4, 16], strides = [1, 1]} : vector<64x16xf32> to vector<4x16xf32>
    %cst_162 = arith.constant dense<0.000000e+00> : vector<8x16xf32>
    %500 = tpu.matmul %498, %499, %cst_162 {dimension_numbers = #tpu.dot_dimension_numbers<[1], [0], [0], [1], [0, 0, 1, 1], [], []>} : vector<8x4xf32>, vector<4x16xf32>, vector<8x16xf32> -> vector<8x16xf32>
    %501 = arith.addf %433, %500 : vector<8x16xf32>
    %502 = arith.addf %450, %467 : vector<8x16xf32>
    %503 = arith.addf %484, %501 : vector<8x16xf32>
    %504 = arith.addf %502, %503 : vector<8x16xf32>
    %c0_163 = arith.constant 0 : index
    %c0_164 = arith.constant 0 : index
    %505 = vector.load %arg13[%c0_163, %c0_164] : memref<1x16xf32, #tpu.memory_space<vmem>>, vector<1x16xf32>
    %506 = vector.broadcast %505 : vector<1x16xf32> to vector<8x16xf32>
    %507 = arith.addf %504, %506 : vector<8x16xf32>
    %c0_165 = arith.constant 0 : index
    %c0_166 = arith.constant 0 : index
    %c0_167 = arith.constant 0 : index
    %508 = vector.load %arg14[%c0_165, %c0_166, %c0_167] : memref<1x8x16xf32, #tpu.memory_space<vmem>>, vector<1x8x16xf32>
    %509 = vector.shape_cast %508 : vector<1x8x16xf32> to vector<8x16xf32>
    %510 = vector.shape_cast %507 : vector<8x16xf32> to vector<1x8x16xf32>
    tpu.vector_store %arg14[%c0_165, %c0_166, %c0_167], %510 {strides = array<i32>} : memref<1x8x16xf32, #tpu.memory_space<vmem>>, vector<1x8x16xf32>,
    return
  }
  func.func @transform_0(%arg0: i32) -> (i32, i32, i32) {
    %c0_i32 = arith.constant 0 : i32
    %c0_i32_0 = arith.constant 0 : i32
    %c0_i32_1 = arith.constant 0 : i32
    return %arg0, %c0_i32, %c0_i32_0 : i32, i32, i32
  }
  func.func @transform_1(%arg0: i32) -> (i32, i32) {
    %c0_i32 = arith.constant 0 : i32
    %c0_i32_0 = arith.constant 0 : i32
    %c0_i32_1 = arith.constant 0 : i32
    return %c0_i32, %c0_i32_0 : i32, i32
  }
  func.func @transform_2(%arg0: i32) -> (i32, i32) {
    %c0_i32 = arith.constant 0 : i32
    %c0_i32_0 = arith.constant 0 : i32
    %c0_i32_1 = arith.constant 0 : i32
    return %c0_i32, %c0_i32_0 : i32, i32
  }
  func.func @transform_3(%arg0: i32) -> (i32, i32) {
    %c0_i32 = arith.constant 0 : i32
    %c0_i32_0 = arith.constant 0 : i32
    %c0_i32_1 = arith.constant 0 : i32
    return %c0_i32, %c0_i32_0 : i32, i32
  }
  func.func @transform_4(%arg0: i32) -> (i32, i32) {
    %c0_i32 = arith.constant 0 : i32
    %c0_i32_0 = arith.constant 0 : i32
    %c0_i32_1 = arith.constant 0 : i32
    return %c0_i32, %c0_i32_0 : i32, i32
  }
  func.func @transform_5(%arg0: i32) -> (i32, i32) {
    %c0_i32 = arith.constant 0 : i32
    %c0_i32_0 = arith.constant 0 : i32
    %c0_i32_1 = arith.constant 0 : i32
    return %c0_i32, %c0_i32_0 : i32, i32
  }
  func.func @transform_6(%arg0: i32) -> (i32, i32) {
    %c0_i32 = arith.constant 0 : i32
    %c0_i32_0 = arith.constant 0 : i32
    %c0_i32_1 = arith.constant 0 : i32
    return %c0_i32, %c0_i32_0 : i32, i32
  }
  func.func @transform_7(%arg0: i32) -> (i32, i32) {
    %c0_i32 = arith.constant 0 : i32
    %c0_i32_0 = arith.constant 0 : i32
    %c0_i32_1 = arith.constant 0 : i32
    return %c0_i32, %c0_i32_0 : i32, i32
  }
  func.func @transform_8(%arg0: i32) -> (i32, i32) {
    %c0_i32 = arith.constant 0 : i32
    %c0_i32_0 = arith.constant 0 : i32
    %c0_i32_1 = arith.constant 0 : i32
    return %c0_i32, %c0_i32_0 : i32, i32
  }
  func.func @transform_9(%arg0: i32) -> (i32, i32) {
    %c0_i32 = arith.constant 0 : i32
    %c0_i32_0 = arith.constant 0 : i32
    %c0_i32_1 = arith.constant 0 : i32
    return %c0_i32, %c0_i32_0 : i32, i32
  }
  func.func @transform_10(%arg0: i32) -> (i32, i32) {
    %c0_i32 = arith.constant 0 : i32
    %c0_i32_0 = arith.constant 0 : i32
    %c0_i32_1 = arith.constant 0 : i32
    return %c0_i32, %c0_i32_0 : i32, i32
  }
  func.func @transform_11(%arg0: i32) -> (i32, i32) {
    %c0_i32 = arith.constant 0 : i32
    %c0_i32_0 = arith.constant 0 : i32
    %c0_i32_1 = arith.constant 0 : i32
    return %c0_i32, %c0_i32_0 : i32, i32
  }
  func.func @transform_12(%arg0: i32) -> (i32, i32) {
    %c0_i32 = arith.constant 0 : i32
    %c0_i32_0 = arith.constant 0 : i32
    %c0_i32_1 = arith.constant 0 : i32
    return %c0_i32, %c0_i32_0 : i32, i32
  }
  func.func @transform_13(%arg0: i32) -> (i32, i32, i32) {
    %c0_i32 = arith.constant 0 : i32
    %c0_i32_0 = arith.constant 0 : i32
    %c0_i32_1 = arith.constant 0 : i32
    return %arg0, %c0_i32, %c0_i32_0 : i32, i32, i32
  }
}

</mosaic_0001>

<llo_original>
// kernel: tpu_custom_call.1
$region0: #{tpu_custom_call.1}
  #allocation0 [shape = 'u32[]', space=smem, size = 0x4, offset = 0x4, fixed_abs, tag = 'smem constant byte address 0x4 - core index']
  #allocation1 [shape = 'u32[144,128]{1,0:T(1,128)}', space=vmem, size = 0x12000, scoped, tag = 'internal scratch']
  #allocation2 [shape = 'f32[32,48]{1,0:T(8,128)}', space=vmem, size = 0x4000, scoped, tag = 'scratch operand']
  #allocation3 [shape = 'f32[56,48]{1,0:T(8,128)}', space=vmem, size = 0x7000, scoped, tag = 'scratch operand']
  %s0 = inlined_call_operand.vmem [shape: f32[2,8,16], index: 0, kind: input, shape index: {}]
  %s1 = inlined_call_operand.hbm [shape: f32[16,48], index: 1, kind: input, shape index: {}]
  %s2 = inlined_call_operand.vmem [shape: f32[1,48], index: 2, kind: input, shape index: {}]
  %s3 = inlined_call_operand.hbm [shape: f32[25,48], index: 3, kind: input, shape index: {}]
  %s4 = inlined_call_operand.vmem [shape: f32[1,48], index: 4, kind: input, shape index: {}]
  %s5 = inlined_call_operand.vmem [shape: f32[48,192], index: 5, kind: input, shape index: {}]
  %s6 = inlined_call_operand.vmem [shape: f32[1,192], index: 6, kind: input, shape index: {}]
  %s7 = inlined_call_operand.vmem [shape: f32[75,48], index: 7, kind: input, shape index: {}]
  %s8 = inlined_call_operand.vmem [shape: f32[1,48], index: 8, kind: input, shape index: {}]
  %s9 = inlined_call_operand.vmem [shape: f32[48,192], index: 9, kind: input, shape index: {}]
  %s10 = inlined_call_operand.vmem [shape: f32[1,192], index: 10, kind: input, shape index: {}]
  %s11 = inlined_call_operand.vmem [shape: f32[64,16], index: 11, kind: input, shape index: {}]
  %s12 = inlined_call_operand.vmem [shape: f32[1,16], index: 12, kind: input, shape index: {}]
  %s13 = inlined_call_operand.hbm [shape: f32[2,8,16], index: 13, kind: output, shape index: {}]
  %s14 = sld [smem:[#allocation0]]
  $region93: #{tpu_custom_call.1} parent=0
    _
  %s16 = ssub.s32 1, %s14
  %s17 = scalar_select 0, %s16, %s14
  $region1: #{tpu_custom_call.1} parent=0
    #allocation4 [shape = 'u8[8192]{0}', space=vmem, size = 0x2000, scoped, tag = 'input window, operand 1, single buffered']
    #allocation5 [shape = 's32[2]{0}', space=sflag, size = 0x8, scoped, tag = 'scoped memory for tpu_custom_call.1']
    #allocation6 [shape = 's32[2]{0}', space=sflag, size = 0x8, scoped, tag = 'scoped memory for tpu_custom_call.1']
    #allocation7 [shape = 'u8[16384]{0}', space=vmem, size = 0x4000, scoped, tag = 'input window, operand 3, single buffered']
    #allocation8 [shape = 's32[1]{0}', space=sflag, size = 0x4, scoped, tag = 'scoped memory for tpu_custom_call.1']
    #allocation9 [shape = 'u8[8192]{0}', space=vmem, size = 0x2000, scoped, tag = 'output window, operand 0']
    %18 = vsyncpa [#allocation5], 0
    %19 = vsyncpa [#allocation8], 0
    %20 = vsyncpa [#allocation6], 0
    %s21 = scalar_lea.sflag [#allocation6], 1
    %22 = vsyncpa %s21, 0
    loop: start=0, step=1, limit=4
    $region2: #{tpu_custom_call.1} parent=1 // loop_pre_header
      _
    $region3: #{tpu_custom_call.1} parent=1 // loop_header
      %s24 = sphi 0, %s28
      %p25 = scmp.ge.s32.totalorder %s24, 4
      %s34 = sphi 0, %s36
      %s37 = sphi 0, %s34
      %s38 = sphi 0, %s37
      %s54 = sphi 0, %s38
      %s58 = sphi 0, %s58
      %s60 = sphi 0, %s58
      %s61 = sphi 0, %s60
      %s75 = sphi 0, %s61
      %s79 = sphi 0, %s79
      %s81 = sphi 0, %s79
      %s82 = sphi 0, %s81
      %s96 = sphi 0, %s82
      %s100 = sphi 0, %s100
      %s102 = sphi 0, %s100
      %s103 = sphi 0, %s102
      %s117 = sphi 0, %s103
      %s121 = sphi 0, %s121
      %s123 = sphi 0, %s121
      %s124 = sphi 0, %s123
      %s138 = sphi 0, %s124
      %s142 = sphi 0, %s142
      %s144 = sphi 0, %s142
      %s145 = sphi 0, %s144
      %s159 = sphi 0, %s145
      %s163 = sphi 0, %s163
      %s165 = sphi 0, %s163
      %s166 = sphi 0, %s165
      %s180 = sphi 0, %s166
      %s184 = sphi 0, %s184
      %s186 = sphi 0, %s184
      %s187 = sphi 0, %s186
      %s201 = sphi 0, %s187
      %s205 = sphi 0, %s205
      %s207 = sphi 0, %s205
      %s208 = sphi 0, %s207
      %s222 = sphi 0, %s208
      %s226 = sphi 0, %s226
      %s228 = sphi 0, %s226
      %s229 = sphi 0, %s228
      %s243 = sphi 0, %s229
      %s247 = sphi 0, %s247
      %s249 = sphi 0, %s247
      %s250 = sphi 0, %s249
      %s264 = sphi 0, %s250
      %s268 = sphi 0, %s268
      %s270 = sphi 0, %s268
      %s271 = sphi 0, %s270
      %s285 = sphi 0, %s271
      %s289 = sphi 0, %s289
      %s291 = sphi 0, %s289
      %s292 = sphi 0, %s291
      %s306 = sphi 0, %s292
      %s312 = sphi 0, %s314
      %s315 = sphi 0, %s312
      %s316 = sphi 0, %s315
      %s332 = sphi 0, %s316
    $region4: #{tpu_custom_call.1} parent=1 // loop_header_branch
      %27 = sbr.rel (%p25) target = $region8
    $region5: #{tpu_custom_call.1} parent=1 // loop_body
      %s29 = ssub.s32 %s24, 1
      %s30 = ssub.s32 %s24, 2
      %s31 = sadd.s32 %s24, 1
      %s32 = ssub.s32 %s24, %s31
      %p33 = scmp.eq.s32.totalorder %s32, 0
      %s35 = sadd.s32 %s34, 1
      %s36 = scalar_select %p33, %s34, %s35
      %p39 = pneg %p33
      %p40 = scmp.eq.s32.totalorder %s24, 1
      %p41 = por %p39, %p40
      %p42 = scmp.ne.s32.totalorder %s34, %s37
      %p43 = scmp.eq.s32.totalorder %s24, 0
      %p44 = por %p42, %p43
      %p45 = scmp.ne.s32.totalorder %s34, %s37
      %p46 = scmp.eq.s32.totalorder %s29, 1
      %p47 = por %p45, %p46
      %p48 = scmp.ne.s32.totalorder %s37, %s38
      %p49 = scmp.eq.s32.totalorder %s29, 0
      %p50 = por %p48, %p49
      %p51 = scmp.ne.s32.totalorder %s37, %s38
      %p52 = scmp.eq.s32.totalorder %s30, 1
      %p53 = por %p51, %p52
      %p55 = scmp.ne.s32.totalorder %s38, %s54
      %p56 = scmp.eq.s32.totalorder %s30, 0
      %p57 = por %p55, %p56
      %s59 = sadd.s32 %s58, 1
      %p62 = scmp.eq.s32.totalorder %s24, 1
      %p63 = scmp.ne.s32.totalorder %s58, %s60
      %p64 = scmp.eq.s32.totalorder %s24, 0
      %p65 = por %p63, %p64
      %p66 = scmp.ne.s32.totalorder %s58, %s60
      %p67 = scmp.eq.s32.totalorder %s29, 1
      %p68 = por %p66, %p67
      %p69 = scmp.ne.s32.totalorder %s60, %s61
      %p70 = scmp.eq.s32.totalorder %s29, 0
      %p71 = por %p69, %p70
      %p72 = scmp.ne.s32.totalorder %s60, %s61
      %p73 = scmp.eq.s32.totalorder %s30, 1
      %p74 = por %p72, %p73
      %p76 = scmp.ne.s32.totalorder %s61, %s75
      %p77 = scmp.eq.s32.totalorder %s30, 0
      %p78 = por %p76, %p77
      %s80 = sadd.s32 %s79, 1
      %p83 = scmp.eq.s32.totalorder %s24, 1
      %p84 = scmp.ne.s32.totalorder %s79, %s81
      %p85 = scmp.eq.s32.totalorder %s24, 0
      %p86 = por %p84, %p85
      %p87 = scmp.ne.s32.totalorder %s79, %s81
      %p88 = scmp.eq.s32.totalorder %s29, 1
      %p89 = por %p87, %p88
      %p90 = scmp.ne.s32.totalorder %s81, %s82
      %p91 = scmp.eq.s32.totalorder %s29, 0
      %p92 = por %p90, %p91
      %p93 = scmp.ne.s32.totalorder %s81, %s82
      %p94 = scmp.eq.s32.totalorder %s30, 1
      %p95 = por %p93, %p94
      %p97 = scmp.ne.s32.totalorder %s82, %s96
      %p98 = scmp.eq.s32.totalorder %s30, 0
      %p99 = por %p97, %p98
      %s101 = sadd.s32 %s100, 1
      %p104 = scmp.eq.s32.totalorder %s24, 1
      %p105 = scmp.ne.s32.totalorder %s100, %s102
      %p106 = scmp.eq.s32.totalorder %s24, 0
      %p107 = por %p105, %p106
      %p108 = scmp.ne.s32.totalorder %s100, %s102
      %p109 = scmp.eq.s32.totalorder %s29, 1
      %p110 = por %p108, %p109
      %p111 = scmp.ne.s32.totalorder %s102, %s103
      %p112 = scmp.eq.s32.totalorder %s29, 0
      %p113 = por %p111, %p112
      %p114 = scmp.ne.s32.totalorder %s102, %s103
      %p115 = scmp.eq.s32.totalorder %s30, 1
      %p116 = por %p114, %p115
      %p118 = scmp.ne.s32.totalorder %s103, %s117
      %p119 = scmp.eq.s32.totalorder %s30, 0
      %p120 = por %p118, %p119
      %s122 = sadd.s32 %s121, 1
      %p125 = scmp.eq.s32.totalorder %s24, 1
      %p126 = scmp.ne.s32.totalorder %s121, %s123
      %p127 = scmp.eq.s32.totalorder %s24, 0
      %p128 = por %p126, %p127
      %p129 = scmp.ne.s32.totalorder %s121, %s123
      %p130 = scmp.eq.s32.totalorder %s29, 1
      %p131 = por %p129, %p130
      %p132 = scmp.ne.s32.totalorder %s123, %s124
      %p133 = scmp.eq.s32.totalorder %s29, 0
      %p134 = por %p132, %p133
      %p135 = scmp.ne.s32.totalorder %s123, %s124
      %p136 = scmp.eq.s32.totalorder %s30, 1
      %p137 = por %p135, %p136
      %p139 = scmp.ne.s32.totalorder %s124, %s138
      %p140 = scmp.eq.s32.totalorder %s30, 0
      %p141 = por %p139, %p140
      %s143 = sadd.s32 %s142, 1
      %p146 = scmp.eq.s32.totalorder %s24, 1
      %p147 = scmp.ne.s32.totalorder %s142, %s144
      %p148 = scmp.eq.s32.totalorder %s24, 0
      %p149 = por %p147, %p148
      %p150 = scmp.ne.s32.totalorder %s142, %s144
      %p151 = scmp.eq.s32.totalorder %s29, 1
      %p152 = por %p150, %p151
      %p153 = scmp.ne.s32.totalorder %s144, %s145
      %p154 = scmp.eq.s32.totalorder %s29, 0
      %p155 = por %p153, %p154
      %p156 = scmp.ne.s32.totalorder %s144, %s145
      %p157 = scmp.eq.s32.totalorder %s30, 1
      %p158 = por %p156, %p157
      %p160 = scmp.ne.s32.totalorder %s145, %s159
      %p161 = scmp.eq.s32.totalorder %s30, 0
      %p162 = por %p160, %p161
      %s164 = sadd.s32 %s163, 1
      %p167 = scmp.eq.s32.totalorder %s24, 1
      %p168 = scmp.ne.s32.totalorder %s163, %s165
      %p169 = scmp.eq.s32.totalorder %s24, 0
      %p170 = por %p168, %p169
      %p171 = scmp.ne.s32.totalorder %s163, %s165
      %p172 = scmp.eq.s32.totalorder %s29, 1
      %p173 = por %p171, %p172
      %p174 = scmp.ne.s32.totalorder %s165, %s166
      %p175 = scmp.eq.s32.totalorder %s29, 0
      %p176 = por %p174, %p175
      %p177 = scmp.ne.s32.totalorder %s165, %s166
      %p178 = scmp.eq.s32.totalorder %s30, 1
      %p179 = por %p177, %p178
      %p181 = scmp.ne.s32.totalorder %s166, %s180
      %p182 = scmp.eq.s32.totalorder %s30, 0
      %p183 = por %p181, %p182
      %s185 = sadd.s32 %s184, 1
      %p188 = scmp.eq.s32.totalorder %s24, 1
      %p189 = scmp.ne.s32.totalorder %s184, %s186
      %p190 = scmp.eq.s32.totalorder %s24, 0
      %p191 = por %p189, %p190
      %p192 = scmp.ne.s32.totalorder %s184, %s186
      %p193 = scmp.eq.s32.totalorder %s29, 1
      %p194 = por %p192, %p193
      %p195 = scmp.ne.s32.totalorder %s186, %s187
      %p196 = scmp.eq.s32.totalorder %s29, 0
      %p197 = por %p195, %p196
      %p198 = scmp.ne.s32.totalorder %s186, %s187
      %p199 = scmp.eq.s32.totalorder %s30, 1
      %p200 = por %p198, %p199
      %p202 = scmp.ne.s32.totalorder %s187, %s201
      %p203 = scmp.eq.s32.totalorder %s30, 0
      %p204 = por %p202, %p203
      %s206 = sadd.s32 %s205, 1
      %p209 = scmp.eq.s32.totalorder %s24, 1
      %p210 = scmp.ne.s32.totalorder %s205, %s207
      %p211 = scmp.eq.s32.totalorder %s24, 0
      %p212 = por %p210, %p211
      %p213 = scmp.ne.s32.totalorder %s205, %s207
      %p214 = scmp.eq.s32.totalorder %s29, 1
      %p215 = por %p213, %p214
      %p216 = scmp.ne.s32.totalorder %s207, %s208
      %p217 = scmp.eq.s32.totalorder %s29, 0
      %p218 = por %p216, %p217
      %p219 = scmp.ne.s32.totalorder %s207, %s208
      %p220 = scmp.eq.s32.totalorder %s30, 1
      %p221 = por %p219, %p220
      %p223 = scmp.ne.s32.totalorder %s208, %s222
      %p224 = scmp.eq.s32.totalorder %s30, 0
      %p225 = por %p223, %p224
      %s227 = sadd.s32 %s226, 1
      %p230 = scmp.eq.s32.totalorder %s24, 1
      %p231 = scmp.ne.s32.totalorder %s226, %s228
      %p232 = scmp.eq.s32.totalorder %s24, 0
      %p233 = por %p231, %p232
      %p234 = scmp.ne.s32.totalorder %s226, %s228
      %p235 = scmp.eq.s32.totalorder %s29, 1
      %p236 = por %p234, %p235
      %p237 = scmp.ne.s32.totalorder %s228, %s229
      %p238 = scmp.eq.s32.totalorder %s29, 0
      %p239 = por %p237, %p238
      %p240 = scmp.ne.s32.totalorder %s228, %s229
      %p241 = scmp.eq.s32.totalorder %s30, 1
      %p242 = por %p240, %p241
      %p244 = scmp.ne.s32.totalorder %s229, %s243
      %p245 = scmp.eq.s32.totalorder %s30, 0
      %p246 = por %p244, %p245
      %s248 = sadd.s32 %s247, 1
      %p251 = scmp.eq.s32.totalorder %s24, 1
      %p252 = scmp.ne.s32.totalorder %s247, %s249
      %p253 = scmp.eq.s32.totalorder %s24, 0
      %p254 = por %p252, %p253
      %p255 = scmp.ne.s32.totalorder %s247, %s249
      %p256 = scmp.eq.s32.totalorder %s29, 1
      %p257 = por %p255, %p256
      %p258 = scmp.ne.s32.totalorder %s249, %s250
      %p259 = scmp.eq.s32.totalorder %s29, 0
      %p260 = por %p258, %p259
      %p261 = scmp.ne.s32.totalorder %s249, %s250
      %p262 = scmp.eq.s32.totalorder %s30, 1
      %p263 = por %p261, %p262
      %p265 = scmp.ne.s32.totalorder %s250, %s264
      %p266 = scmp.eq.s32.totalorder %s30, 0
      %p267 = por %p265, %p266
      %s269 = sadd.s32 %s268, 1
      %p272 = scmp.eq.s32.totalorder %s24, 1
      %p273 = scmp.ne.s32.totalorder %s268, %s270
      %p274 = scmp.eq.s32.totalorder %s24, 0
      %p275 = por %p273, %p274
      %p276 = scmp.ne.s32.totalorder %s268, %s270
      %p277 = scmp.eq.s32.totalorder %s29, 1
      %p278 = por %p276, %p277
      %p279 = scmp.ne.s32.totalorder %s270, %s271
      %p280 = scmp.eq.s32.totalorder %s29, 0
      %p281 = por %p279, %p280
      %p282 = scmp.ne.s32.totalorder %s270, %s271
      %p283 = scmp.eq.s32.totalorder %s30, 1
      %p284 = por %p282, %p283
      %p286 = scmp.ne.s32.totalorder %s271, %s285
      %p287 = scmp.eq.s32.totalorder %s30, 0
      %p288 = por %p286, %p287
      %s290 = sadd.s32 %s289, 1
      %p293 = scmp.eq.s32.totalorder %s24, 1
      %p294 = scmp.ne.s32.totalorder %s289, %s291
      %p295 = scmp.eq.s32.totalorder %s24, 0
      %p296 = por %p294, %p295
      %p297 = scmp.ne.s32.totalorder %s289, %s291
      %p298 = scmp.eq.s32.totalorder %s29, 1
      %p299 = por %p297, %p298
      %p300 = scmp.ne.s32.totalorder %s291, %s292
      %p301 = scmp.eq.s32.totalorder %s29, 0
      %p302 = por %p300, %p301
      %p303 = scmp.ne.s32.totalorder %s291, %s292
      %p304 = scmp.eq.s32.totalorder %s30, 1
      %p305 = por %p303, %p304
      %p307 = scmp.ne.s32.totalorder %s292, %s306
      %p308 = scmp.eq.s32.totalorder %s30, 0
      %p309 = por %p307, %p308
      %s310 = ssub.s32 %s24, %s31
      %p311 = scmp.eq.s32.totalorder %s310, 0
      %s313 = sadd.s32 %s312, 1
      %s314 = scalar_select %p311, %s312, %s313
      %p317 = pneg %p311
      %p318 = scmp.eq.s32.totalorder %s24, 1
      %p319 = por %p317, %p318
      %p320 = scmp.ne.s32.totalorder %s312, %s315
      %p321 = scmp.eq.s32.totalorder %s24, 0
      %p322 = por %p320, %p321
      %p323 = scmp.ne.s32.totalorder %s312, %s315
      %p324 = scmp.eq.s32.totalorder %s29, 1
      %p325 = por %p323, %p324
      %p326 = scmp.ne.s32.totalorder %s315, %s316
      %p327 = scmp.eq.s32.totalorder %s29, 0
      %p328 = por %p326, %p327
      %p329 = scmp.ne.s32.totalorder %s315, %s316
      %p330 = scmp.eq.s32.totalorder %s30, 1
      %p331 = por %p329, %p330
      %p333 = scmp.ne.s32.totalorder %s316, %s332
      %p334 = scmp.eq.s32.totalorder %s30, 0
      %p335 = por %p333, %p334
      %p336 = scmp.le.s32.totalorder 1, %s24
      %p337 = scmp.lt.s32.totalorder %s24, 3
      %p338 = pnand %p336, %p337
      %p339 = pneg %p338
      // Predicated region
      $region9: #{tpu_custom_call.1} parent=5 // pred_check
        _
      $region10: #{tpu_custom_call.1} parent=5 // pred_check_branch
        %341 = sbr.rel (%p338) target = $region12
      $region11: #{tpu_custom_call.1} parent=5 // pred_region
        %s342 = ssub.s32 %s24, 1
        // Predicated region
        $region13: #{tpu_custom_call.1} parent=11 // pred_check
          %p343 = pneg %p71
        $region14: #{tpu_custom_call.1} parent=11 // pred_check_branch
          %345 = sbr.rel (%p343) target = $region16
        $region15: #{tpu_custom_call.1} parent=11 // pred_region
          %s347 = ssub.s32 256, 256
          %348 = vsyncadd [#allocation5], %s347
          %s349 = sshll.u32 [#allocation4], 4
          %s350 = int_to_ptr.vmem [resolvable:$true] %s349
          %355 = dma.hbm_to_vmem [thread:$0]  %s1, 256, %s350, [#allocation5], 128, 128, 8
        $region16: #{tpu_custom_call.1} parent=11 // pred_fallthru
          _
        // Predicated region
        $region17: #{tpu_custom_call.1} parent=11 // pred_check
          %p356 = pneg %p92
        $region18: #{tpu_custom_call.1} parent=11 // pred_check_branch
          %358 = sbr.rel (%p356) target = $region20
        $region19: #{tpu_custom_call.1} parent=11 // pred_region
          _
        $region20: #{tpu_custom_call.1} parent=11 // pred_fallthru
          _
        // Predicated region
        $region21: #{tpu_custom_call.1} parent=11 // pred_check
          %p359 = pneg %p113
        $region22: #{tpu_custom_call.1} parent=11 // pred_check_branch
          %361 = sbr.rel (%p359) target = $region24
        $region23: #{tpu_custom_call.1} parent=11 // pred_region
          %s363 = ssub.s32 512, 512
          %364 = vsyncadd [#allocation8], %s363
          %s365 = sshll.u32 [#allocation7], 4
          %s366 = int_to_ptr.vmem [resolvable:$true] %s365
          %371 = dma.hbm_to_vmem [thread:$0]  %s3, 512, %s366, [#allocation8], 128, 128, 8
        $region24: #{tpu_custom_call.1} parent=11 // pred_fallthru
          _
        // Predicated region
        $region25: #{tpu_custom_call.1} parent=11 // pred_check
          %p372 = pneg %p134
        $region26: #{tpu_custom_call.1} parent=11 // pred_check_branch
          %374 = sbr.rel (%p372) target = $region28
        $region27: #{tpu_custom_call.1} parent=11 // pred_region
          _
        $region28: #{tpu_custom_call.1} parent=11 // pred_fallthru
          _
        // Predicated region
        $region29: #{tpu_custom_call.1} parent=11 // pred_check
          %p375 = pneg %p155
        $region30: #{tpu_custom_call.1} parent=11 // pred_check_branch
          %377 = sbr.rel (%p375) target = $region32
        $region31: #{tpu_custom_call.1} parent=11 // pred_region
          _
        $region32: #{tpu_custom_call.1} parent=11 // pred_fallthru
          _
        // Predicated region
        $region33: #{tpu_custom_call.1} parent=11 // pred_check
          %p378 = pneg %p176
        $region34: #{tpu_custom_call.1} parent=11 // pred_check_branch
          %380 = sbr.rel (%p378) target = $region36
        $region35: #{tpu_custom_call.1} parent=11 // pred_region
          _
        $region36: #{tpu_custom_call.1} parent=11 // pred_fallthru
          _
        // Predicated region
        $region37: #{tpu_custom_call.1} parent=11 // pred_check
          %p381 = pneg %p197
        $region38: #{tpu_custom_call.1} parent=11 // pred_check_branch
          %383 = sbr.rel (%p381) target = $region40
        $region39: #{tpu_custom_call.1} parent=11 // pred_region
          _
        $region40: #{tpu_custom_call.1} parent=11 // pred_fallthru
          _
        // Predicated region
        $region41: #{tpu_custom_call.1} parent=11 // pred_check
          %p384 = pneg %p218
        $region42: #{tpu_custom_call.1} parent=11 // pred_check_branch
          %386 = sbr.rel (%p384) target = $region44
        $region43: #{tpu_custom_call.1} parent=11 // pred_region
          _
        $region44: #{tpu_custom_call.1} parent=11 // pred_fallthru
          _
        // Predicated region
        $region45: #{tpu_custom_call.1} parent=11 // pred_check
          %p387 = pneg %p239
        $region46: #{tpu_custom_call.1} parent=11 // pred_check_branch
          %389 = sbr.rel (%p387) target = $region48
        $region47: #{tpu_custom_call.1} parent=11 // pred_region
          _
        $region48: #{tpu_custom_call.1} parent=11 // pred_fallthru
          _
        // Predicated region
        $region49: #{tpu_custom_call.1} parent=11 // pred_check
          %p390 = pneg %p260
        $region50: #{tpu_custom_call.1} parent=11 // pred_check_branch
          %392 = sbr.rel (%p390) target = $region52
        $region51: #{tpu_custom_call.1} parent=11 // pred_region
          _
        $region52: #{tpu_custom_call.1} parent=11 // pred_fallthru
          _
        // Predicated region
        $region53: #{tpu_custom_call.1} parent=11 // pred_check
          %p393 = pneg %p281
        $region54: #{tpu_custom_call.1} parent=11 // pred_check_branch
          %395 = sbr.rel (%p393) target = $region56
        $region55: #{tpu_custom_call.1} parent=11 // pred_region
          _
        $region56: #{tpu_custom_call.1} parent=11 // pred_fallthru
          _
        // Predicated region
        $region57: #{tpu_custom_call.1} parent=11 // pred_check
          %p396 = pneg %p302
        $region58: #{tpu_custom_call.1} parent=11 // pred_check_branch
          %398 = sbr.rel (%p396) target = $region60
        $region59: #{tpu_custom_call.1} parent=11 // pred_region
          _
        $region60: #{tpu_custom_call.1} parent=11 // pred_fallthru
          _
      $region12: #{tpu_custom_call.1} parent=5 // pred_fallthru
        _
      %p399 = scmp.lt.s32.totalorder %s24, 2
      // Predicated region
      $region61: #{tpu_custom_call.1} parent=5 // pred_check
        %p400 = pneg %p399
      $region62: #{tpu_custom_call.1} parent=5 // pred_check_branch
        %402 = sbr.rel (%p400) target = $region64
      $region63: #{tpu_custom_call.1} parent=5 // pred_region
        // Predicated region
        $region65: #{tpu_custom_call.1} parent=63 // pred_check
          %p403 = pneg %p44
        $region66: #{tpu_custom_call.1} parent=63 // pred_check_branch
          %405 = sbr.rel (%p403) target = $region68
        $region67: #{tpu_custom_call.1} parent=63 // pred_region
          %p406 = scmp.lt.s32.totalorder %s24, 1
          %s407 = scalar_select %p406, %s24, 1
          %s408 = smul.addr %s407, 8
          %s409 = scalar_lea.vmem %s0, %s408
        $region68: #{tpu_custom_call.1} parent=63 // pred_fallthru
          _
      $region64: #{tpu_custom_call.1} parent=5 // pred_fallthru
        _
      %p410 = scmp.le.s32.totalorder 1, %s24
      %p411 = scmp.lt.s32.totalorder %s24, 3
      %p412 = pnand %p410, %p411
      %p413 = pneg %p412
      // Predicated region
      $region69: #{tpu_custom_call.1} parent=5 // pred_check
        _
      $region70: #{tpu_custom_call.1} parent=5 // pred_check_branch
        %415 = sbr.rel (%p412) target = $region72
      $region71: #{tpu_custom_call.1} parent=5 // pred_region
        %s416 = ssub.s32 %s24, 1
        // Predicated region
        $region73: #{tpu_custom_call.1} parent=71 // pred_check
          %p417 = pneg %p71
        $region74: #{tpu_custom_call.1} parent=71 // pred_check_branch
          %419 = sbr.rel (%p417) target = $region76
        $region75: #{tpu_custom_call.1} parent=71 // pred_region
          %420 = dma.done [#allocation5], 256
        $region76: #{tpu_custom_call.1} parent=71 // pred_fallthru
          _
        // Predicated region
        $region77: #{tpu_custom_call.1} parent=71 // pred_check
          %p421 = pneg %p113
        $region78: #{tpu_custom_call.1} parent=71 // pred_check_branch
          %423 = sbr.rel (%p421) target = $region80
        $region79: #{tpu_custom_call.1} parent=71 // pred_region
          %424 = dma.done [#allocation8], 512
        $region80: #{tpu_custom_call.1} parent=71 // pred_fallthru
          _
        %p425 = scmp.lt.s32.totalorder %s29, 1
        %s426 = scalar_select %p425, %s29, 1
        %s427 = smul.addr %s426, 8
        %s428 = scalar_lea.vmem %s0, %s427
        %p429 = pneg %p50
        %p430 = pneg %p47
        %p431 = pneg %p71
        %p432 = pneg %p68
        %p433 = pneg %p92
        %p434 = pneg %p89
        %p435 = pneg %p113
        %p436 = pneg %p110
        %p437 = pneg %p134
        %p438 = pneg %p131
        %p439 = pneg %p155
        %p440 = pneg %p152
        %p441 = pneg %p176
        %p442 = pneg %p173
        %p443 = pneg %p197
        %p444 = pneg %p194
        %p445 = pneg %p218
        %p446 = pneg %p215
        %p447 = pneg %p239
        %p448 = pneg %p236
        %p449 = pneg %p260
        %p450 = pneg %p257
        %p451 = pneg %p281
        %p452 = pneg %p278
        %p453 = pneg %p302
        %p454 = pneg %p299
        %p455 = pneg %p328
        %p456 = pneg %p325
        %s457 = sand.u32 %s315, 1
        %s458 = scalar_lea.sflag [#allocation6], %s457
        %s459 = sand.u32 %s315, 1
        %s460 = smul.addr %s459, 8
        %s461 = scalar_lea.vmem [#allocation9], %s460
        %p462 = scmp.lt.s32.totalorder %s29, 1
        %s463 = scalar_select %p462, %s29, 1
        %s464 = smul.addr %s463, 8
        %s465 = scalar_lea.vmem %s0, %s464
        %v466 = vld [vmem:[%s465] sm:$0xff]
        %v467 = vld [vmem:[#allocation4] sm:$0xff]
        %v468 = vld [vmem:[#allocation4 + $0x8] sm:$0xff]
        %v469 = vld [vmem:[%s2] sm:$0x1]
        %v471 = vlaneseq
        %v472 = vshrl.u32 %v471, 7
        %v473 = vsub.s32 0, %v472
        %v474 = vrot.slane %v469, %v473
        %vm476 = vcmask 130048
        %v478 = vsel %vm476, %v466, 0
        %480 = vmatprep.subr.mxu0 0.0
        %481 = vmatpush1.msra.mxu0 %v467
        %482 = vmatprep.subr.mxu0 0.0
        %483 = vmatpush1.msra.mxu0 %v468
        %484 = vmatprep.subr.mxu0 0.0
        %485 = vmatpush1.msra.mxu0 0.0
        %486 = vmatprep.subr.mxu0 0.0
        %487 = vmatpush1.msra.mxu0 0.0
        %488 = vmatprep.subr.mxu0 0.0
        %489 = vmatpush1.msra.mxu0 0.0
        %490 = vmatprep.subr.mxu0 0.0
        %491 = vmatpush1.msra.mxu0 0.0
        %492 = vmatprep.subr.mxu0 0.0
        %493 = vmatpush1.msra.mxu0 0.0
        %494 = vmatprep.subr.mxu0 0.0
        %495 = vmatpush1.msra.mxu0 0.0
        %496 = vmatprep.subr.mxu0 0.0
        %497 = vmatpush1.msra.mxu0 0.0
        %498 = vmatprep.subr.mxu0 0.0
        %499 = vmatpush1.msra.mxu0 0.0
        %500 = vmatprep.subr.mxu0 0.0
        %501 = vmatpush1.msra.mxu0 0.0
        %502 = vmatprep.subr.mxu0 0.0
        %503 = vmatpush1.msra.mxu0 0.0
        %504 = vmatprep.subr.mxu0 0.0
        %505 = vmatpush1.msra.mxu0 0.0
        %506 = vmatprep.subr.mxu0 0.0
        %507 = vmatpush1.msra.mxu0 0.0
        %508 = vmatprep.subr.mxu0 0.0
        %509 = vmatpush1.msra.mxu0 0.0
        %510 = vmatprep.subr.mxu0 0.0
        %511 = vmatpush1.msra.mxu0 0.0
        %512 = vmatprep.subr.mxu0 0.0
        %513 = vmatpush1.msra.mxu0 0.0
        %514 = vmatprep.subr.mxu0 0.0
        %515 = vmatpush1.msra.mxu0 0.0
        %516 = vmatprep.subr.mxu0 0.0
        %517 = vmatpush1.msra.mxu0 0.0
        %518 = vmatprep.subr.mxu0 0.0
        %519 = vmatpush1.msra.mxu0 0.0
        %520 = vmatprep.subr.mxu0 0.0
        %521 = vmatpush1.msra.mxu0 0.0
        %522 = vmatprep.subr.mxu0 0.0
        %523 = vmatpush1.msra.mxu0 0.0
        %524 = vmatprep.subr.mxu0 0.0
        %525 = vmatpush1.msra.mxu0 0.0
        %526 = vmatprep.subr.mxu0 0.0
        %527 = vmatpush1.msra.mxu0 0.0
        %528 = vmatprep.subr.mxu0 0.0
        %529 = vmatpush1.msra.mxu0 0.0
        %530 = vmatprep.subr.mxu0 0.0
        %531 = vmatpush1.msra.mxu0 0.0
        %532 = vmatprep.subr.mxu0 0.0
        %533 = vmatpush1.msra.mxu0 0.0
        %534 = vmatprep.subr.mxu0 0.0
        %535 = vmatpush1.msra.mxu0 0.0
        %536 = vmatprep.subr.mxu0 0.0
        %537 = vmatpush1.msra.mxu0 0.0
        %538 = vmatprep.subr.mxu0 0.0
        %539 = vmatpush1.msra.mxu0 0.0
        %540 = vmatprep.subr.mxu0 0.0
        %541 = vmatpush1.msra.mxu0 0.0
        %542 = vmatprep.subr.mxu0 0.0
        %543 = vmatpush1.msra.mxu0 0.0
        %544 = vmatprep.mubr.f32.mxu0 0.0
        %545 = vmatmul.mubr.f32.gmra.mrb[0].mxu0 %v478
        %v546 = vpop.f32.mrb[0].mxu0
        %v547 = vadd.f32 %v474, %v546
        %v548 = vpop.f32.mrb[0].mxu0
        %549 = vdwg.mxu0
        %vm550 = vcmask 392192
        %551 = vst.msk [vmem:[#allocation2] sm:$0xff] %vm550, 0.0
        %552 = vst.msk [vmem:[#allocation2 + $0x8] sm:$0xff] %vm550, 0.0
        %553 = vst.msk [vmem:[#allocation2 + $0x10] sm:$0xff] %vm550, 0.0
        %554 = vst.msk [vmem:[#allocation2 + $0x18] sm:$0xff] %vm550, 0.0
        %555 = vst.msk [vmem:[#allocation2 + $0x10] sm:$0xff] %vm550, %v547
        %v556 = vld [vmem:[#allocation7 + $0x5] sm:$0xff]
        %v557 = vld [vmem:[#allocation7 + $0xd] sm:$0x7f]
        %v558 = vld [vmem:[#allocation2 + $0x9] sm:$0xff]
        %v559 = vlaneseq
        %v560 = vshrl.u32 %v559, 7
        %v561 = vsub.s32 0, %v560
        %v562 = vrot.slane %v556, %v561
        %v563 = vmul.f32 %v558, %v562
        %v564 = vadd.f32 %v563, 0.0
        %v565 = vld [vmem:[#allocation2 + $0xa] sm:$0xff]
        %v566 = vlaneseq
        %v567 = vshrl.u32 %v566, 7
        %v568 = vsub.s32 1, %v567
        %v569 = vrot.slane %v556, %v568
        %v570 = vmul.f32 %v565, %v569
        %v571 = vadd.f32 %v570, 0.0
        %v572 = vld [vmem:[#allocation2 + $0xb] sm:$0xff]
        %v573 = vlaneseq
        %v574 = vshrl.u32 %v573, 7
        %v575 = vsub.s32 2, %v574
        %v576 = vrot.slane %v556, %v575
        %v577 = vmul.f32 %v572, %v576
        %v578 = vadd.f32 %v577, 0.0
        %v579 = vld [vmem:[#allocation2 + $0xc] sm:$0xff]
        %v580 = vlaneseq
        %v581 = vshrl.u32 %v580, 7
        %v582 = vsub.s32 3, %v581
        %v583 = vrot.slane %v556, %v582
        %v584 = vmul.f32 %v579, %v583
        %v585 = vadd.f32 %v584, 0.0
        %v586 = vld [vmem:[#allocation2 + $0xd] sm:$0xff]
        %v587 = vlaneseq
        %v588 = vshrl.u32 %v587, 7
        %v589 = vsub.s32 4, %v588
        %v590 = vrot.slane %v556, %v589
        %v591 = vmul.f32 %v586, %v590
        %v592 = vadd.f32 %v564, %v591
        %v593 = vld [vmem:[#allocation2 + $0xe] sm:$0xff]
        %v594 = vlaneseq
        %v595 = vshrl.u32 %v594, 7
        %v596 = vsub.s32 5, %v595
        %v597 = vrot.slane %v556, %v596
        %v598 = vmul.f32 %v593, %v597
        %v599 = vadd.f32 %v571, %v598
        %v600 = vld [vmem:[#allocation2 + $0xf] sm:$0xff]
        %v601 = vlaneseq
        %v602 = vshrl.u32 %v601, 7
        %v603 = vsub.s32 6, %v602
        %v604 = vrot.slane %v556, %v603
        %v605 = vmul.f32 %v600, %v604
        %v606 = vadd.f32 %v578, %v605
        %v607 = vld [vmem:[#allocation2 + $0x10] sm:$0xff]
        %v608 = vlaneseq
        %v609 = vshrl.u32 %v608, 7
        %v610 = vsub.s32 7, %v609
        %v611 = vrot.slane %v556, %v610
        %v612 = vmul.f32 %v607, %v611
        %v613 = vadd.f32 %v585, %v612
        %v614 = vld [vmem:[#allocation2 + $0x11] sm:$0xff]
        %v615 = vlaneseq
        %v616 = vshrl.u32 %v615, 7
        %v617 = vsub.s32 0, %v616
        %v618 = vrot.slane %v557, %v617
        %v619 = vmul.f32 %v614, %v618
        %v620 = vadd.f32 %v592, %v619
        %v621 = vld [vmem:[#allocation2 + $0x12] sm:$0xff]
        %v622 = vlaneseq
        %v623 = vshrl.u32 %v622, 7
        %v624 = vsub.s32 1, %v623
        %v625 = vrot.slane %v557, %v624
        %v626 = vmul.f32 %v621, %v625
        %v627 = vadd.f32 %v599, %v626
        %v628 = vld [vmem:[#allocation2 + $0x13] sm:$0xff]
        %v629 = vlaneseq
        %v630 = vshrl.u32 %v629, 7
        %v631 = vsub.s32 2, %v630
        %v632 = vrot.slane %v557, %v631
        %v633 = vmul.f32 %v628, %v632
        %v634 = vadd.f32 %v606, %v633
        %v635 = vld [vmem:[#allocation2 + $0x14] sm:$0xff]
        %v636 = vlaneseq
        %v637 = vshrl.u32 %v636, 7
        %v638 = vsub.s32 3, %v637
        %v639 = vrot.slane %v557, %v638
        %v640 = vmul.f32 %v635, %v639
        %v641 = vadd.f32 %v613, %v640
        %v642 = vld [vmem:[#allocation2 + $0x15] sm:$0xff]
        %v643 = vlaneseq
        %v644 = vshrl.u32 %v643, 7
        %v645 = vsub.s32 4, %v644
        %v646 = vrot.slane %v557, %v645
        %v647 = vmul.f32 %v642, %v646
        %v648 = vadd.f32 %v620, %v647
        %v649 = vld [vmem:[#allocation2 + $0x16] sm:$0xff]
        %v650 = vlaneseq
        %v651 = vshrl.u32 %v650, 7
        %v652 = vsub.s32 5, %v651
        %v653 = vrot.slane %v557, %v652
        %v654 = vmul.f32 %v649, %v653
        %v655 = vadd.f32 %v627, %v654
        %v656 = vld [vmem:[#allocation2 + $0x17] sm:$0xff]
        %v657 = vlaneseq
        %v658 = vshrl.u32 %v657, 7
        %v659 = vsub.s32 6, %v658
        %v660 = vrot.slane %v557, %v659
        %v661 = vmul.f32 %v656, %v660
        %v662 = vadd.f32 %v634, %v661
        %v663 = vadd.f32 %v648, %v655
        %v664 = vadd.f32 %v662, %v641
        %v665 = vadd.f32 %v663, %v664
        %v666 = vld [vmem:[%s4] sm:$0x1]
        %v668 = vlaneseq
        %v669 = vshrl.u32 %v668, 7
        %v670 = vsub.s32 0, %v669
        %v671 = vrot.slane %v666, %v670
        %v673 = vadd.f32 %v665, %v671
        %v674 = vmax.f32 %v673, 0.0
        %v675 = vld [vmem:[%s5] sm:$0xff]
        %v676 = vld [vmem:[%s5 + $0x8] sm:$0xff]
        %v677 = vld [vmem:[%s5 + $0x10] sm:$0xff]
        %v678 = vld [vmem:[%s5 + $0x18] sm:$0xff]
        %v679 = vld [vmem:[%s5 + $0x20] sm:$0xff]
        %v680 = vld [vmem:[%s5 + $0x28] sm:$0xff]
        %v681 = vld [vmem:[%s5 + $0x30] sm:$0xff]
        %v682 = vld [vmem:[%s5 + $0x38] sm:$0xff]
        %v683 = vld [vmem:[%s5 + $0x40] sm:$0xff]
        %v684 = vld [vmem:[%s5 + $0x48] sm:$0xff]
        %v685 = vld [vmem:[%s5 + $0x50] sm:$0xff]
        %v686 = vld [vmem:[%s5 + $0x58] sm:$0xff]
        %v687 = vld [vmem:[%s6] sm:$0x3]
        %v689 = vlaneseq
        %v690 = vshrl.u32 %v689, 7
        %v691 = vsub.s32 0, %v690
        %v692 = vrot.slane %v687, %v691
        %v693 = vlaneseq
        %v694 = vshrl.u32 %v693, 7
        %v695 = vsub.s32 1, %v694
        %v696 = vrot.slane %v687, %v695
        %v700 = vsel %vm550, %v674, 0
        %702 = vmatprep.subr.mxu0 %v676
        %703 = vmatpush1.msra.mxu0 %v675
        %704 = vmatprep.subr.mxu0 %v678
        %705 = vmatpush1.msra.mxu0 %v677
        %706 = vmatprep.subr.mxu0 %v680
        %707 = vmatpush1.msra.mxu0 %v679
        %708 = vmatprep.subr.mxu0 %v682
        %709 = vmatpush1.msra.mxu0 %v681
        %710 = vmatprep.subr.mxu0 %v684
        %711 = vmatpush1.msra.mxu0 %v683
        %712 = vmatprep.subr.mxu0 %v686
        %713 = vmatpush1.msra.mxu0 %v685
        %714 = vmatprep.subr.mxu0 0.0
        %715 = vmatpush1.msra.mxu0 0.0
        %716 = vmatprep.subr.mxu0 0.0
        %717 = vmatpush1.msra.mxu0 0.0
        %718 = vmatprep.subr.mxu0 0.0
        %719 = vmatpush1.msra.mxu0 0.0
        %720 = vmatprep.subr.mxu0 0.0
        %721 = vmatpush1.msra.mxu0 0.0
        %722 = vmatprep.subr.mxu0 0.0
        %723 = vmatpush1.msra.mxu0 0.0
        %724 = vmatprep.subr.mxu0 0.0
        %725 = vmatpush1.msra.mxu0 0.0
        %726 = vmatprep.subr.mxu0 0.0
        %727 = vmatpush1.msra.mxu0 0.0
        %728 = vmatprep.subr.mxu0 0.0
        %729 = vmatpush1.msra.mxu0 0.0
        %730 = vmatprep.subr.mxu0 0.0
        %731 = vmatpush1.msra.mxu0 0.0
        %732 = vmatprep.subr.mxu0 0.0
        %733 = vmatpush1.msra.mxu0 0.0
        %734 = vmatprep.subr.mxu0 0.0
        %735 = vmatpush1.msra.mxu0 0.0
        %736 = vmatprep.subr.mxu0 0.0
        %737 = vmatpush1.msra.mxu0 0.0
        %738 = vmatprep.subr.mxu0 0.0
        %739 = vmatpush1.msra.mxu0 0.0
        %740 = vmatprep.subr.mxu0 0.0
        %741 = vmatpush1.msra.mxu0 0.0
        %742 = vmatprep.subr.mxu0 0.0
        %743 = vmatpush1.msra.mxu0 0.0
        %744 = vmatprep.subr.mxu0 0.0
        %745 = vmatpush1.msra.mxu0 0.0
        %746 = vmatprep.subr.mxu0 0.0
        %747 = vmatpush1.msra.mxu0 0.0
        %748 = vmatprep.subr.mxu0 0.0
        %749 = vmatpush1.msra.mxu0 0.0
        %750 = vmatprep.subr.mxu0 0.0
        %751 = vmatpush1.msra.mxu0 0.0
        %752 = vmatprep.subr.mxu0 0.0
        %753 = vmatpush1.msra.mxu0 0.0
        %754 = vmatprep.subr.mxu0 0.0
        %755 = vmatpush1.msra.mxu0 0.0
        %756 = vmatprep.subr.mxu0 0.0
        %757 = vmatpush1.msra.mxu0 0.0
        %758 = vmatprep.subr.mxu0 0.0
        %759 = vmatpush1.msra.mxu0 0.0
        %760 = vmatprep.subr.mxu0 0.0
        %761 = vmatpush1.msra.mxu0 0.0
        %762 = vmatprep.subr.mxu0 0.0
        %763 = vmatpush1.msra.mxu0 0.0
        %764 = vmatprep.subr.mxu0 0.0
        %765 = vmatpush1.msra.mxu0 0.0
        %766 = vmatprep.mubr.f32.mxu0 0.0
        %767 = vmatmul.mubr.f32.gmra.mrb[0].mxu0 %v700
        %v768 = vpop.f32.mrb[0].mxu0
        %v769 = vadd.f32 %v692, %v768
        %v770 = vpop.f32.mrb[0].mxu0
        %v771 = vadd.f32 %v696, %v770
        %772 = vdwg.mxu0
        %v773 = vmax.f32 %v769, 0.0
        %v774 = vmax.f32 %v771, 0.0
        %v777 = vcombine.low %v773, %v774
        %v778 = vcombine.high %v773, %v774
        %v780 = vunpack.c.l.s4 1983009808
        %v781 = vunpack.c.0.s8 %v780
        %v782 = vlaneseq
        %v783 = vshrl.u32 %v782, 7
        %v784 = vsub.s32 %v781, %v783
        %v785 = vrot.slane %v777, %v784
        %v787 = vunpack.c.l.s4 1983009808
        %v788 = vunpack.c.0.s8 %v787
        %v789 = vlaneseq
        %v790 = vshrl.u32 %v789, 7
        %v791 = vsub.s32 %v788, %v790
        %v792 = vrot.slane %v778, %v791
        %v793 = vcombine.high %v785, %v785
        %v794 = vcombine.high %v792, %v792
        %v799 = vrot.slane %v785, 7
        %v800 = vrot.slane %v799, 2
        %v801 = vrot.slane %v793, 7
        %v802 = vrot.slane %v801, 2
        %v803 = vrot.slane %v792, 7
        %v804 = vrot.slane %v803, 2
        %v805 = vrot.slane %v794, 7
        %v806 = vrot.slane %v805, 2
        %v811 = vadd.f32 %v785, %v800
        %v812 = vadd.f32 %v793, %v802
        %v813 = vadd.f32 %v792, %v804
        %v814 = vadd.f32 %v794, %v806
        %v815 = vmul.f32 %v811, 0.5
        %v816 = vmul.f32 %v812, 0.5
        %v817 = vmul.f32 %v813, 0.5
        %v818 = vmul.f32 %v814, 0.5
        %819 = vst.msk [vmem:[#allocation3] sm:$0xff] %vm550, 0.0
        %820 = vst.msk [vmem:[#allocation3 + $0x8] sm:$0xff] %vm550, 0.0
        %821 = vst.msk [vmem:[#allocation3 + $0x10] sm:$0xff] %vm550, 0.0
        %822 = vst.msk [vmem:[#allocation3 + $0x18] sm:$0xff] %vm550, 0.0
        %823 = vst.msk [vmem:[#allocation3 + $0x20] sm:$0xff] %vm550, 0.0
        %824 = vst.msk [vmem:[#allocation3 + $0x28] sm:$0xff] %vm550, 0.0
        %825 = vst.msk [vmem:[#allocation3 + $0x30] sm:$0xff] %vm550, 0.0
        %826 = vst.msk [vmem:[#allocation3 + $0x28] sm:$0xff] %vm550, %v547
        %v827 = vld [vmem:[%s7 + $0x1e] sm:$0xff]
        %v828 = vld [vmem:[%s7 + $0x26] sm:$0x7f]
        %v829 = vld [vmem:[#allocation3 + $0x21] sm:$0xff]
        %v830 = vlaneseq
        %v831 = vshrl.u32 %v830, 7
        %v832 = vsub.s32 0, %v831
        %v833 = vrot.slane %v827, %v832
        %v834 = vmul.f32 %v829, %v833
        %v835 = vadd.f32 %v834, 0.0
        %v836 = vld [vmem:[#allocation3 + $0x22] sm:$0xff]
        %v837 = vlaneseq
        %v838 = vshrl.u32 %v837, 7
        %v839 = vsub.s32 1, %v838
        %v840 = vrot.slane %v827, %v839
        %v841 = vmul.f32 %v836, %v840
        %v842 = vadd.f32 %v841, 0.0
        %v843 = vld [vmem:[#allocation3 + $0x23] sm:$0xff]
        %v844 = vlaneseq
        %v845 = vshrl.u32 %v844, 7
        %v846 = vsub.s32 2, %v845
        %v847 = vrot.slane %v827, %v846
        %v848 = vmul.f32 %v843, %v847
        %v849 = vadd.f32 %v848, 0.0
        %v850 = vld [vmem:[#allocation3 + $0x24] sm:$0xff]
        %v851 = vlaneseq
        %v852 = vshrl.u32 %v851, 7
        %v853 = vsub.s32 3, %v852
        %v854 = vrot.slane %v827, %v853
        %v855 = vmul.f32 %v850, %v854
        %v856 = vadd.f32 %v855, 0.0
        %v857 = vld [vmem:[#allocation3 + $0x25] sm:$0xff]
        %v858 = vlaneseq
        %v859 = vshrl.u32 %v858, 7
        %v860 = vsub.s32 4, %v859
        %v861 = vrot.slane %v827, %v860
        %v862 = vmul.f32 %v857, %v861
        %v863 = vadd.f32 %v835, %v862
        %v864 = vld [vmem:[#allocation3 + $0x26] sm:$0xff]
        %v865 = vlaneseq
        %v866 = vshrl.u32 %v865, 7
        %v867 = vsub.s32 5, %v866
        %v868 = vrot.slane %v827, %v867
        %v869 = vmul.f32 %v864, %v868
        %v870 = vadd.f32 %v842, %v869
        %v871 = vld [vmem:[#allocation3 + $0x27] sm:$0xff]
        %v872 = vlaneseq
        %v873 = vshrl.u32 %v872, 7
        %v874 = vsub.s32 6, %v873
        %v875 = vrot.slane %v827, %v874
        %v876 = vmul.f32 %v871, %v875
        %v877 = vadd.f32 %v849, %v876
        %v878 = vld [vmem:[#allocation3 + $0x28] sm:$0xff]
        %v879 = vlaneseq
        %v880 = vshrl.u32 %v879, 7
        %v881 = vsub.s32 7, %v880
        %v882 = vrot.slane %v827, %v881
        %v883 = vmul.f32 %v878, %v882
        %v884 = vadd.f32 %v856, %v883
        %v885 = vld [vmem:[#allocation3 + $0x29] sm:$0xff]
        %v886 = vlaneseq
        %v887 = vshrl.u32 %v886, 7
        %v888 = vsub.s32 0, %v887
        %v889 = vrot.slane %v828, %v888
        %v890 = vmul.f32 %v885, %v889
        %v891 = vadd.f32 %v863, %v890
        %v892 = vld [vmem:[#allocation3 + $0x2a] sm:$0xff]
        %v893 = vlaneseq
        %v894 = vshrl.u32 %v893, 7
        %v895 = vsub.s32 1, %v894
        %v896 = vrot.slane %v828, %v895
        %v897 = vmul.f32 %v892, %v896
        %v898 = vadd.f32 %v870, %v897
        %v899 = vld [vmem:[#allocation3 + $0x2b] sm:$0xff]
        %v900 = vlaneseq
        %v901 = vshrl.u32 %v900, 7
        %v902 = vsub.s32 2, %v901
        %v903 = vrot.slane %v828, %v902
        %v904 = vmul.f32 %v899, %v903
        %v905 = vadd.f32 %v877, %v904
        %v906 = vld [vmem:[#allocation3 + $0x2c] sm:$0xff]
        %v907 = vlaneseq
        %v908 = vshrl.u32 %v907, 7
        %v909 = vsub.s32 3, %v908
        %v910 = vrot.slane %v828, %v909
        %v911 = vmul.f32 %v906, %v910
        %v912 = vadd.f32 %v884, %v911
        %v913 = vld [vmem:[#allocation3 + $0x2d] sm:$0xff]
        %v914 = vlaneseq
        %v915 = vshrl.u32 %v914, 7
        %v916 = vsub.s32 4, %v915
        %v917 = vrot.slane %v828, %v916
        %v918 = vmul.f32 %v913, %v917
        %v919 = vadd.f32 %v891, %v918
        %v920 = vld [vmem:[#allocation3 + $0x2e] sm:$0xff]
        %v921 = vlaneseq
        %v922 = vshrl.u32 %v921, 7
        %v923 = vsub.s32 5, %v922
        %v924 = vrot.slane %v828, %v923
        %v925 = vmul.f32 %v920, %v924
        %v926 = vadd.f32 %v898, %v925
        %v927 = vld [vmem:[#allocation3 + $0x2f] sm:$0xff]
        %v928 = vlaneseq
        %v929 = vshrl.u32 %v928, 7
        %v930 = vsub.s32 6, %v929
        %v931 = vrot.slane %v828, %v930
        %v932 = vmul.f32 %v927, %v931
        %v933 = vadd.f32 %v905, %v932
        %v934 = vadd.f32 %v919, %v926
        %v935 = vadd.f32 %v933, %v912
        %v936 = vadd.f32 %v934, %v935
        %v937 = vld [vmem:[%s8] sm:$0x1]
        %v939 = vlaneseq
        %v940 = vshrl.u32 %v939, 7
        %v941 = vsub.s32 0, %v940
        %v942 = vrot.slane %v937, %v941
        %v944 = vadd.f32 %v936, %v942
        %v945 = vmax.f32 %v944, 0.0
        %v946 = vld [vmem:[%s9] sm:$0xff]
        %v947 = vld [vmem:[%s9 + $0x8] sm:$0xff]
        %v948 = vld [vmem:[%s9 + $0x10] sm:$0xff]
        %v949 = vld [vmem:[%s9 + $0x18] sm:$0xff]
        %v950 = vld [vmem:[%s9 + $0x20] sm:$0xff]
        %v951 = vld [vmem:[%s9 + $0x28] sm:$0xff]
        %v952 = vld [vmem:[%s9 + $0x30] sm:$0xff]
        %v953 = vld [vmem:[%s9 + $0x38] sm:$0xff]
        %v954 = vld [vmem:[%s9 + $0x40] sm:$0xff]
        %v955 = vld [vmem:[%s9 + $0x48] sm:$0xff]
        %v956 = vld [vmem:[%s9 + $0x50] sm:$0xff]
        %v957 = vld [vmem:[%s9 + $0x58] sm:$0xff]
        %v958 = vld [vmem:[%s10] sm:$0x3]
        %v960 = vlaneseq
        %v961 = vshrl.u32 %v960, 7
        %v962 = vsub.s32 0, %v961
        %v963 = vrot.slane %v958, %v962
        %v964 = vlaneseq
        %v965 = vshrl.u32 %v964, 7
        %v966 = vsub.s32 1, %v965
        %v967 = vrot.slane %v958, %v966
        %v971 = vsel %vm550, %v945, 0
        %973 = vmatprep.subr.mxu0 %v947
        %974 = vmatpush1.msra.mxu0 %v946
        %975 = vmatprep.subr.mxu0 %v949
        %976 = vmatpush1.msra.mxu0 %v948
        %977 = vmatprep.subr.mxu0 %v951
        %978 = vmatpush1.msra.mxu0 %v950
        %979 = vmatprep.subr.mxu0 %v953
        %980 = vmatpush1.msra.mxu0 %v952
        %981 = vmatprep.subr.mxu0 %v955
        %982 = vmatpush1.msra.mxu0 %v954
        %983 = vmatprep.subr.mxu0 %v957
        %984 = vmatpush1.msra.mxu0 %v956
        %985 = vmatprep.subr.mxu0 0.0
        %986 = vmatpush1.msra.mxu0 0.0
        %987 = vmatprep.subr.mxu0 0.0
        %988 = vmatpush1.msra.mxu0 0.0
        %989 = vmatprep.subr.mxu0 0.0
        %990 = vmatpush1.msra.mxu0 0.0
        %991 = vmatprep.subr.mxu0 0.0
        %992 = vmatpush1.msra.mxu0 0.0
        %993 = vmatprep.subr.mxu0 0.0
        %994 = vmatpush1.msra.mxu0 0.0
        %995 = vmatprep.subr.mxu0 0.0
        %996 = vmatpush1.msra.mxu0 0.0
        %997 = vmatprep.subr.mxu0 0.0
        %998 = vmatpush1.msra.mxu0 0.0
        %999 = vmatprep.subr.mxu0 0.0
        %1000 = vmatpush1.msra.mxu0 0.0
        %1001 = vmatprep.subr.mxu0 0.0
        %1002 = vmatpush1.msra.mxu0 0.0
        %1003 = vmatprep.subr.mxu0 0.0
        %1004 = vmatpush1.msra.mxu0 0.0
        %1005 = vmatprep.subr.mxu0 0.0
        %1006 = vmatpush1.msra.mxu0 0.0
        %1007 = vmatprep.subr.mxu0 0.0
        %1008 = vmatpush1.msra.mxu0 0.0
        %1009 = vmatprep.subr.mxu0 0.0
        %1010 = vmatpush1.msra.mxu0 0.0
        %1011 = vmatprep.subr.mxu0 0.0
        %1012 = vmatpush1.msra.mxu0 0.0
        %1013 = vmatprep.subr.mxu0 0.0
        %1014 = vmatpush1.msra.mxu0 0.0
        %1015 = vmatprep.subr.mxu0 0.0
        %1016 = vmatpush1.msra.mxu0 0.0
        %1017 = vmatprep.subr.mxu0 0.0
        %1018 = vmatpush1.msra.mxu0 0.0
        %1019 = vmatprep.subr.mxu0 0.0
        %1020 = vmatpush1.msra.mxu0 0.0
        %1021 = vmatprep.subr.mxu0 0.0
        %1022 = vmatpush1.msra.mxu0 0.0
        %1023 = vmatprep.subr.mxu0 0.0
        %1024 = vmatpush1.msra.mxu0 0.0
        %1025 = vmatprep.subr.mxu0 0.0
        %1026 = vmatpush1.msra.mxu0 0.0
        %1027 = vmatprep.subr.mxu0 0.0
        %1028 = vmatpush1.msra.mxu0 0.0
        %1029 = vmatprep.subr.mxu0 0.0
        %1030 = vmatpush1.msra.mxu0 0.0
        %1031 = vmatprep.subr.mxu0 0.0
        %1032 = vmatpush1.msra.mxu0 0.0
        %1033 = vmatprep.subr.mxu0 0.0
        %1034 = vmatpush1.msra.mxu0 0.0
        %1035 = vmatprep.subr.mxu0 0.0
        %1036 = vmatpush1.msra.mxu0 0.0
        %1037 = vmatprep.mubr.f32.mxu0 0.0
        %1038 = vmatmul.mubr.f32.gmra.mrb[0].mxu0 %v971
        %v1039 = vpop.f32.mrb[0].mxu0
        %v1040 = vadd.f32 %v963, %v1039
        %v1041 = vpop.f32.mrb[0].mxu0
        %v1042 = vadd.f32 %v967, %v1041
        %1043 = vdwg.mxu0
        %v1044 = vmax.f32 %v1040, 0.0
        %v1045 = vmax.f32 %v1042, 0.0
        %v1048 = vcombine.low %v1044, %v1045
        %v1049 = vcombine.high %v1044, %v1045
        %v1051 = vunpack.c.l.s4 1983009808
        %v1052 = vunpack.c.0.s8 %v1051
        %v1053 = vlaneseq
        %v1054 = vshrl.u32 %v1053, 7
        %v1055 = vsub.s32 %v1052, %v1054
        %v1056 = vrot.slane %v1048, %v1055
        %v1058 = vunpack.c.l.s4 1983009808
        %v1059 = vunpack.c.0.s8 %v1058
        %v1060 = vlaneseq
        %v1061 = vshrl.u32 %v1060, 7
        %v1062 = vsub.s32 %v1059, %v1061
        %v1063 = vrot.slane %v1049, %v1062
        %v1064 = vcombine.high %v1056, %v1056
        %v1065 = vcombine.high %v1063, %v1063
        %v1070 = vrot.slane %v1056, 7
        %v1071 = vrot.slane %v1070, 2
        %v1072 = vrot.slane %v1064, 7
        %v1073 = vrot.slane %v1072, 2
        %v1074 = vrot.slane %v1063, 7
        %v1075 = vrot.slane %v1074, 2
        %v1076 = vrot.slane %v1065, 7
        %v1077 = vrot.slane %v1076, 2
        %v1082 = vadd.f32 %v1056, %v1071
        %v1083 = vadd.f32 %v1064, %v1073
        %v1084 = vadd.f32 %v1063, %v1075
        %v1085 = vadd.f32 %v1065, %v1077
        %v1086 = vmul.f32 %v1082, 0.5
        %v1087 = vmul.f32 %v1083, 0.5
        %v1088 = vmul.f32 %v1084, 0.5
        %v1089 = vmul.f32 %v1085, 0.5
        %v1094 = vlaneseq
        %v1095 = vshrl.u32 %v1094, 7
        %v1096 = vsub.s32 0, %v1095
        %v1097 = vrot.slane %v815, %v1096
        %v1098 = vlaneseq
        %v1099 = vshrl.u32 %v1098, 7
        %v1100 = vsub.s32 2, %v1099
        %v1101 = vrot.slane %v815, %v1100
        %v1102 = vlaneseq
        %v1103 = vshrl.u32 %v1102, 7
        %v1104 = vsub.s32 0, %v1103
        %v1105 = vrot.slane %v816, %v1104
        %v1106 = vlaneseq
        %v1107 = vshrl.u32 %v1106, 7
        %v1108 = vsub.s32 2, %v1107
        %v1109 = vrot.slane %v816, %v1108
        %v1110 = vlaneseq
        %v1111 = vshrl.u32 %v1110, 7
        %v1112 = vsub.s32 0, %v1111
        %v1113 = vrot.slane %v817, %v1112
        %v1114 = vlaneseq
        %v1115 = vshrl.u32 %v1114, 7
        %v1116 = vsub.s32 2, %v1115
        %v1117 = vrot.slane %v817, %v1116
        %v1118 = vlaneseq
        %v1119 = vshrl.u32 %v1118, 7
        %v1120 = vsub.s32 0, %v1119
        %v1121 = vrot.slane %v818, %v1120
        %v1122 = vlaneseq
        %v1123 = vshrl.u32 %v1122, 7
        %v1124 = vsub.s32 2, %v1123
        %v1125 = vrot.slane %v818, %v1124
        %vm1126 = vcmask 1041409
        %v1127 = vsel %vm1126, %v1105, %v1097
        %vm1128 = vcmask 1042434
        %v1129 = vsel %vm1128, %v1113, %v1127
        %vm1130 = vcmask 1043459
        %v1131 = vsel %vm1130, %v1121, %v1129
        %v1132 = vsel %vm1126, %v1109, %v1101
        %v1133 = vsel %vm1128, %v1117, %v1132
        %v1134 = vsel %vm1130, %v1125, %v1133
        %v1141 = vlaneseq
        %v1142 = vshrl.u32 %v1141, 7
        %v1143 = vsub.s32 0, %v1142
        %v1144 = vrot.slane %v1086, %v1143
        %v1145 = vlaneseq
        %v1146 = vshrl.u32 %v1145, 7
        %v1147 = vsub.s32 2, %v1146
        %v1148 = vrot.slane %v1086, %v1147
        %v1149 = vlaneseq
        %v1150 = vshrl.u32 %v1149, 7
        %v1151 = vsub.s32 0, %v1150
        %v1152 = vrot.slane %v1087, %v1151
        %v1153 = vlaneseq
        %v1154 = vshrl.u32 %v1153, 7
        %v1155 = vsub.s32 2, %v1154
        %v1156 = vrot.slane %v1087, %v1155
        %v1157 = vlaneseq
        %v1158 = vshrl.u32 %v1157, 7
        %v1159 = vsub.s32 0, %v1158
        %v1160 = vrot.slane %v1088, %v1159
        %v1161 = vlaneseq
        %v1162 = vshrl.u32 %v1161, 7
        %v1163 = vsub.s32 2, %v1162
        %v1164 = vrot.slane %v1088, %v1163
        %v1165 = vlaneseq
        %v1166 = vshrl.u32 %v1165, 7
        %v1167 = vsub.s32 0, %v1166
        %v1168 = vrot.slane %v1089, %v1167
        %v1169 = vlaneseq
        %v1170 = vshrl.u32 %v1169, 7
        %v1171 = vsub.s32 2, %v1170
        %v1172 = vrot.slane %v1089, %v1171
        %vm1173 = vcmask 1045509
        %v1174 = vsel %vm1173, %v1152, %v1144
        %vm1175 = vcmask 1046534
        %v1176 = vsel %vm1175, %v1160, %v1174
        %vm1177 = vcmask 1047559
        %v1178 = vsel %vm1177, %v1168, %v1176
        %v1179 = vsel %vm1173, %v1156, %v1148
        %v1180 = vsel %vm1175, %v1164, %v1179
        %v1181 = vsel %vm1177, %v1172, %v1180
        %vm1184 = vcmask 1043456
        %v1185 = vsel %vm1184, %v1131, %v1178
        %v1186 = vsel %vm1184, %v1134, %v1181
        %v1187 = vmul.f32 %v1185, 0.25
        %v1188 = vld [vmem:[%s11] sm:$0xff]
        %v1189 = vld [vmem:[%s11 + $0x8] sm:$0xff]
        %v1190 = vld [vmem:[%s11 + $0x10] sm:$0xff]
        %v1191 = vld [vmem:[%s11 + $0x18] sm:$0xff]
        %v1192 = vld [vmem:[%s11 + $0x20] sm:$0xff]
        %v1193 = vld [vmem:[%s11 + $0x28] sm:$0xff]
        %v1194 = vld [vmem:[%s11 + $0x30] sm:$0xff]
        %v1195 = vld [vmem:[%s11 + $0x38] sm:$0xff]
        %1197 = vrot.lane.b32.xlu0 %v1185, 64
        %v1198 = vpop.permute.xlu0 %1197
        %vm1199 = vcmask 31744
        %v1201 = vsel %vm1199, %v1187, 0
        %v1203 = vsel %vm1199, %v1198, 0
        %1205 = vmatprep.subr.mxu0 0.0
        %1206 = vmatpush1.xpose.msra.mxu0 %v1203
        %1207 = vmatprep.subr.mxu0 0.0
        %1208 = vmatpush1.xpose.msra.mxu0 0.0
        %1209 = vmatprep.subr.mxu0 0.0
        %1210 = vmatpush1.xpose.msra.mxu0 0.0
        %1211 = vmatprep.subr.mxu0 0.0
        %1212 = vmatpush1.xpose.msra.mxu0 0.0
        %1213 = vmatprep.subr.mxu0 0.0
        %1214 = vmatpush1.xpose.msra.mxu0 0.0
        %1215 = vmatprep.subr.mxu0 0.0
        %1216 = vmatpush1.xpose.msra.mxu0 0.0
        %1217 = vmatprep.subr.mxu0 0.0
        %1218 = vmatpush1.xpose.msra.mxu0 0.0
        %1219 = vmatprep.subr.mxu0 0.0
        %1220 = vmatpush1.xpose.msra.mxu0 0.0
        %1221 = vmatprep.subr.mxu0 0.0
        %1222 = vmatpush1.xpose.msra.mxu0 0.0
        %1223 = vmatprep.subr.mxu0 0.0
        %1224 = vmatpush1.xpose.msra.mxu0 0.0
        %1225 = vmatprep.subr.mxu0 0.0
        %1226 = vmatpush1.xpose.msra.mxu0 0.0
        %1227 = vmatprep.subr.mxu0 0.0
        %1228 = vmatpush1.xpose.msra.mxu0 0.0
        %1229 = vmatprep.subr.mxu0 0.0
        %1230 = vmatpush1.xpose.msra.mxu0 0.0
        %1231 = vmatprep.subr.mxu0 0.0
        %1232 = vmatpush1.xpose.msra.mxu0 0.0
        %1233 = vmatprep.subr.mxu0 0.0
        %1234 = vmatpush1.xpose.msra.mxu0 0.0
        %1235 = vmatprep.subr.mxu0 0.0
        %1236 = vmatpush1.xpose.msra.mxu0 0.0
        %1237 = vmatprep.subr.mxu0 0.0
        %1238 = vmatpush1.xpose.msra.mxu0 0.0
        %1239 = vmatprep.subr.mxu0 0.0
        %1240 = vmatpush1.xpose.msra.mxu0 0.0
        %1241 = vmatprep.subr.mxu0 0.0
        %1242 = vmatpush1.xpose.msra.mxu0 0.0
        %1243 = vmatprep.subr.mxu0 0.0
        %1244 = vmatpush1.xpose.msra.mxu0 0.0
        %1245 = vmatprep.subr.mxu0 0.0
        %1246 = vmatpush1.xpose.msra.mxu0 0.0
        %1247 = vmatprep.subr.mxu0 0.0
        %1248 = vmatpush1.xpose.msra.mxu0 0.0
        %1249 = vmatprep.subr.mxu0 0.0
        %1250 = vmatpush1.xpose.msra.mxu0 0.0
        %1251 = vmatprep.subr.mxu0 0.0
        %1252 = vmatpush1.xpose.msra.mxu0 0.0
        %1253 = vmatprep.subr.mxu0 0.0
        %1254 = vmatpush1.xpose.msra.mxu0 0.0
        %1255 = vmatprep.subr.mxu0 0.0
        %1256 = vmatpush1.xpose.msra.mxu0 0.0
        %1257 = vmatprep.subr.mxu0 0.0
        %1258 = vmatpush1.xpose.msra.mxu0 0.0
        %1259 = vmatprep.subr.mxu0 0.0
        %1260 = vmatpush1.xpose.msra.mxu0 0.0
        %1261 = vmatprep.subr.mxu0 0.0
        %1262 = vmatpush1.xpose.msra.mxu0 0.0
        %1263 = vmatprep.subr.mxu0 0.0
        %1264 = vmatpush1.xpose.msra.mxu0 0.0
        %1265 = vmatprep.subr.mxu0 0.0
        %1266 = vmatpush1.xpose.msra.mxu0 0.0
        %1267 = vmatprep.subr.mxu0 0.0
        %1268 = vmatpush1.xpose.msra.mxu0 0.0
        %1269 = vmatprep.mubr.f32.mxu0 0.0
        %1270 = vmatmul.mubr.f32.gmra.mrb[0].mxu0 %v1201
        %v1271 = vpop.f32.mrb[0].mxu0
        %v1272 = vadd.f32 0.0, %v1271
        %v1273 = vpop.f32.mrb[0].mxu0
        %1274 = vdwg.mxu0
        %vm1275 = vcmask 64512
        %v1276 = vsel %vm1275, %v1272, -inf
        %1277 = vmax.xlane.f32.xlu0 %v1276
        %v1278 = vpop.xlane.xlu0 %1277
        %v1279 = vsub.f32 %v1272, %v1278
        %v1280 = vmul.f32 %v1279, 1.442695
        %v1281 = vpow.pop %v1280
        %v1282 = vsel %vm1275, %v1281, 0.0
        %1283 = vadd.xlane.f32.xlu0 %v1282
        %v1284 = vpop.xlane.xlu0 %1283
        %v1285 = vrcp.pop %v1284
        %v1286 = vmul.f32 %v1281, %v1285
        %v1288 = vsel %vm1275, %v1286, 0
        %1290 = vmatprep.subr.mxu0 0.0
        %1291 = vmatpush1.msra.mxu0 %v1186
        %1292 = vmatprep.subr.mxu0 0.0
        %1293 = vmatpush1.msra.mxu0 0.0
        %1294 = vmatprep.subr.mxu0 0.0
        %1295 = vmatpush1.msra.mxu0 0.0
        %1296 = vmatprep.subr.mxu0 0.0
        %1297 = vmatpush1.msra.mxu0 0.0
        %1298 = vmatprep.subr.mxu0 0.0
        %1299 = vmatpush1.msra.mxu0 0.0
        %1300 = vmatprep.subr.mxu0 0.0
        %1301 = vmatpush1.msra.mxu0 0.0
        %1302 = vmatprep.subr.mxu0 0.0
        %1303 = vmatpush1.msra.mxu0 0.0
        %1304 = vmatprep.subr.mxu0 0.0
        %1305 = vmatpush1.msra.mxu0 0.0
        %1306 = vmatprep.subr.mxu0 0.0
        %1307 = vmatpush1.msra.mxu0 0.0
        %1308 = vmatprep.subr.mxu0 0.0
        %1309 = vmatpush1.msra.mxu0 0.0
        %1310 = vmatprep.subr.mxu0 0.0
        %1311 = vmatpush1.msra.mxu0 0.0
        %1312 = vmatprep.subr.mxu0 0.0
        %1313 = vmatpush1.msra.mxu0 0.0
        %1314 = vmatprep.subr.mxu0 0.0
        %1315 = vmatpush1.msra.mxu0 0.0
        %1316 = vmatprep.subr.mxu0 0.0
        %1317 = vmatpush1.msra.mxu0 0.0
        %1318 = vmatprep.subr.mxu0 0.0
        %1319 = vmatpush1.msra.mxu0 0.0
        %1320 = vmatprep.subr.mxu0 0.0
        %1321 = vmatpush1.msra.mxu0 0.0
        %1322 = vmatprep.subr.mxu0 0.0
        %1323 = vmatpush1.msra.mxu0 0.0
        %1324 = vmatprep.subr.mxu0 0.0
        %1325 = vmatpush1.msra.mxu0 0.0
        %1326 = vmatprep.subr.mxu0 0.0
        %1327 = vmatpush1.msra.mxu0 0.0
        %1328 = vmatprep.subr.mxu0 0.0
        %1329 = vmatpush1.msra.mxu0 0.0
        %1330 = vmatprep.subr.mxu0 0.0
        %1331 = vmatpush1.msra.mxu0 0.0
        %1332 = vmatprep.subr.mxu0 0.0
        %1333 = vmatpush1.msra.mxu0 0.0
        %1334 = vmatprep.subr.mxu0 0.0
        %1335 = vmatpush1.msra.mxu0 0.0
        %1336 = vmatprep.subr.mxu0 0.0
        %1337 = vmatpush1.msra.mxu0 0.0
        %1338 = vmatprep.subr.mxu0 0.0
        %1339 = vmatpush1.msra.mxu0 0.0
        %1340 = vmatprep.subr.mxu0 0.0
        %1341 = vmatpush1.msra.mxu0 0.0
        %1342 = vmatprep.subr.mxu0 0.0
        %1343 = vmatpush1.msra.mxu0 0.0
        %1344 = vmatprep.subr.mxu0 0.0
        %1345 = vmatpush1.msra.mxu0 0.0
        %1346 = vmatprep.subr.mxu0 0.0
        %1347 = vmatpush1.msra.mxu0 0.0
        %1348 = vmatprep.subr.mxu0 0.0
        %1349 = vmatpush1.msra.mxu0 0.0
        %1350 = vmatprep.subr.mxu0 0.0
        %1351 = vmatpush1.msra.mxu0 0.0
        %1352 = vmatprep.subr.mxu0 0.0
        %1353 = vmatpush1.msra.mxu0 0.0
        %1354 = vmatprep.mubr.f32.mxu0 0.0
        %1355 = vmatmul.mubr.f32.gmra.mrb[0].mxu0 %v1288
        %v1356 = vpop.f32.mrb[0].mxu0
        %v1357 = vadd.f32 0.0, %v1356
        %v1358 = vpop.f32.mrb[0].mxu0
        %1359 = vdwg.mxu0
        %1360 = vrot.lane.b32.xlu0 %v1187, 124
        %v1361 = vpop.permute.xlu0 %1360
        %1362 = vrot.lane.b32.xlu0 %v1185, 60
        %v1363 = vpop.permute.xlu0 %1362
        %v1364 = vsel %vm1199, %v1361, 0
        %v1366 = vsel %vm1199, %v1363, 0
        %1368 = vmatprep.subr.mxu0 0.0
        %1369 = vmatpush1.xpose.msra.mxu0 %v1366
        %1370 = vmatprep.subr.mxu0 0.0
        %1371 = vmatpush1.xpose.msra.mxu0 0.0
        %1372 = vmatprep.subr.mxu0 0.0
        %1373 = vmatpush1.xpose.msra.mxu0 0.0
        %1374 = vmatprep.subr.mxu0 0.0
        %1375 = vmatpush1.xpose.msra.mxu0 0.0
        %1376 = vmatprep.subr.mxu0 0.0
        %1377 = vmatpush1.xpose.msra.mxu0 0.0
        %1378 = vmatprep.subr.mxu0 0.0
        %1379 = vmatpush1.xpose.msra.mxu0 0.0
        %1380 = vmatprep.subr.mxu0 0.0
        %1381 = vmatpush1.xpose.msra.mxu0 0.0
        %1382 = vmatprep.subr.mxu0 0.0
        %1383 = vmatpush1.xpose.msra.mxu0 0.0
        %1384 = vmatprep.subr.mxu0 0.0
        %1385 = vmatpush1.xpose.msra.mxu0 0.0
        %1386 = vmatprep.subr.mxu0 0.0
        %1387 = vmatpush1.xpose.msra.mxu0 0.0
        %1388 = vmatprep.subr.mxu0 0.0
        %1389 = vmatpush1.xpose.msra.mxu0 0.0
        %1390 = vmatprep.subr.mxu0 0.0
        %1391 = vmatpush1.xpose.msra.mxu0 0.0
        %1392 = vmatprep.subr.mxu0 0.0
        %1393 = vmatpush1.xpose.msra.mxu0 0.0
        %1394 = vmatprep.subr.mxu0 0.0
        %1395 = vmatpush1.xpose.msra.mxu0 0.0
        %1396 = vmatprep.subr.mxu0 0.0
        %1397 = vmatpush1.xpose.msra.mxu0 0.0
        %1398 = vmatprep.subr.mxu0 0.0
        %1399 = vmatpush1.xpose.msra.mxu0 0.0
        %1400 = vmatprep.subr.mxu0 0.0
        %1401 = vmatpush1.xpose.msra.mxu0 0.0
        %1402 = vmatprep.subr.mxu0 0.0
        %1403 = vmatpush1.xpose.msra.mxu0 0.0
        %1404 = vmatprep.subr.mxu0 0.0
        %1405 = vmatpush1.xpose.msra.mxu0 0.0
        %1406 = vmatprep.subr.mxu0 0.0
        %1407 = vmatpush1.xpose.msra.mxu0 0.0
        %1408 = vmatprep.subr.mxu0 0.0
        %1409 = vmatpush1.xpose.msra.mxu0 0.0
        %1410 = vmatprep.subr.mxu0 0.0
        %1411 = vmatpush1.xpose.msra.mxu0 0.0
        %1412 = vmatprep.subr.mxu0 0.0
        %1413 = vmatpush1.xpose.msra.mxu0 0.0
        %1414 = vmatprep.subr.mxu0 0.0
        %1415 = vmatpush1.xpose.msra.mxu0 0.0
        %1416 = vmatprep.subr.mxu0 0.0
        %1417 = vmatpush1.xpose.msra.mxu0 0.0
        %1418 = vmatprep.subr.mxu0 0.0
        %1419 = vmatpush1.xpose.msra.mxu0 0.0
        %1420 = vmatprep.subr.mxu0 0.0
        %1421 = vmatpush1.xpose.msra.mxu0 0.0
        %1422 = vmatprep.subr.mxu0 0.0
        %1423 = vmatpush1.xpose.msra.mxu0 0.0
        %1424 = vmatprep.subr.mxu0 0.0
        %1425 = vmatpush1.xpose.msra.mxu0 0.0
        %1426 = vmatprep.subr.mxu0 0.0
        %1427 = vmatpush1.xpose.msra.mxu0 0.0
        %1428 = vmatprep.subr.mxu0 0.0
        %1429 = vmatpush1.xpose.msra.mxu0 0.0
        %1430 = vmatprep.subr.mxu0 0.0
        %1431 = vmatpush1.xpose.msra.mxu0 0.0
        %1432 = vmatprep.mubr.f32.mxu0 0.0
        %1433 = vmatmul.mubr.f32.gmra.mrb[0].mxu0 %v1364
        %v1434 = vpop.f32.mrb[0].mxu0
        %v1435 = vadd.f32 0.0, %v1434
        %v1436 = vpop.f32.mrb[0].mxu0
        %1437 = vdwg.mxu0
        %v1438 = vsel %vm1275, %v1435, -inf
        %1439 = vmax.xlane.f32.xlu0 %v1438
        %v1440 = vpop.xlane.xlu0 %1439
        %v1441 = vsub.f32 %v1435, %v1440
        %v1442 = vmul.f32 %v1441, 1.442695
        %v1443 = vpow.pop %v1442
        %v1444 = vsel %vm1275, %v1443, 0.0
        %1445 = vadd.xlane.f32.xlu0 %v1444
        %v1446 = vpop.xlane.xlu0 %1445
        %v1447 = vrcp.pop %v1446
        %v1448 = vmul.f32 %v1443, %v1447
        %1450 = vrot.lane.b32.xlu0 %v1186, 124
        %v1451 = vpop.permute.xlu0 %1450
        %v1454 = vsel %vm1275, %v1448, 0
        %1456 = vmatprep.subr.mxu0 0.0
        %1457 = vmatpush1.msra.mxu0 %v1451
        %1458 = vmatprep.subr.mxu0 0.0
        %1459 = vmatpush1.msra.mxu0 0.0
        %1460 = vmatprep.subr.mxu0 0.0
        %1461 = vmatpush1.msra.mxu0 0.0
        %1462 = vmatprep.subr.mxu0 0.0
        %1463 = vmatpush1.msra.mxu0 0.0
        %1464 = vmatprep.subr.mxu0 0.0
        %1465 = vmatpush1.msra.mxu0 0.0
        %1466 = vmatprep.subr.mxu0 0.0
        %1467 = vmatpush1.msra.mxu0 0.0
        %1468 = vmatprep.subr.mxu0 0.0
        %1469 = vmatpush1.msra.mxu0 0.0
        %1470 = vmatprep.subr.mxu0 0.0
        %1471 = vmatpush1.msra.mxu0 0.0
        %1472 = vmatprep.subr.mxu0 0.0
        %1473 = vmatpush1.msra.mxu0 0.0
        %1474 = vmatprep.subr.mxu0 0.0
        %1475 = vmatpush1.msra.mxu0 0.0
        %1476 = vmatprep.subr.mxu0 0.0
        %1477 = vmatpush1.msra.mxu0 0.0
        %1478 = vmatprep.subr.mxu0 0.0
        %1479 = vmatpush1.msra.mxu0 0.0
        %1480 = vmatprep.subr.mxu0 0.0
        %1481 = vmatpush1.msra.mxu0 0.0
        %1482 = vmatprep.subr.mxu0 0.0
        %1483 = vmatpush1.msra.mxu0 0.0
        %1484 = vmatprep.subr.mxu0 0.0
        %1485 = vmatpush1.msra.mxu0 0.0
        %1486 = vmatprep.subr.mxu0 0.0
        %1487 = vmatpush1.msra.mxu0 0.0
        %1488 = vmatprep.subr.mxu0 0.0
        %1489 = vmatpush1.msra.mxu0 0.0
        %1490 = vmatprep.subr.mxu0 0.0
        %1491 = vmatpush1.msra.mxu0 0.0
        %1492 = vmatprep.subr.mxu0 0.0
        %1493 = vmatpush1.msra.mxu0 0.0
        %1494 = vmatprep.subr.mxu0 0.0
        %1495 = vmatpush1.msra.mxu0 0.0
        %1496 = vmatprep.subr.mxu0 0.0
        %1497 = vmatpush1.msra.mxu0 0.0
        %1498 = vmatprep.subr.mxu0 0.0
        %1499 = vmatpush1.msra.mxu0 0.0
        %1500 = vmatprep.subr.mxu0 0.0
        %1501 = vmatpush1.msra.mxu0 0.0
        %1502 = vmatprep.subr.mxu0 0.0
        %1503 = vmatpush1.msra.mxu0 0.0
        %1504 = vmatprep.subr.mxu0 0.0
        %1505 = vmatpush1.msra.mxu0 0.0
        %1506 = vmatprep.subr.mxu0 0.0
        %1507 = vmatpush1.msra.mxu0 0.0
        %1508 = vmatprep.subr.mxu0 0.0
        %1509 = vmatpush1.msra.mxu0 0.0
        %1510 = vmatprep.subr.mxu0 0.0
        %1511 = vmatpush1.msra.mxu0 0.0
        %1512 = vmatprep.subr.mxu0 0.0
        %1513 = vmatpush1.msra.mxu0 0.0
        %1514 = vmatprep.subr.mxu0 0.0
        %1515 = vmatpush1.msra.mxu0 0.0
        %1516 = vmatprep.subr.mxu0 0.0
        %1517 = vmatpush1.msra.mxu0 0.0
        %1518 = vmatprep.subr.mxu0 0.0
        %1519 = vmatpush1.msra.mxu0 0.0
        %1520 = vmatprep.mubr.f32.mxu0 0.0
        %1521 = vmatmul.mubr.f32.gmra.mrb[0].mxu0 %v1454
        %v1522 = vpop.f32.mrb[0].mxu0
        %v1523 = vadd.f32 0.0, %v1522
        %v1524 = vpop.f32.mrb[0].mxu0
        %1525 = vdwg.mxu0
        %1526 = vrot.lane.b32.xlu0 %v1187, 120
        %v1527 = vpop.permute.xlu0 %1526
        %1528 = vrot.lane.b32.xlu0 %v1185, 56
        %v1529 = vpop.permute.xlu0 %1528
        %v1530 = vsel %vm1199, %v1527, 0
        %v1532 = vsel %vm1199, %v1529, 0
        %1534 = vmatprep.subr.mxu0 0.0
        %1535 = vmatpush1.xpose.msra.mxu0 %v1532
        %1536 = vmatprep.subr.mxu0 0.0
        %1537 = vmatpush1.xpose.msra.mxu0 0.0
        %1538 = vmatprep.subr.mxu0 0.0
        %1539 = vmatpush1.xpose.msra.mxu0 0.0
        %1540 = vmatprep.subr.mxu0 0.0
        %1541 = vmatpush1.xpose.msra.mxu0 0.0
        %1542 = vmatprep.subr.mxu0 0.0
        %1543 = vmatpush1.xpose.msra.mxu0 0.0
        %1544 = vmatprep.subr.mxu0 0.0
        %1545 = vmatpush1.xpose.msra.mxu0 0.0
        %1546 = vmatprep.subr.mxu0 0.0
        %1547 = vmatpush1.xpose.msra.mxu0 0.0
        %1548 = vmatprep.subr.mxu0 0.0
        %1549 = vmatpush1.xpose.msra.mxu0 0.0
        %1550 = vmatprep.subr.mxu0 0.0
        %1551 = vmatpush1.xpose.msra.mxu0 0.0
        %1552 = vmatprep.subr.mxu0 0.0
        %1553 = vmatpush1.xpose.msra.mxu0 0.0
        %1554 = vmatprep.subr.mxu0 0.0
        %1555 = vmatpush1.xpose.msra.mxu0 0.0
        %1556 = vmatprep.subr.mxu0 0.0
        %1557 = vmatpush1.xpose.msra.mxu0 0.0
        %1558 = vmatprep.subr.mxu0 0.0
        %1559 = vmatpush1.xpose.msra.mxu0 0.0
        %1560 = vmatprep.subr.mxu0 0.0
        %1561 = vmatpush1.xpose.msra.mxu0 0.0
        %1562 = vmatprep.subr.mxu0 0.0
        %1563 = vmatpush1.xpose.msra.mxu0 0.0
        %1564 = vmatprep.subr.mxu0 0.0
        %1565 = vmatpush1.xpose.msra.mxu0 0.0
        %1566 = vmatprep.subr.mxu0 0.0
        %1567 = vmatpush1.xpose.msra.mxu0 0.0
        %1568 = vmatprep.subr.mxu0 0.0
        %1569 = vmatpush1.xpose.msra.mxu0 0.0
        %1570 = vmatprep.subr.mxu0 0.0
        %1571 = vmatpush1.xpose.msra.mxu0 0.0
        %1572 = vmatprep.subr.mxu0 0.0
        %1573 = vmatpush1.xpose.msra.mxu0 0.0
        %1574 = vmatprep.subr.mxu0 0.0
        %1575 = vmatpush1.xpose.msra.mxu0 0.0
        %1576 = vmatprep.subr.mxu0 0.0
        %1577 = vmatpush1.xpose.msra.mxu0 0.0
        %1578 = vmatprep.subr.mxu0 0.0
        %1579 = vmatpush1.xpose.msra.mxu0 0.0
        %1580 = vmatprep.subr.mxu0 0.0
        %1581 = vmatpush1.xpose.msra.mxu0 0.0
        %1582 = vmatprep.subr.mxu0 0.0
        %1583 = vmatpush1.xpose.msra.mxu0 0.0
        %1584 = vmatprep.subr.mxu0 0.0
        %1585 = vmatpush1.xpose.msra.mxu0 0.0
        %1586 = vmatprep.subr.mxu0 0.0
        %1587 = vmatpush1.xpose.msra.mxu0 0.0
        %1588 = vmatprep.subr.mxu0 0.0
        %1589 = vmatpush1.xpose.msra.mxu0 0.0
        %1590 = vmatprep.subr.mxu0 0.0
        %1591 = vmatpush1.xpose.msra.mxu0 0.0
        %1592 = vmatprep.subr.mxu0 0.0
        %1593 = vmatpush1.xpose.msra.mxu0 0.0
        %1594 = vmatprep.subr.mxu0 0.0
        %1595 = vmatpush1.xpose.msra.mxu0 0.0
        %1596 = vmatprep.subr.mxu0 0.0
        %1597 = vmatpush1.xpose.msra.mxu0 0.0
        %1598 = vmatprep.mubr.f32.mxu0 0.0
        %1599 = vmatmul.mubr.f32.gmra.mrb[0].mxu0 %v1530
        %v1600 = vpop.f32.mrb[0].mxu0
        %v1601 = vadd.f32 0.0, %v1600
        %v1602 = vpop.f32.mrb[0].mxu0
        %1603 = vdwg.mxu0
        %v1604 = vsel %vm1275, %v1601, -inf
        %1605 = vmax.xlane.f32.xlu0 %v1604
        %v1606 = vpop.xlane.xlu0 %1605
        %v1607 = vsub.f32 %v1601, %v1606
        %v1608 = vmul.f32 %v1607, 1.442695
        %v1609 = vpow.pop %v1608
        %v1610 = vsel %vm1275, %v1609, 0.0
        %1611 = vadd.xlane.f32.xlu0 %v1610
        %v1612 = vpop.xlane.xlu0 %1611
        %v1613 = vrcp.pop %v1612
        %v1614 = vmul.f32 %v1609, %v1613
        %1615 = vrot.lane.b32.xlu0 %v1186, 120
        %v1616 = vpop.permute.xlu0 %1615
        %v1619 = vsel %vm1275, %v1614, 0
        %1621 = vmatprep.subr.mxu0 0.0
        %1622 = vmatpush1.msra.mxu0 %v1616
        %1623 = vmatprep.subr.mxu0 0.0
        %1624 = vmatpush1.msra.mxu0 0.0
        %1625 = vmatprep.subr.mxu0 0.0
        %1626 = vmatpush1.msra.mxu0 0.0
        %1627 = vmatprep.subr.mxu0 0.0
        %1628 = vmatpush1.msra.mxu0 0.0
        %1629 = vmatprep.subr.mxu0 0.0
        %1630 = vmatpush1.msra.mxu0 0.0
        %1631 = vmatprep.subr.mxu0 0.0
        %1632 = vmatpush1.msra.mxu0 0.0
        %1633 = vmatprep.subr.mxu0 0.0
        %1634 = vmatpush1.msra.mxu0 0.0
        %1635 = vmatprep.subr.mxu0 0.0
        %1636 = vmatpush1.msra.mxu0 0.0
        %1637 = vmatprep.subr.mxu0 0.0
        %1638 = vmatpush1.msra.mxu0 0.0
        %1639 = vmatprep.subr.mxu0 0.0
        %1640 = vmatpush1.msra.mxu0 0.0
        %1641 = vmatprep.subr.mxu0 0.0
        %1642 = vmatpush1.msra.mxu0 0.0
        %1643 = vmatprep.subr.mxu0 0.0
        %1644 = vmatpush1.msra.mxu0 0.0
        %1645 = vmatprep.subr.mxu0 0.0
        %1646 = vmatpush1.msra.mxu0 0.0
        %1647 = vmatprep.subr.mxu0 0.0
        %1648 = vmatpush1.msra.mxu0 0.0
        %1649 = vmatprep.subr.mxu0 0.0
        %1650 = vmatpush1.msra.mxu0 0.0
        %1651 = vmatprep.subr.mxu0 0.0
        %1652 = vmatpush1.msra.mxu0 0.0
        %1653 = vmatprep.subr.mxu0 0.0
        %1654 = vmatpush1.msra.mxu0 0.0
        %1655 = vmatprep.subr.mxu0 0.0
        %1656 = vmatpush1.msra.mxu0 0.0
        %1657 = vmatprep.subr.mxu0 0.0
        %1658 = vmatpush1.msra.mxu0 0.0
        %1659 = vmatprep.subr.mxu0 0.0
        %1660 = vmatpush1.msra.mxu0 0.0
        %1661 = vmatprep.subr.mxu0 0.0
        %1662 = vmatpush1.msra.mxu0 0.0
        %1663 = vmatprep.subr.mxu0 0.0
        %1664 = vmatpush1.msra.mxu0 0.0
        %1665 = vmatprep.subr.mxu0 0.0
        %1666 = vmatpush1.msra.mxu0 0.0
        %1667 = vmatprep.subr.mxu0 0.0
        %1668 = vmatpush1.msra.mxu0 0.0
        %1669 = vmatprep.subr.mxu0 0.0
        %1670 = vmatpush1.msra.mxu0 0.0
        %1671 = vmatprep.subr.mxu0 0.0
        %1672 = vmatpush1.msra.mxu0 0.0
        %1673 = vmatprep.subr.mxu0 0.0
        %1674 = vmatpush1.msra.mxu0 0.0
        %1675 = vmatprep.subr.mxu0 0.0
        %1676 = vmatpush1.msra.mxu0 0.0
        %1677 = vmatprep.subr.mxu0 0.0
        %1678 = vmatpush1.msra.mxu0 0.0
        %1679 = vmatprep.subr.mxu0 0.0
        %1680 = vmatpush1.msra.mxu0 0.0
        %1681 = vmatprep.subr.mxu0 0.0
        %1682 = vmatpush1.msra.mxu0 0.0
        %1683 = vmatprep.subr.mxu0 0.0
        %1684 = vmatpush1.msra.mxu0 0.0
        %1685 = vmatprep.mubr.f32.mxu0 0.0
        %1686 = vmatmul.mubr.f32.gmra.mrb[0].mxu0 %v1619
        %v1687 = vpop.f32.mrb[0].mxu0
        %v1688 = vadd.f32 0.0, %v1687
        %v1689 = vpop.f32.mrb[0].mxu0
        %1690 = vdwg.mxu0
        %1691 = vrot.lane.b32.xlu0 %v1187, 116
        %v1692 = vpop.permute.xlu0 %1691
        %1693 = vrot.lane.b32.xlu0 %v1185, 52
        %v1694 = vpop.permute.xlu0 %1693
        %v1695 = vsel %vm1199, %v1692, 0
        %v1697 = vsel %vm1199, %v1694, 0
        %1699 = vmatprep.subr.mxu0 0.0
        %1700 = vmatpush1.xpose.msra.mxu0 %v1697
        %1701 = vmatprep.subr.mxu0 0.0
        %1702 = vmatpush1.xpose.msra.mxu0 0.0
        %1703 = vmatprep.subr.mxu0 0.0
        %1704 = vmatpush1.xpose.msra.mxu0 0.0
        %1705 = vmatprep.subr.mxu0 0.0
        %1706 = vmatpush1.xpose.msra.mxu0 0.0
        %1707 = vmatprep.subr.mxu0 0.0
        %1708 = vmatpush1.xpose.msra.mxu0 0.0
        %1709 = vmatprep.subr.mxu0 0.0
        %1710 = vmatpush1.xpose.msra.mxu0 0.0
        %1711 = vmatprep.subr.mxu0 0.0
        %1712 = vmatpush1.xpose.msra.mxu0 0.0
        %1713 = vmatprep.subr.mxu0 0.0
        %1714 = vmatpush1.xpose.msra.mxu0 0.0
        %1715 = vmatprep.subr.mxu0 0.0
        %1716 = vmatpush1.xpose.msra.mxu0 0.0
        %1717 = vmatprep.subr.mxu0 0.0
        %1718 = vmatpush1.xpose.msra.mxu0 0.0
        %1719 = vmatprep.subr.mxu0 0.0
        %1720 = vmatpush1.xpose.msra.mxu0 0.0
        %1721 = vmatprep.subr.mxu0 0.0
        %1722 = vmatpush1.xpose.msra.mxu0 0.0
        %1723 = vmatprep.subr.mxu0 0.0
        %1724 = vmatpush1.xpose.msra.mxu0 0.0
        %1725 = vmatprep.subr.mxu0 0.0
        %1726 = vmatpush1.xpose.msra.mxu0 0.0
        %1727 = vmatprep.subr.mxu0 0.0
        %1728 = vmatpush1.xpose.msra.mxu0 0.0
        %1729 = vmatprep.subr.mxu0 0.0
        %1730 = vmatpush1.xpose.msra.mxu0 0.0
        %1731 = vmatprep.subr.mxu0 0.0
        %1732 = vmatpush1.xpose.msra.mxu0 0.0
        %1733 = vmatprep.subr.mxu0 0.0
        %1734 = vmatpush1.xpose.msra.mxu0 0.0
        %1735 = vmatprep.subr.mxu0 0.0
        %1736 = vmatpush1.xpose.msra.mxu0 0.0
        %1737 = vmatprep.subr.mxu0 0.0
        %1738 = vmatpush1.xpose.msra.mxu0 0.0
        %1739 = vmatprep.subr.mxu0 0.0
        %1740 = vmatpush1.xpose.msra.mxu0 0.0
        %1741 = vmatprep.subr.mxu0 0.0
        %1742 = vmatpush1.xpose.msra.mxu0 0.0
        %1743 = vmatprep.subr.mxu0 0.0
        %1744 = vmatpush1.xpose.msra.mxu0 0.0
        %1745 = vmatprep.subr.mxu0 0.0
        %1746 = vmatpush1.xpose.msra.mxu0 0.0
        %1747 = vmatprep.subr.mxu0 0.0
        %1748 = vmatpush1.xpose.msra.mxu0 0.0
        %1749 = vmatprep.subr.mxu0 0.0
        %1750 = vmatpush1.xpose.msra.mxu0 0.0
        %1751 = vmatprep.subr.mxu0 0.0
        %1752 = vmatpush1.xpose.msra.mxu0 0.0
        %1753 = vmatprep.subr.mxu0 0.0
        %1754 = vmatpush1.xpose.msra.mxu0 0.0
        %1755 = vmatprep.subr.mxu0 0.0
        %1756 = vmatpush1.xpose.msra.mxu0 0.0
        %1757 = vmatprep.subr.mxu0 0.0
        %1758 = vmatpush1.xpose.msra.mxu0 0.0
        %1759 = vmatprep.subr.mxu0 0.0
        %1760 = vmatpush1.xpose.msra.mxu0 0.0
        %1761 = vmatprep.subr.mxu0 0.0
        %1762 = vmatpush1.xpose.msra.mxu0 0.0
        %1763 = vmatprep.mubr.f32.mxu0 0.0
        %1764 = vmatmul.mubr.f32.gmra.mrb[0].mxu0 %v1695
        %v1765 = vpop.f32.mrb[0].mxu0
        %v1766 = vadd.f32 0.0, %v1765
        %v1767 = vpop.f32.mrb[0].mxu0
        %1768 = vdwg.mxu0
        %v1769 = vsel %vm1275, %v1766, -inf
        %1770 = vmax.xlane.f32.xlu0 %v1769
        %v1771 = vpop.xlane.xlu0 %1770
        %v1772 = vsub.f32 %v1766, %v1771
        %v1773 = vmul.f32 %v1772, 1.442695
        %v1774 = vpow.pop %v1773
        %v1775 = vsel %vm1275, %v1774, 0.0
        %1776 = vadd.xlane.f32.xlu0 %v1775
        %v1777 = vpop.xlane.xlu0 %1776
        %v1778 = vrcp.pop %v1777
        %v1779 = vmul.f32 %v1774, %v1778
        %1780 = vrot.lane.b32.xlu0 %v1186, 116
        %v1781 = vpop.permute.xlu0 %1780
        %v1784 = vsel %vm1275, %v1779, 0
        %1786 = vmatprep.subr.mxu0 0.0
        %1787 = vmatpush1.msra.mxu0 %v1781
        %1788 = vmatprep.subr.mxu0 0.0
        %1789 = vmatpush1.msra.mxu0 0.0
        %1790 = vmatprep.subr.mxu0 0.0
        %1791 = vmatpush1.msra.mxu0 0.0
        %1792 = vmatprep.subr.mxu0 0.0
        %1793 = vmatpush1.msra.mxu0 0.0
        %1794 = vmatprep.subr.mxu0 0.0
        %1795 = vmatpush1.msra.mxu0 0.0
        %1796 = vmatprep.subr.mxu0 0.0
        %1797 = vmatpush1.msra.mxu0 0.0
        %1798 = vmatprep.subr.mxu0 0.0
        %1799 = vmatpush1.msra.mxu0 0.0
        %1800 = vmatprep.subr.mxu0 0.0
        %1801 = vmatpush1.msra.mxu0 0.0
        %1802 = vmatprep.subr.mxu0 0.0
        %1803 = vmatpush1.msra.mxu0 0.0
        %1804 = vmatprep.subr.mxu0 0.0
        %1805 = vmatpush1.msra.mxu0 0.0
        %1806 = vmatprep.subr.mxu0 0.0
        %1807 = vmatpush1.msra.mxu0 0.0
        %1808 = vmatprep.subr.mxu0 0.0
        %1809 = vmatpush1.msra.mxu0 0.0
        %1810 = vmatprep.subr.mxu0 0.0
        %1811 = vmatpush1.msra.mxu0 0.0
        %1812 = vmatprep.subr.mxu0 0.0
        %1813 = vmatpush1.msra.mxu0 0.0
        %1814 = vmatprep.subr.mxu0 0.0
        %1815 = vmatpush1.msra.mxu0 0.0
        %1816 = vmatprep.subr.mxu0 0.0
        %1817 = vmatpush1.msra.mxu0 0.0
        %1818 = vmatprep.subr.mxu0 0.0
        %1819 = vmatpush1.msra.mxu0 0.0
        %1820 = vmatprep.subr.mxu0 0.0
        %1821 = vmatpush1.msra.mxu0 0.0
        %1822 = vmatprep.subr.mxu0 0.0
        %1823 = vmatpush1.msra.mxu0 0.0
        %1824 = vmatprep.subr.mxu0 0.0
        %1825 = vmatpush1.msra.mxu0 0.0
        %1826 = vmatprep.subr.mxu0 0.0
        %1827 = vmatpush1.msra.mxu0 0.0
        %1828 = vmatprep.subr.mxu0 0.0
        %1829 = vmatpush1.msra.mxu0 0.0
        %1830 = vmatprep.subr.mxu0 0.0
        %1831 = vmatpush1.msra.mxu0 0.0
        %1832 = vmatprep.subr.mxu0 0.0
        %1833 = vmatpush1.msra.mxu0 0.0
        %1834 = vmatprep.subr.mxu0 0.0
        %1835 = vmatpush1.msra.mxu0 0.0
        %1836 = vmatprep.subr.mxu0 0.0
        %1837 = vmatpush1.msra.mxu0 0.0
        %1838 = vmatprep.subr.mxu0 0.0
        %1839 = vmatpush1.msra.mxu0 0.0
        %1840 = vmatprep.subr.mxu0 0.0
        %1841 = vmatpush1.msra.mxu0 0.0
        %1842 = vmatprep.subr.mxu0 0.0
        %1843 = vmatpush1.msra.mxu0 0.0
        %1844 = vmatprep.subr.mxu0 0.0
        %1845 = vmatpush1.msra.mxu0 0.0
        %1846 = vmatprep.subr.mxu0 0.0
        %1847 = vmatpush1.msra.mxu0 0.0
        %1848 = vmatprep.subr.mxu0 0.0
        %1849 = vmatpush1.msra.mxu0 0.0
        %1850 = vmatprep.mubr.f32.mxu0 0.0
        %1851 = vmatmul.mubr.f32.gmra.mrb[0].mxu0 %v1784
        %v1852 = vpop.f32.mrb[0].mxu0
        %v1853 = vadd.f32 0.0, %v1852
        %v1854 = vpop.f32.mrb[0].mxu0
        %1855 = vdwg.mxu0
        %1856 = vrot.lane.b32.xlu0 %v1187, 112
        %v1857 = vpop.permute.xlu0 %1856
        %1858 = vrot.lane.b32.xlu0 %v1185, 48
        %v1859 = vpop.permute.xlu0 %1858
        %v1860 = vsel %vm1199, %v1857, 0
        %v1862 = vsel %vm1199, %v1859, 0
        %1864 = vmatprep.subr.mxu0 0.0
        %1865 = vmatpush1.xpose.msra.mxu0 %v1862
        %1866 = vmatprep.subr.mxu0 0.0
        %1867 = vmatpush1.xpose.msra.mxu0 0.0
        %1868 = vmatprep.subr.mxu0 0.0
        %1869 = vmatpush1.xpose.msra.mxu0 0.0
        %1870 = vmatprep.subr.mxu0 0.0
        %1871 = vmatpush1.xpose.msra.mxu0 0.0
        %1872 = vmatprep.subr.mxu0 0.0
        %1873 = vmatpush1.xpose.msra.mxu0 0.0
        %1874 = vmatprep.subr.mxu0 0.0
        %1875 = vmatpush1.xpose.msra.mxu0 0.0
        %1876 = vmatprep.subr.mxu0 0.0
        %1877 = vmatpush1.xpose.msra.mxu0 0.0
        %1878 = vmatprep.subr.mxu0 0.0
        %1879 = vmatpush1.xpose.msra.mxu0 0.0
        %1880 = vmatprep.subr.mxu0 0.0
        %1881 = vmatpush1.xpose.msra.mxu0 0.0
        %1882 = vmatprep.subr.mxu0 0.0
        %1883 = vmatpush1.xpose.msra.mxu0 0.0
        %1884 = vmatprep.subr.mxu0 0.0
        %1885 = vmatpush1.xpose.msra.mxu0 0.0
        %1886 = vmatprep.subr.mxu0 0.0
        %1887 = vmatpush1.xpose.msra.mxu0 0.0
        %1888 = vmatprep.subr.mxu0 0.0
        %1889 = vmatpush1.xpose.msra.mxu0 0.0
        %1890 = vmatprep.subr.mxu0 0.0
        %1891 = vmatpush1.xpose.msra.mxu0 0.0
        %1892 = vmatprep.subr.mxu0 0.0
        %1893 = vmatpush1.xpose.msra.mxu0 0.0
        %1894 = vmatprep.subr.mxu0 0.0
        %1895 = vmatpush1.xpose.msra.mxu0 0.0
        %1896 = vmatprep.subr.mxu0 0.0
        %1897 = vmatpush1.xpose.msra.mxu0 0.0
        %1898 = vmatprep.subr.mxu0 0.0
        %1899 = vmatpush1.xpose.msra.mxu0 0.0
        %1900 = vmatprep.subr.mxu0 0.0
        %1901 = vmatpush1.xpose.msra.mxu0 0.0
        %1902 = vmatprep.subr.mxu0 0.0
        %1903 = vmatpush1.xpose.msra.mxu0 0.0
        %1904 = vmatprep.subr.mxu0 0.0
        %1905 = vmatpush1.xpose.msra.mxu0 0.0
        %1906 = vmatprep.subr.mxu0 0.0
        %1907 = vmatpush1.xpose.msra.mxu0 0.0
        %1908 = vmatprep.subr.mxu0 0.0
        %1909 = vmatpush1.xpose.msra.mxu0 0.0
        %1910 = vmatprep.subr.mxu0 0.0
        %1911 = vmatpush1.xpose.msra.mxu0 0.0
        %1912 = vmatprep.subr.mxu0 0.0
        %1913 = vmatpush1.xpose.msra.mxu0 0.0
        %1914 = vmatprep.subr.mxu0 0.0
        %1915 = vmatpush1.xpose.msra.mxu0 0.0
        %1916 = vmatprep.subr.mxu0 0.0
        %1917 = vmatpush1.xpose.msra.mxu0 0.0
        %1918 = vmatprep.subr.mxu0 0.0
        %1919 = vmatpush1.xpose.msra.mxu0 0.0
        %1920 = vmatprep.subr.mxu0 0.0
        %1921 = vmatpush1.xpose.msra.mxu0 0.0
        %1922 = vmatprep.subr.mxu0 0.0
        %1923 = vmatpush1.xpose.msra.mxu0 0.0
        %1924 = vmatprep.subr.mxu0 0.0
        %1925 = vmatpush1.xpose.msra.mxu0 0.0
        %1926 = vmatprep.subr.mxu0 0.0
        %1927 = vmatpush1.xpose.msra.mxu0 0.0
        %1928 = vmatprep.mubr.f32.mxu0 0.0
        %1929 = vmatmul.mubr.f32.gmra.mrb[0].mxu0 %v1860
        %v1930 = vpop.f32.mrb[0].mxu0
        %v1931 = vadd.f32 0.0, %v1930
        %v1932 = vpop.f32.mrb[0].mxu0
        %1933 = vdwg.mxu0
        %v1934 = vsel %vm1275, %v1931, -inf
        %1935 = vmax.xlane.f32.xlu0 %v1934
        %v1936 = vpop.xlane.xlu0 %1935
        %v1937 = vsub.f32 %v1931, %v1936
        %v1938 = vmul.f32 %v1937, 1.442695
        %v1939 = vpow.pop %v1938
        %v1940 = vsel %vm1275, %v1939, 0.0
        %1941 = vadd.xlane.f32.xlu0 %v1940
        %v1942 = vpop.xlane.xlu0 %1941
        %v1943 = vrcp.pop %v1942
        %v1944 = vmul.f32 %v1939, %v1943
        %1945 = vrot.lane.b32.xlu0 %v1186, 112
        %v1946 = vpop.permute.xlu0 %1945
        %v1949 = vsel %vm1275, %v1944, 0
        %1951 = vmatprep.subr.mxu0 0.0
        %1952 = vmatpush1.msra.mxu0 %v1946
        %1953 = vmatprep.subr.mxu0 0.0
        %1954 = vmatpush1.msra.mxu0 0.0
        %1955 = vmatprep.subr.mxu0 0.0
        %1956 = vmatpush1.msra.mxu0 0.0
        %1957 = vmatprep.subr.mxu0 0.0
        %1958 = vmatpush1.msra.mxu0 0.0
        %1959 = vmatprep.subr.mxu0 0.0
        %1960 = vmatpush1.msra.mxu0 0.0
        %1961 = vmatprep.subr.mxu0 0.0
        %1962 = vmatpush1.msra.mxu0 0.0
        %1963 = vmatprep.subr.mxu0 0.0
        %1964 = vmatpush1.msra.mxu0 0.0
        %1965 = vmatprep.subr.mxu0 0.0
        %1966 = vmatpush1.msra.mxu0 0.0
        %1967 = vmatprep.subr.mxu0 0.0
        %1968 = vmatpush1.msra.mxu0 0.0
        %1969 = vmatprep.subr.mxu0 0.0
        %1970 = vmatpush1.msra.mxu0 0.0
        %1971 = vmatprep.subr.mxu0 0.0
        %1972 = vmatpush1.msra.mxu0 0.0
        %1973 = vmatprep.subr.mxu0 0.0
        %1974 = vmatpush1.msra.mxu0 0.0
        %1975 = vmatprep.subr.mxu0 0.0
        %1976 = vmatpush1.msra.mxu0 0.0
        %1977 = vmatprep.subr.mxu0 0.0
        %1978 = vmatpush1.msra.mxu0 0.0
        %1979 = vmatprep.subr.mxu0 0.0
        %1980 = vmatpush1.msra.mxu0 0.0
        %1981 = vmatprep.subr.mxu0 0.0
        %1982 = vmatpush1.msra.mxu0 0.0
        %1983 = vmatprep.subr.mxu0 0.0
        %1984 = vmatpush1.msra.mxu0 0.0
        %1985 = vmatprep.subr.mxu0 0.0
        %1986 = vmatpush1.msra.mxu0 0.0
        %1987 = vmatprep.subr.mxu0 0.0
        %1988 = vmatpush1.msra.mxu0 0.0
        %1989 = vmatprep.subr.mxu0 0.0
        %1990 = vmatpush1.msra.mxu0 0.0
        %1991 = vmatprep.subr.mxu0 0.0
        %1992 = vmatpush1.msra.mxu0 0.0
        %1993 = vmatprep.subr.mxu0 0.0
        %1994 = vmatpush1.msra.mxu0 0.0
        %1995 = vmatprep.subr.mxu0 0.0
        %1996 = vmatpush1.msra.mxu0 0.0
        %1997 = vmatprep.subr.mxu0 0.0
        %1998 = vmatpush1.msra.mxu0 0.0
        %1999 = vmatprep.subr.mxu0 0.0
        %2000 = vmatpush1.msra.mxu0 0.0
        %2001 = vmatprep.subr.mxu0 0.0
        %2002 = vmatpush1.msra.mxu0 0.0
        %2003 = vmatprep.subr.mxu0 0.0
        %2004 = vmatpush1.msra.mxu0 0.0
        %2005 = vmatprep.subr.mxu0 0.0
        %2006 = vmatpush1.msra.mxu0 0.0
        %2007 = vmatprep.subr.mxu0 0.0
        %2008 = vmatpush1.msra.mxu0 0.0
        %2009 = vmatprep.subr.mxu0 0.0
        %2010 = vmatpush1.msra.mxu0 0.0
        %2011 = vmatprep.subr.mxu0 0.0
        %2012 = vmatpush1.msra.mxu0 0.0
        %2013 = vmatprep.subr.mxu0 0.0
        %2014 = vmatpush1.msra.mxu0 0.0
        %2015 = vmatprep.mubr.f32.mxu0 0.0
        %2016 = vmatmul.mubr.f32.gmra.mrb[0].mxu0 %v1949
        %v2017 = vpop.f32.mrb[0].mxu0
        %v2018 = vadd.f32 0.0, %v2017
        %v2019 = vpop.f32.mrb[0].mxu0
        %2020 = vdwg.mxu0
        %v2022 = vsel %vm1199, %v2018, 0
        %v2025 = vsel %vm1184, %v1190, 0
        %2027 = vmatprep.subr.mxu0 0.0
        %2028 = vmatpush1.msra.mxu0 %v2025
        %2029 = vmatprep.subr.mxu0 0.0
        %2030 = vmatpush1.msra.mxu0 0.0
        %2031 = vmatprep.subr.mxu0 0.0
        %2032 = vmatpush1.msra.mxu0 0.0
        %2033 = vmatprep.subr.mxu0 0.0
        %2034 = vmatpush1.msra.mxu0 0.0
        %2035 = vmatprep.subr.mxu0 0.0
        %2036 = vmatpush1.msra.mxu0 0.0
        %2037 = vmatprep.subr.mxu0 0.0
        %2038 = vmatpush1.msra.mxu0 0.0
        %2039 = vmatprep.subr.mxu0 0.0
        %2040 = vmatpush1.msra.mxu0 0.0
        %2041 = vmatprep.subr.mxu0 0.0
        %2042 = vmatpush1.msra.mxu0 0.0
        %2043 = vmatprep.subr.mxu0 0.0
        %2044 = vmatpush1.msra.mxu0 0.0
        %2045 = vmatprep.subr.mxu0 0.0
        %2046 = vmatpush1.msra.mxu0 0.0
        %2047 = vmatprep.subr.mxu0 0.0
        %2048 = vmatpush1.msra.mxu0 0.0
        %2049 = vmatprep.subr.mxu0 0.0
        %2050 = vmatpush1.msra.mxu0 0.0
        %2051 = vmatprep.subr.mxu0 0.0
        %2052 = vmatpush1.msra.mxu0 0.0
        %2053 = vmatprep.subr.mxu0 0.0
        %2054 = vmatpush1.msra.mxu0 0.0
        %2055 = vmatprep.subr.mxu0 0.0
        %2056 = vmatpush1.msra.mxu0 0.0
        %2057 = vmatprep.subr.mxu0 0.0
        %2058 = vmatpush1.msra.mxu0 0.0
        %2059 = vmatprep.subr.mxu0 0.0
        %2060 = vmatpush1.msra.mxu0 0.0
        %2061 = vmatprep.subr.mxu0 0.0
        %2062 = vmatpush1.msra.mxu0 0.0
        %2063 = vmatprep.subr.mxu0 0.0
        %2064 = vmatpush1.msra.mxu0 0.0
        %2065 = vmatprep.subr.mxu0 0.0
        %2066 = vmatpush1.msra.mxu0 0.0
        %2067 = vmatprep.subr.mxu0 0.0
        %2068 = vmatpush1.msra.mxu0 0.0
        %2069 = vmatprep.subr.mxu0 0.0
        %2070 = vmatpush1.msra.mxu0 0.0
        %2071 = vmatprep.subr.mxu0 0.0
        %2072 = vmatpush1.msra.mxu0 0.0
        %2073 = vmatprep.subr.mxu0 0.0
        %2074 = vmatpush1.msra.mxu0 0.0
        %2075 = vmatprep.subr.mxu0 0.0
        %2076 = vmatpush1.msra.mxu0 0.0
        %2077 = vmatprep.subr.mxu0 0.0
        %2078 = vmatpush1.msra.mxu0 0.0
        %2079 = vmatprep.subr.mxu0 0.0
        %2080 = vmatpush1.msra.mxu0 0.0
        %2081 = vmatprep.subr.mxu0 0.0
        %2082 = vmatpush1.msra.mxu0 0.0
        %2083 = vmatprep.subr.mxu0 0.0
        %2084 = vmatpush1.msra.mxu0 0.0
        %2085 = vmatprep.subr.mxu0 0.0
        %2086 = vmatpush1.msra.mxu0 0.0
        %2087 = vmatprep.subr.mxu0 0.0
        %2088 = vmatpush1.msra.mxu0 0.0
        %2089 = vmatprep.subr.mxu0 0.0
        %2090 = vmatpush1.msra.mxu0 0.0
        %2091 = vmatprep.mubr.f32.mxu0 0.0
        %2092 = vmatmul.mubr.f32.gmra.mrb[0].mxu0 %v2022
        %v2093 = vpop.f32.mrb[0].mxu0
        %v2094 = vadd.f32 0.0, %v2093
        %v2095 = vpop.f32.mrb[0].mxu0
        %2096 = vdwg.mxu0
        %v2098 = vsel %vm1199, %v1357, 0
        %v2101 = vsel %vm1184, %v1188, 0
        %2103 = vmatprep.subr.mxu0 0.0
        %2104 = vmatpush1.msra.mxu0 %v2101
        %2105 = vmatprep.subr.mxu0 0.0
        %2106 = vmatpush1.msra.mxu0 0.0
        %2107 = vmatprep.subr.mxu0 0.0
        %2108 = vmatpush1.msra.mxu0 0.0
        %2109 = vmatprep.subr.mxu0 0.0
        %2110 = vmatpush1.msra.mxu0 0.0
        %2111 = vmatprep.subr.mxu0 0.0
        %2112 = vmatpush1.msra.mxu0 0.0
        %2113 = vmatprep.subr.mxu0 0.0
        %2114 = vmatpush1.msra.mxu0 0.0
        %2115 = vmatprep.subr.mxu0 0.0
        %2116 = vmatpush1.msra.mxu0 0.0
        %2117 = vmatprep.subr.mxu0 0.0
        %2118 = vmatpush1.msra.mxu0 0.0
        %2119 = vmatprep.subr.mxu0 0.0
        %2120 = vmatpush1.msra.mxu0 0.0
        %2121 = vmatprep.subr.mxu0 0.0
        %2122 = vmatpush1.msra.mxu0 0.0
        %2123 = vmatprep.subr.mxu0 0.0
        %2124 = vmatpush1.msra.mxu0 0.0
        %2125 = vmatprep.subr.mxu0 0.0
        %2126 = vmatpush1.msra.mxu0 0.0
        %2127 = vmatprep.subr.mxu0 0.0
        %2128 = vmatpush1.msra.mxu0 0.0
        %2129 = vmatprep.subr.mxu0 0.0
        %2130 = vmatpush1.msra.mxu0 0.0
        %2131 = vmatprep.subr.mxu0 0.0
        %2132 = vmatpush1.msra.mxu0 0.0
        %2133 = vmatprep.subr.mxu0 0.0
        %2134 = vmatpush1.msra.mxu0 0.0
        %2135 = vmatprep.subr.mxu0 0.0
        %2136 = vmatpush1.msra.mxu0 0.0
        %2137 = vmatprep.subr.mxu0 0.0
        %2138 = vmatpush1.msra.mxu0 0.0
        %2139 = vmatprep.subr.mxu0 0.0
        %2140 = vmatpush1.msra.mxu0 0.0
        %2141 = vmatprep.subr.mxu0 0.0
        %2142 = vmatpush1.msra.mxu0 0.0
        %2143 = vmatprep.subr.mxu0 0.0
        %2144 = vmatpush1.msra.mxu0 0.0
        %2145 = vmatprep.subr.mxu0 0.0
        %2146 = vmatpush1.msra.mxu0 0.0
        %2147 = vmatprep.subr.mxu0 0.0
        %2148 = vmatpush1.msra.mxu0 0.0
        %2149 = vmatprep.subr.mxu0 0.0
        %2150 = vmatpush1.msra.mxu0 0.0
        %2151 = vmatprep.subr.mxu0 0.0
        %2152 = vmatpush1.msra.mxu0 0.0
        %2153 = vmatprep.subr.mxu0 0.0
        %2154 = vmatpush1.msra.mxu0 0.0
        %2155 = vmatprep.subr.mxu0 0.0
        %2156 = vmatpush1.msra.mxu0 0.0
        %2157 = vmatprep.subr.mxu0 0.0
        %2158 = vmatpush1.msra.mxu0 0.0
        %2159 = vmatprep.subr.mxu0 0.0
        %2160 = vmatpush1.msra.mxu0 0.0
        %2161 = vmatprep.subr.mxu0 0.0
        %2162 = vmatpush1.msra.mxu0 0.0
        %2163 = vmatprep.subr.mxu0 0.0
        %2164 = vmatpush1.msra.mxu0 0.0
        %2165 = vmatprep.subr.mxu0 0.0
        %2166 = vmatpush1.msra.mxu0 0.0
        %2167 = vmatprep.mubr.f32.mxu0 0.0
        %2168 = vmatmul.mubr.f32.gmra.mrb[0].mxu0 %v2098
        %v2169 = vpop.f32.mrb[0].mxu0
        %v2170 = vadd.f32 %v2094, %v2169
        %v2171 = vpop.f32.mrb[0].mxu0
        %2172 = vdwg.mxu0
        %2173 = vrot.lane.b32.xlu0 %v1187, 108
        %v2174 = vpop.permute.xlu0 %2173
        %2175 = vrot.lane.b32.xlu0 %v1185, 44
        %v2176 = vpop.permute.xlu0 %2175
        %v2177 = vsel %vm1199, %v2174, 0
        %v2179 = vsel %vm1199, %v2176, 0
        %2181 = vmatprep.subr.mxu0 0.0
        %2182 = vmatpush1.xpose.msra.mxu0 %v2179
        %2183 = vmatprep.subr.mxu0 0.0
        %2184 = vmatpush1.xpose.msra.mxu0 0.0
        %2185 = vmatprep.subr.mxu0 0.0
        %2186 = vmatpush1.xpose.msra.mxu0 0.0
        %2187 = vmatprep.subr.mxu0 0.0
        %2188 = vmatpush1.xpose.msra.mxu0 0.0
        %2189 = vmatprep.subr.mxu0 0.0
        %2190 = vmatpush1.xpose.msra.mxu0 0.0
        %2191 = vmatprep.subr.mxu0 0.0
        %2192 = vmatpush1.xpose.msra.mxu0 0.0
        %2193 = vmatprep.subr.mxu0 0.0
        %2194 = vmatpush1.xpose.msra.mxu0 0.0
        %2195 = vmatprep.subr.mxu0 0.0
        %2196 = vmatpush1.xpose.msra.mxu0 0.0
        %2197 = vmatprep.subr.mxu0 0.0
        %2198 = vmatpush1.xpose.msra.mxu0 0.0
        %2199 = vmatprep.subr.mxu0 0.0
        %2200 = vmatpush1.xpose.msra.mxu0 0.0
        %2201 = vmatprep.subr.mxu0 0.0
        %2202 = vmatpush1.xpose.msra.mxu0 0.0
        %2203 = vmatprep.subr.mxu0 0.0
        %2204 = vmatpush1.xpose.msra.mxu0 0.0
        %2205 = vmatprep.subr.mxu0 0.0
        %2206 = vmatpush1.xpose.msra.mxu0 0.0
        %2207 = vmatprep.subr.mxu0 0.0
        %2208 = vmatpush1.xpose.msra.mxu0 0.0
        %2209 = vmatprep.subr.mxu0 0.0
        %2210 = vmatpush1.xpose.msra.mxu0 0.0
        %2211 = vmatprep.subr.mxu0 0.0
        %2212 = vmatpush1.xpose.msra.mxu0 0.0
        %2213 = vmatprep.subr.mxu0 0.0
        %2214 = vmatpush1.xpose.msra.mxu0 0.0
        %2215 = vmatprep.subr.mxu0 0.0
        %2216 = vmatpush1.xpose.msra.mxu0 0.0
        %2217 = vmatprep.subr.mxu0 0.0
        %2218 = vmatpush1.xpose.msra.mxu0 0.0
        %2219 = vmatprep.subr.mxu0 0.0
        %2220 = vmatpush1.xpose.msra.mxu0 0.0
        %2221 = vmatprep.subr.mxu0 0.0
        %2222 = vmatpush1.xpose.msra.mxu0 0.0
        %2223 = vmatprep.subr.mxu0 0.0
        %2224 = vmatpush1.xpose.msra.mxu0 0.0
        %2225 = vmatprep.subr.mxu0 0.0
        %2226 = vmatpush1.xpose.msra.mxu0 0.0
        %2227 = vmatprep.subr.mxu0 0.0
        %2228 = vmatpush1.xpose.msra.mxu0 0.0
        %2229 = vmatprep.subr.mxu0 0.0
        %2230 = vmatpush1.xpose.msra.mxu0 0.0
        %2231 = vmatprep.subr.mxu0 0.0
        %2232 = vmatpush1.xpose.msra.mxu0 0.0
        %2233 = vmatprep.subr.mxu0 0.0
        %2234 = vmatpush1.xpose.msra.mxu0 0.0
        %2235 = vmatprep.subr.mxu0 0.0
        %2236 = vmatpush1.xpose.msra.mxu0 0.0
        %2237 = vmatprep.subr.mxu0 0.0
        %2238 = vmatpush1.xpose.msra.mxu0 0.0
        %2239 = vmatprep.subr.mxu0 0.0
        %2240 = vmatpush1.xpose.msra.mxu0 0.0
        %2241 = vmatprep.subr.mxu0 0.0
        %2242 = vmatpush1.xpose.msra.mxu0 0.0
        %2243 = vmatprep.subr.mxu0 0.0
        %2244 = vmatpush1.xpose.msra.mxu0 0.0
        %2245 = vmatprep.mubr.f32.mxu0 0.0
        %2246 = vmatmul.mubr.f32.gmra.mrb[0].mxu0 %v2177
        %v2247 = vpop.f32.mrb[0].mxu0
        %v2248 = vadd.f32 0.0, %v2247
        %v2249 = vpop.f32.mrb[0].mxu0
        %2250 = vdwg.mxu0
        %v2251 = vsel %vm1275, %v2248, -inf
        %2252 = vmax.xlane.f32.xlu0 %v2251
        %v2253 = vpop.xlane.xlu0 %2252
        %v2254 = vsub.f32 %v2248, %v2253
        %v2255 = vmul.f32 %v2254, 1.442695
        %v2256 = vpow.pop %v2255
        %v2257 = vsel %vm1275, %v2256, 0.0
        %2258 = vadd.xlane.f32.xlu0 %v2257
        %v2259 = vpop.xlane.xlu0 %2258
        %v2260 = vrcp.pop %v2259
        %v2261 = vmul.f32 %v2256, %v2260
        %2262 = vrot.lane.b32.xlu0 %v1186, 108
        %v2263 = vpop.permute.xlu0 %2262
        %v2266 = vsel %vm1275, %v2261, 0
        %2268 = vmatprep.subr.mxu0 0.0
        %2269 = vmatpush1.msra.mxu0 %v2263
        %2270 = vmatprep.subr.mxu0 0.0
        %2271 = vmatpush1.msra.mxu0 0.0
        %2272 = vmatprep.subr.mxu0 0.0
        %2273 = vmatpush1.msra.mxu0 0.0
        %2274 = vmatprep.subr.mxu0 0.0
        %2275 = vmatpush1.msra.mxu0 0.0
        %2276 = vmatprep.subr.mxu0 0.0
        %2277 = vmatpush1.msra.mxu0 0.0
        %2278 = vmatprep.subr.mxu0 0.0
        %2279 = vmatpush1.msra.mxu0 0.0
        %2280 = vmatprep.subr.mxu0 0.0
        %2281 = vmatpush1.msra.mxu0 0.0
        %2282 = vmatprep.subr.mxu0 0.0
        %2283 = vmatpush1.msra.mxu0 0.0
        %2284 = vmatprep.subr.mxu0 0.0
        %2285 = vmatpush1.msra.mxu0 0.0
        %2286 = vmatprep.subr.mxu0 0.0
        %2287 = vmatpush1.msra.mxu0 0.0
        %2288 = vmatprep.subr.mxu0 0.0
        %2289 = vmatpush1.msra.mxu0 0.0
        %2290 = vmatprep.subr.mxu0 0.0
        %2291 = vmatpush1.msra.mxu0 0.0
        %2292 = vmatprep.subr.mxu0 0.0
        %2293 = vmatpush1.msra.mxu0 0.0
        %2294 = vmatprep.subr.mxu0 0.0
        %2295 = vmatpush1.msra.mxu0 0.0
        %2296 = vmatprep.subr.mxu0 0.0
        %2297 = vmatpush1.msra.mxu0 0.0
        %2298 = vmatprep.subr.mxu0 0.0
        %2299 = vmatpush1.msra.mxu0 0.0
        %2300 = vmatprep.subr.mxu0 0.0
        %2301 = vmatpush1.msra.mxu0 0.0
        %2302 = vmatprep.subr.mxu0 0.0
        %2303 = vmatpush1.msra.mxu0 0.0
        %2304 = vmatprep.subr.mxu0 0.0
        %2305 = vmatpush1.msra.mxu0 0.0
        %2306 = vmatprep.subr.mxu0 0.0
        %2307 = vmatpush1.msra.mxu0 0.0
        %2308 = vmatprep.subr.mxu0 0.0
        %2309 = vmatpush1.msra.mxu0 0.0
        %2310 = vmatprep.subr.mxu0 0.0
        %2311 = vmatpush1.msra.mxu0 0.0
        %2312 = vmatprep.subr.mxu0 0.0
        %2313 = vmatpush1.msra.mxu0 0.0
        %2314 = vmatprep.subr.mxu0 0.0
        %2315 = vmatpush1.msra.mxu0 0.0
        %2316 = vmatprep.subr.mxu0 0.0
        %2317 = vmatpush1.msra.mxu0 0.0
        %2318 = vmatprep.subr.mxu0 0.0
        %2319 = vmatpush1.msra.mxu0 0.0
        %2320 = vmatprep.subr.mxu0 0.0
        %2321 = vmatpush1.msra.mxu0 0.0
        %2322 = vmatprep.subr.mxu0 0.0
        %2323 = vmatpush1.msra.mxu0 0.0
        %2324 = vmatprep.subr.mxu0 0.0
        %2325 = vmatpush1.msra.mxu0 0.0
        %2326 = vmatprep.subr.mxu0 0.0
        %2327 = vmatpush1.msra.mxu0 0.0
        %2328 = vmatprep.subr.mxu0 0.0
        %2329 = vmatpush1.msra.mxu0 0.0
        %2330 = vmatprep.subr.mxu0 0.0
        %2331 = vmatpush1.msra.mxu0 0.0
        %2332 = vmatprep.mubr.f32.mxu0 0.0
        %2333 = vmatmul.mubr.f32.gmra.mrb[0].mxu0 %v2266
        %v2334 = vpop.f32.mrb[0].mxu0
        %v2335 = vadd.f32 0.0, %v2334
        %v2336 = vpop.f32.mrb[0].mxu0
        %2337 = vdwg.mxu0
        %v2338 = vrot.slane %v1190, 4
        %v2340 = vsel %vm1199, %v2335, 0
        %v2342 = vsel %vm1184, %v2338, 0
        %2344 = vmatprep.subr.mxu0 0.0
        %2345 = vmatpush1.msra.mxu0 %v2342
        %2346 = vmatprep.subr.mxu0 0.0
        %2347 = vmatpush1.msra.mxu0 0.0
        %2348 = vmatprep.subr.mxu0 0.0
        %2349 = vmatpush1.msra.mxu0 0.0
        %2350 = vmatprep.subr.mxu0 0.0
        %2351 = vmatpush1.msra.mxu0 0.0
        %2352 = vmatprep.subr.mxu0 0.0
        %2353 = vmatpush1.msra.mxu0 0.0
        %2354 = vmatprep.subr.mxu0 0.0
        %2355 = vmatpush1.msra.mxu0 0.0
        %2356 = vmatprep.subr.mxu0 0.0
        %2357 = vmatpush1.msra.mxu0 0.0
        %2358 = vmatprep.subr.mxu0 0.0
        %2359 = vmatpush1.msra.mxu0 0.0
        %2360 = vmatprep.subr.mxu0 0.0
        %2361 = vmatpush1.msra.mxu0 0.0
        %2362 = vmatprep.subr.mxu0 0.0
        %2363 = vmatpush1.msra.mxu0 0.0
        %2364 = vmatprep.subr.mxu0 0.0
        %2365 = vmatpush1.msra.mxu0 0.0
        %2366 = vmatprep.subr.mxu0 0.0
        %2367 = vmatpush1.msra.mxu0 0.0
        %2368 = vmatprep.subr.mxu0 0.0
        %2369 = vmatpush1.msra.mxu0 0.0
        %2370 = vmatprep.subr.mxu0 0.0
        %2371 = vmatpush1.msra.mxu0 0.0
        %2372 = vmatprep.subr.mxu0 0.0
        %2373 = vmatpush1.msra.mxu0 0.0
        %2374 = vmatprep.subr.mxu0 0.0
        %2375 = vmatpush1.msra.mxu0 0.0
        %2376 = vmatprep.subr.mxu0 0.0
        %2377 = vmatpush1.msra.mxu0 0.0
        %2378 = vmatprep.subr.mxu0 0.0
        %2379 = vmatpush1.msra.mxu0 0.0
        %2380 = vmatprep.subr.mxu0 0.0
        %2381 = vmatpush1.msra.mxu0 0.0
        %2382 = vmatprep.subr.mxu0 0.0
        %2383 = vmatpush1.msra.mxu0 0.0
        %2384 = vmatprep.subr.mxu0 0.0
        %2385 = vmatpush1.msra.mxu0 0.0
        %2386 = vmatprep.subr.mxu0 0.0
        %2387 = vmatpush1.msra.mxu0 0.0
        %2388 = vmatprep.subr.mxu0 0.0
        %2389 = vmatpush1.msra.mxu0 0.0
        %2390 = vmatprep.subr.mxu0 0.0
        %2391 = vmatpush1.msra.mxu0 0.0
        %2392 = vmatprep.subr.mxu0 0.0
        %2393 = vmatpush1.msra.mxu0 0.0
        %2394 = vmatprep.subr.mxu0 0.0
        %2395 = vmatpush1.msra.mxu0 0.0
        %2396 = vmatprep.subr.mxu0 0.0
        %2397 = vmatpush1.msra.mxu0 0.0
        %2398 = vmatprep.subr.mxu0 0.0
        %2399 = vmatpush1.msra.mxu0 0.0
        %2400 = vmatprep.subr.mxu0 0.0
        %2401 = vmatpush1.msra.mxu0 0.0
        %2402 = vmatprep.subr.mxu0 0.0
        %2403 = vmatpush1.msra.mxu0 0.0
        %2404 = vmatprep.subr.mxu0 0.0
        %2405 = vmatpush1.msra.mxu0 0.0
        %2406 = vmatprep.subr.mxu0 0.0
        %2407 = vmatpush1.msra.mxu0 0.0
        %2408 = vmatprep.mubr.f32.mxu0 0.0
        %2409 = vmatmul.mubr.f32.gmra.mrb[0].mxu0 %v2340
        %v2410 = vpop.f32.mrb[0].mxu0
        %v2411 = vadd.f32 0.0, %v2410
        %v2412 = vpop.f32.mrb[0].mxu0
        %2413 = vdwg.mxu0
        %v2414 = vrot.slane %v1188, 4
        %v2416 = vsel %vm1199, %v1523, 0
        %v2418 = vsel %vm1184, %v2414, 0
        %2420 = vmatprep.subr.mxu0 0.0
        %2421 = vmatpush1.msra.mxu0 %v2418
        %2422 = vmatprep.subr.mxu0 0.0
        %2423 = vmatpush1.msra.mxu0 0.0
        %2424 = vmatprep.subr.mxu0 0.0
        %2425 = vmatpush1.msra.mxu0 0.0
        %2426 = vmatprep.subr.mxu0 0.0
        %2427 = vmatpush1.msra.mxu0 0.0
        %2428 = vmatprep.subr.mxu0 0.0
        %2429 = vmatpush1.msra.mxu0 0.0
        %2430 = vmatprep.subr.mxu0 0.0
        %2431 = vmatpush1.msra.mxu0 0.0
        %2432 = vmatprep.subr.mxu0 0.0
        %2433 = vmatpush1.msra.mxu0 0.0
        %2434 = vmatprep.subr.mxu0 0.0
        %2435 = vmatpush1.msra.mxu0 0.0
        %2436 = vmatprep.subr.mxu0 0.0
        %2437 = vmatpush1.msra.mxu0 0.0
        %2438 = vmatprep.subr.mxu0 0.0
        %2439 = vmatpush1.msra.mxu0 0.0
        %2440 = vmatprep.subr.mxu0 0.0
        %2441 = vmatpush1.msra.mxu0 0.0
        %2442 = vmatprep.subr.mxu0 0.0
        %2443 = vmatpush1.msra.mxu0 0.0
        %2444 = vmatprep.subr.mxu0 0.0
        %2445 = vmatpush1.msra.mxu0 0.0
        %2446 = vmatprep.subr.mxu0 0.0
        %2447 = vmatpush1.msra.mxu0 0.0
        %2448 = vmatprep.subr.mxu0 0.0
        %2449 = vmatpush1.msra.mxu0 0.0
        %2450 = vmatprep.subr.mxu0 0.0
        %2451 = vmatpush1.msra.mxu0 0.0
        %2452 = vmatprep.subr.mxu0 0.0
        %2453 = vmatpush1.msra.mxu0 0.0
        %2454 = vmatprep.subr.mxu0 0.0
        %2455 = vmatpush1.msra.mxu0 0.0
        %2456 = vmatprep.subr.mxu0 0.0
        %2457 = vmatpush1.msra.mxu0 0.0
        %2458 = vmatprep.subr.mxu0 0.0
        %2459 = vmatpush1.msra.mxu0 0.0
        %2460 = vmatprep.subr.mxu0 0.0
        %2461 = vmatpush1.msra.mxu0 0.0
        %2462 = vmatprep.subr.mxu0 0.0
        %2463 = vmatpush1.msra.mxu0 0.0
        %2464 = vmatprep.subr.mxu0 0.0
        %2465 = vmatpush1.msra.mxu0 0.0
        %2466 = vmatprep.subr.mxu0 0.0
        %2467 = vmatpush1.msra.mxu0 0.0
        %2468 = vmatprep.subr.mxu0 0.0
        %2469 = vmatpush1.msra.mxu0 0.0
        %2470 = vmatprep.subr.mxu0 0.0
        %2471 = vmatpush1.msra.mxu0 0.0
        %2472 = vmatprep.subr.mxu0 0.0
        %2473 = vmatpush1.msra.mxu0 0.0
        %2474 = vmatprep.subr.mxu0 0.0
        %2475 = vmatpush1.msra.mxu0 0.0
        %2476 = vmatprep.subr.mxu0 0.0
        %2477 = vmatpush1.msra.mxu0 0.0
        %2478 = vmatprep.subr.mxu0 0.0
        %2479 = vmatpush1.msra.mxu0 0.0
        %2480 = vmatprep.subr.mxu0 0.0
        %2481 = vmatpush1.msra.mxu0 0.0
        %2482 = vmatprep.subr.mxu0 0.0
        %2483 = vmatpush1.msra.mxu0 0.0
        %2484 = vmatprep.mubr.f32.mxu0 0.0
        %2485 = vmatmul.mubr.f32.gmra.mrb[0].mxu0 %v2416
        %v2486 = vpop.f32.mrb[0].mxu0
        %v2487 = vadd.f32 %v2411, %v2486
        %v2488 = vpop.f32.mrb[0].mxu0
        %2489 = vdwg.mxu0
        %2490 = vrot.lane.b32.xlu0 %v1187, 104
        %v2491 = vpop.permute.xlu0 %2490
        %2492 = vrot.lane.b32.xlu0 %v1185, 40
        %v2493 = vpop.permute.xlu0 %2492
        %v2494 = vsel %vm1199, %v2491, 0
        %v2496 = vsel %vm1199, %v2493, 0
        %2498 = vmatprep.subr.mxu0 0.0
        %2499 = vmatpush1.xpose.msra.mxu0 %v2496
        %2500 = vmatprep.subr.mxu0 0.0
        %2501 = vmatpush1.xpose.msra.mxu0 0.0
        %2502 = vmatprep.subr.mxu0 0.0
        %2503 = vmatpush1.xpose.msra.mxu0 0.0
        %2504 = vmatprep.subr.mxu0 0.0
        %2505 = vmatpush1.xpose.msra.mxu0 0.0
        %2506 = vmatprep.subr.mxu0 0.0
        %2507 = vmatpush1.xpose.msra.mxu0 0.0
        %2508 = vmatprep.subr.mxu0 0.0
        %2509 = vmatpush1.xpose.msra.mxu0 0.0
        %2510 = vmatprep.subr.mxu0 0.0
        %2511 = vmatpush1.xpose.msra.mxu0 0.0
        %2512 = vmatprep.subr.mxu0 0.0
        %2513 = vmatpush1.xpose.msra.mxu0 0.0
        %2514 = vmatprep.subr.mxu0 0.0
        %2515 = vmatpush1.xpose.msra.mxu0 0.0
        %2516 = vmatprep.subr.mxu0 0.0
        %2517 = vmatpush1.xpose.msra.mxu0 0.0
        %2518 = vmatprep.subr.mxu0 0.0
        %2519 = vmatpush1.xpose.msra.mxu0 0.0
        %2520 = vmatprep.subr.mxu0 0.0
        %2521 = vmatpush1.xpose.msra.mxu0 0.0
        %2522 = vmatprep.subr.mxu0 0.0
        %2523 = vmatpush1.xpose.msra.mxu0 0.0
        %2524 = vmatprep.subr.mxu0 0.0
        %2525 = vmatpush1.xpose.msra.mxu0 0.0
        %2526 = vmatprep.subr.mxu0 0.0
        %2527 = vmatpush1.xpose.msra.mxu0 0.0
        %2528 = vmatprep.subr.mxu0 0.0
        %2529 = vmatpush1.xpose.msra.mxu0 0.0
        %2530 = vmatprep.subr.mxu0 0.0
        %2531 = vmatpush1.xpose.msra.mxu0 0.0
        %2532 = vmatprep.subr.mxu0 0.0
        %2533 = vmatpush1.xpose.msra.mxu0 0.0
        %2534 = vmatprep.subr.mxu0 0.0
        %2535 = vmatpush1.xpose.msra.mxu0 0.0
        %2536 = vmatprep.subr.mxu0 0.0
        %2537 = vmatpush1.xpose.msra.mxu0 0.0
        %2538 = vmatprep.subr.mxu0 0.0
        %2539 = vmatpush1.xpose.msra.mxu0 0.0
        %2540 = vmatprep.subr.mxu0 0.0
        %2541 = vmatpush1.xpose.msra.mxu0 0.0
        %2542 = vmatprep.subr.mxu0 0.0
        %2543 = vmatpush1.xpose.msra.mxu0 0.0
        %2544 = vmatprep.subr.mxu0 0.0
        %2545 = vmatpush1.xpose.msra.mxu0 0.0
        %2546 = vmatprep.subr.mxu0 0.0
        %2547 = vmatpush1.xpose.msra.mxu0 0.0
        %2548 = vmatprep.subr.mxu0 0.0
        %2549 = vmatpush1.xpose.msra.mxu0 0.0
        %2550 = vmatprep.subr.mxu0 0.0
        %2551 = vmatpush1.xpose.msra.mxu0 0.0
        %2552 = vmatprep.subr.mxu0 0.0
        %2553 = vmatpush1.xpose.msra.mxu0 0.0
        %2554 = vmatprep.subr.mxu0 0.0
        %2555 = vmatpush1.xpose.msra.mxu0 0.0
        %2556 = vmatprep.subr.mxu0 0.0
        %2557 = vmatpush1.xpose.msra.mxu0 0.0
        %2558 = vmatprep.subr.mxu0 0.0
        %2559 = vmatpush1.xpose.msra.mxu0 0.0
        %2560 = vmatprep.subr.mxu0 0.0
        %2561 = vmatpush1.xpose.msra.mxu0 0.0
        %2562 = vmatprep.mubr.f32.mxu0 0.0
        %2563 = vmatmul.mubr.f32.gmra.mrb[0].mxu0 %v2494
        %v2564 = vpop.f32.mrb[0].mxu0
        %v2565 = vadd.f32 0.0, %v2564
        %v2566 = vpop.f32.mrb[0].mxu0
        %2567 = vdwg.mxu0
        %v2568 = vsel %vm1275, %v2565, -inf
        %2569 = vmax.xlane.f32.xlu0 %v2568
        %v2570 = vpop.xlane.xlu0 %2569
        %v2571 = vsub.f32 %v2565, %v2570
        %v2572 = vmul.f32 %v2571, 1.442695
        %v2573 = vpow.pop %v2572
        %v2574 = vsel %vm1275, %v2573, 0.0
        %2575 = vadd.xlane.f32.xlu0 %v2574
        %v2576 = vpop.xlane.xlu0 %2575
        %v2577 = vrcp.pop %v2576
        %v2578 = vmul.f32 %v2573, %v2577
        %2579 = vrot.lane.b32.xlu0 %v1186, 104
        %v2580 = vpop.permute.xlu0 %2579
        %v2583 = vsel %vm1275, %v2578, 0
        %2585 = vmatprep.subr.mxu0 0.0
        %2586 = vmatpush1.msra.mxu0 %v2580
        %2587 = vmatprep.subr.mxu0 0.0
        %2588 = vmatpush1.msra.mxu0 0.0
        %2589 = vmatprep.subr.mxu0 0.0
        %2590 = vmatpush1.msra.mxu0 0.0
        %2591 = vmatprep.subr.mxu0 0.0
        %2592 = vmatpush1.msra.mxu0 0.0
        %2593 = vmatprep.subr.mxu0 0.0
        %2594 = vmatpush1.msra.mxu0 0.0
        %2595 = vmatprep.subr.mxu0 0.0
        %2596 = vmatpush1.msra.mxu0 0.0
        %2597 = vmatprep.subr.mxu0 0.0
        %2598 = vmatpush1.msra.mxu0 0.0
        %2599 = vmatprep.subr.mxu0 0.0
        %2600 = vmatpush1.msra.mxu0 0.0
        %2601 = vmatprep.subr.mxu0 0.0
        %2602 = vmatpush1.msra.mxu0 0.0
        %2603 = vmatprep.subr.mxu0 0.0
        %2604 = vmatpush1.msra.mxu0 0.0
        %2605 = vmatprep.subr.mxu0 0.0
        %2606 = vmatpush1.msra.mxu0 0.0
        %2607 = vmatprep.subr.mxu0 0.0
        %2608 = vmatpush1.msra.mxu0 0.0
        %2609 = vmatprep.subr.mxu0 0.0
        %2610 = vmatpush1.msra.mxu0 0.0
        %2611 = vmatprep.subr.mxu0 0.0
        %2612 = vmatpush1.msra.mxu0 0.0
        %2613 = vmatprep.subr.mxu0 0.0
        %2614 = vmatpush1.msra.mxu0 0.0
        %2615 = vmatprep.subr.mxu0 0.0
        %2616 = vmatpush1.msra.mxu0 0.0
        %2617 = vmatprep.subr.mxu0 0.0
        %2618 = vmatpush1.msra.mxu0 0.0
        %2619 = vmatprep.subr.mxu0 0.0
        %2620 = vmatpush1.msra.mxu0 0.0
        %2621 = vmatprep.subr.mxu0 0.0
        %2622 = vmatpush1.msra.mxu0 0.0
        %2623 = vmatprep.subr.mxu0 0.0
        %2624 = vmatpush1.msra.mxu0 0.0
        %2625 = vmatprep.subr.mxu0 0.0
        %2626 = vmatpush1.msra.mxu0 0.0
        %2627 = vmatprep.subr.mxu0 0.0
        %2628 = vmatpush1.msra.mxu0 0.0
        %2629 = vmatprep.subr.mxu0 0.0
        %2630 = vmatpush1.msra.mxu0 0.0
        %2631 = vmatprep.subr.mxu0 0.0
        %2632 = vmatpush1.msra.mxu0 0.0
        %2633 = vmatprep.subr.mxu0 0.0
        %2634 = vmatpush1.msra.mxu0 0.0
        %2635 = vmatprep.subr.mxu0 0.0
        %2636 = vmatpush1.msra.mxu0 0.0
        %2637 = vmatprep.subr.mxu0 0.0
        %2638 = vmatpush1.msra.mxu0 0.0
        %2639 = vmatprep.subr.mxu0 0.0
        %2640 = vmatpush1.msra.mxu0 0.0
        %2641 = vmatprep.subr.mxu0 0.0
        %2642 = vmatpush1.msra.mxu0 0.0
        %2643 = vmatprep.subr.mxu0 0.0
        %2644 = vmatpush1.msra.mxu0 0.0
        %2645 = vmatprep.subr.mxu0 0.0
        %2646 = vmatpush1.msra.mxu0 0.0
        %2647 = vmatprep.subr.mxu0 0.0
        %2648 = vmatpush1.msra.mxu0 0.0
        %2649 = vmatprep.mubr.f32.mxu0 0.0
        %2650 = vmatmul.mubr.f32.gmra.mrb[0].mxu0 %v2583
        %v2651 = vpop.f32.mrb[0].mxu0
        %v2652 = vadd.f32 0.0, %v2651
        %v2653 = vpop.f32.mrb[0].mxu0
        %2654 = vdwg.mxu0
        %v2656 = vsel %vm1199, %v2652, 0
        %v2659 = vsel %vm1184, %v1191, 0
        %2661 = vmatprep.subr.mxu0 0.0
        %2662 = vmatpush1.msra.mxu0 %v2659
        %2663 = vmatprep.subr.mxu0 0.0
        %2664 = vmatpush1.msra.mxu0 0.0
        %2665 = vmatprep.subr.mxu0 0.0
        %2666 = vmatpush1.msra.mxu0 0.0
        %2667 = vmatprep.subr.mxu0 0.0
        %2668 = vmatpush1.msra.mxu0 0.0
        %2669 = vmatprep.subr.mxu0 0.0
        %2670 = vmatpush1.msra.mxu0 0.0
        %2671 = vmatprep.subr.mxu0 0.0
        %2672 = vmatpush1.msra.mxu0 0.0
        %2673 = vmatprep.subr.mxu0 0.0
        %2674 = vmatpush1.msra.mxu0 0.0
        %2675 = vmatprep.subr.mxu0 0.0
        %2676 = vmatpush1.msra.mxu0 0.0
        %2677 = vmatprep.subr.mxu0 0.0
        %2678 = vmatpush1.msra.mxu0 0.0
        %2679 = vmatprep.subr.mxu0 0.0
        %2680 = vmatpush1.msra.mxu0 0.0
        %2681 = vmatprep.subr.mxu0 0.0
        %2682 = vmatpush1.msra.mxu0 0.0
        %2683 = vmatprep.subr.mxu0 0.0
        %2684 = vmatpush1.msra.mxu0 0.0
        %2685 = vmatprep.subr.mxu0 0.0
        %2686 = vmatpush1.msra.mxu0 0.0
        %2687 = vmatprep.subr.mxu0 0.0
        %2688 = vmatpush1.msra.mxu0 0.0
        %2689 = vmatprep.subr.mxu0 0.0
        %2690 = vmatpush1.msra.mxu0 0.0
        %2691 = vmatprep.subr.mxu0 0.0
        %2692 = vmatpush1.msra.mxu0 0.0
        %2693 = vmatprep.subr.mxu0 0.0
        %2694 = vmatpush1.msra.mxu0 0.0
        %2695 = vmatprep.subr.mxu0 0.0
        %2696 = vmatpush1.msra.mxu0 0.0
        %2697 = vmatprep.subr.mxu0 0.0
        %2698 = vmatpush1.msra.mxu0 0.0
        %2699 = vmatprep.subr.mxu0 0.0
        %2700 = vmatpush1.msra.mxu0 0.0
        %2701 = vmatprep.subr.mxu0 0.0
        %2702 = vmatpush1.msra.mxu0 0.0
        %2703 = vmatprep.subr.mxu0 0.0
        %2704 = vmatpush1.msra.mxu0 0.0
        %2705 = vmatprep.subr.mxu0 0.0
        %2706 = vmatpush1.msra.mxu0 0.0
        %2707 = vmatprep.subr.mxu0 0.0
        %2708 = vmatpush1.msra.mxu0 0.0
        %2709 = vmatprep.subr.mxu0 0.0
        %2710 = vmatpush1.msra.mxu0 0.0
        %2711 = vmatprep.subr.mxu0 0.0
        %2712 = vmatpush1.msra.mxu0 0.0
        %2713 = vmatprep.subr.mxu0 0.0
        %2714 = vmatpush1.msra.mxu0 0.0
        %2715 = vmatprep.subr.mxu0 0.0
        %2716 = vmatpush1.msra.mxu0 0.0
        %2717 = vmatprep.subr.mxu0 0.0
        %2718 = vmatpush1.msra.mxu0 0.0
        %2719 = vmatprep.subr.mxu0 0.0
        %2720 = vmatpush1.msra.mxu0 0.0
        %2721 = vmatprep.subr.mxu0 0.0
        %2722 = vmatpush1.msra.mxu0 0.0
        %2723 = vmatprep.subr.mxu0 0.0
        %2724 = vmatpush1.msra.mxu0 0.0
        %2725 = vmatprep.mubr.f32.mxu0 0.0
        %2726 = vmatmul.mubr.f32.gmra.mrb[0].mxu0 %v2656
        %v2727 = vpop.f32.mrb[0].mxu0
        %v2728 = vadd.f32 0.0, %v2727
        %v2729 = vpop.f32.mrb[0].mxu0
        %2730 = vdwg.mxu0
        %v2732 = vsel %vm1199, %v1688, 0
        %v2735 = vsel %vm1184, %v1189, 0
        %2737 = vmatprep.subr.mxu0 0.0
        %2738 = vmatpush1.msra.mxu0 %v2735
        %2739 = vmatprep.subr.mxu0 0.0
        %2740 = vmatpush1.msra.mxu0 0.0
        %2741 = vmatprep.subr.mxu0 0.0
        %2742 = vmatpush1.msra.mxu0 0.0
        %2743 = vmatprep.subr.mxu0 0.0
        %2744 = vmatpush1.msra.mxu0 0.0
        %2745 = vmatprep.subr.mxu0 0.0
        %2746 = vmatpush1.msra.mxu0 0.0
        %2747 = vmatprep.subr.mxu0 0.0
        %2748 = vmatpush1.msra.mxu0 0.0
        %2749 = vmatprep.subr.mxu0 0.0
        %2750 = vmatpush1.msra.mxu0 0.0
        %2751 = vmatprep.subr.mxu0 0.0
        %2752 = vmatpush1.msra.mxu0 0.0
        %2753 = vmatprep.subr.mxu0 0.0
        %2754 = vmatpush1.msra.mxu0 0.0
        %2755 = vmatprep.subr.mxu0 0.0
        %2756 = vmatpush1.msra.mxu0 0.0
        %2757 = vmatprep.subr.mxu0 0.0
        %2758 = vmatpush1.msra.mxu0 0.0
        %2759 = vmatprep.subr.mxu0 0.0
        %2760 = vmatpush1.msra.mxu0 0.0
        %2761 = vmatprep.subr.mxu0 0.0
        %2762 = vmatpush1.msra.mxu0 0.0
        %2763 = vmatprep.subr.mxu0 0.0
        %2764 = vmatpush1.msra.mxu0 0.0
        %2765 = vmatprep.subr.mxu0 0.0
        %2766 = vmatpush1.msra.mxu0 0.0
        %2767 = vmatprep.subr.mxu0 0.0
        %2768 = vmatpush1.msra.mxu0 0.0
        %2769 = vmatprep.subr.mxu0 0.0
        %2770 = vmatpush1.msra.mxu0 0.0
        %2771 = vmatprep.subr.mxu0 0.0
        %2772 = vmatpush1.msra.mxu0 0.0
        %2773 = vmatprep.subr.mxu0 0.0
        %2774 = vmatpush1.msra.mxu0 0.0
        %2775 = vmatprep.subr.mxu0 0.0
        %2776 = vmatpush1.msra.mxu0 0.0
        %2777 = vmatprep.subr.mxu0 0.0
        %2778 = vmatpush1.msra.mxu0 0.0
        %2779 = vmatprep.subr.mxu0 0.0
        %2780 = vmatpush1.msra.mxu0 0.0
        %2781 = vmatprep.subr.mxu0 0.0
        %2782 = vmatpush1.msra.mxu0 0.0
        %2783 = vmatprep.subr.mxu0 0.0
        %2784 = vmatpush1.msra.mxu0 0.0
        %2785 = vmatprep.subr.mxu0 0.0
        %2786 = vmatpush1.msra.mxu0 0.0
        %2787 = vmatprep.subr.mxu0 0.0
        %2788 = vmatpush1.msra.mxu0 0.0
        %2789 = vmatprep.subr.mxu0 0.0
        %2790 = vmatpush1.msra.mxu0 0.0
        %2791 = vmatprep.subr.mxu0 0.0
        %2792 = vmatpush1.msra.mxu0 0.0
        %2793 = vmatprep.subr.mxu0 0.0
        %2794 = vmatpush1.msra.mxu0 0.0
        %2795 = vmatprep.subr.mxu0 0.0
        %2796 = vmatpush1.msra.mxu0 0.0
        %2797 = vmatprep.subr.mxu0 0.0
        %2798 = vmatpush1.msra.mxu0 0.0
        %2799 = vmatprep.subr.mxu0 0.0
        %2800 = vmatpush1.msra.mxu0 0.0
        %2801 = vmatprep.mubr.f32.mxu0 0.0
        %2802 = vmatmul.mubr.f32.gmra.mrb[0].mxu0 %v2732
        %v2803 = vpop.f32.mrb[0].mxu0
        %v2804 = vadd.f32 %v2728, %v2803
        %v2805 = vpop.f32.mrb[0].mxu0
        %2806 = vdwg.mxu0
        %2807 = vrot.lane.b32.xlu0 %v1187, 100
        %v2808 = vpop.permute.xlu0 %2807
        %2809 = vrot.lane.b32.xlu0 %v1185, 36
        %v2810 = vpop.permute.xlu0 %2809
        %v2811 = vsel %vm1199, %v2808, 0
        %v2813 = vsel %vm1199, %v2810, 0
        %2815 = vmatprep.subr.mxu0 0.0
        %2816 = vmatpush1.xpose.msra.mxu0 %v2813
        %2817 = vmatprep.subr.mxu0 0.0
        %2818 = vmatpush1.xpose.msra.mxu0 0.0
        %2819 = vmatprep.subr.mxu0 0.0
        %2820 = vmatpush1.xpose.msra.mxu0 0.0
        %2821 = vmatprep.subr.mxu0 0.0
        %2822 = vmatpush1.xpose.msra.mxu0 0.0
        %2823 = vmatprep.subr.mxu0 0.0
        %2824 = vmatpush1.xpose.msra.mxu0 0.0
        %2825 = vmatprep.subr.mxu0 0.0
        %2826 = vmatpush1.xpose.msra.mxu0 0.0
        %2827 = vmatprep.subr.mxu0 0.0
        %2828 = vmatpush1.xpose.msra.mxu0 0.0
        %2829 = vmatprep.subr.mxu0 0.0
        %2830 = vmatpush1.xpose.msra.mxu0 0.0
        %2831 = vmatprep.subr.mxu0 0.0
        %2832 = vmatpush1.xpose.msra.mxu0 0.0
        %2833 = vmatprep.subr.mxu0 0.0
        %2834 = vmatpush1.xpose.msra.mxu0 0.0
        %2835 = vmatprep.subr.mxu0 0.0
        %2836 = vmatpush1.xpose.msra.mxu0 0.0
        %2837 = vmatprep.subr.mxu0 0.0
        %2838 = vmatpush1.xpose.msra.mxu0 0.0
        %2839 = vmatprep.subr.mxu0 0.0
        %2840 = vmatpush1.xpose.msra.mxu0 0.0
        %2841 = vmatprep.subr.mxu0 0.0
        %2842 = vmatpush1.xpose.msra.mxu0 0.0
        %2843 = vmatprep.subr.mxu0 0.0
        %2844 = vmatpush1.xpose.msra.mxu0 0.0
        %2845 = vmatprep.subr.mxu0 0.0
        %2846 = vmatpush1.xpose.msra.mxu0 0.0
        %2847 = vmatprep.subr.mxu0 0.0
        %2848 = vmatpush1.xpose.msra.mxu0 0.0
        %2849 = vmatprep.subr.mxu0 0.0
        %2850 = vmatpush1.xpose.msra.mxu0 0.0
        %2851 = vmatprep.subr.mxu0 0.0
        %2852 = vmatpush1.xpose.msra.mxu0 0.0
        %2853 = vmatprep.subr.mxu0 0.0
        %2854 = vmatpush1.xpose.msra.mxu0 0.0
        %2855 = vmatprep.subr.mxu0 0.0
        %2856 = vmatpush1.xpose.msra.mxu0 0.0
        %2857 = vmatprep.subr.mxu0 0.0
        %2858 = vmatpush1.xpose.msra.mxu0 0.0
        %2859 = vmatprep.subr.mxu0 0.0
        %2860 = vmatpush1.xpose.msra.mxu0 0.0
        %2861 = vmatprep.subr.mxu0 0.0
        %2862 = vmatpush1.xpose.msra.mxu0 0.0
        %2863 = vmatprep.subr.mxu0 0.0
        %2864 = vmatpush1.xpose.msra.mxu0 0.0
        %2865 = vmatprep.subr.mxu0 0.0
        %2866 = vmatpush1.xpose.msra.mxu0 0.0
        %2867 = vmatprep.subr.mxu0 0.0
        %2868 = vmatpush1.xpose.msra.mxu0 0.0
        %2869 = vmatprep.subr.mxu0 0.0
        %2870 = vmatpush1.xpose.msra.mxu0 0.0
        %2871 = vmatprep.subr.mxu0 0.0
        %2872 = vmatpush1.xpose.msra.mxu0 0.0
        %2873 = vmatprep.subr.mxu0 0.0
        %2874 = vmatpush1.xpose.msra.mxu0 0.0
        %2875 = vmatprep.subr.mxu0 0.0
        %2876 = vmatpush1.xpose.msra.mxu0 0.0
        %2877 = vmatprep.subr.mxu0 0.0
        %2878 = vmatpush1.xpose.msra.mxu0 0.0
        %2879 = vmatprep.mubr.f32.mxu0 0.0
        %2880 = vmatmul.mubr.f32.gmra.mrb[0].mxu0 %v2811
        %v2881 = vpop.f32.mrb[0].mxu0
        %v2882 = vadd.f32 0.0, %v2881
        %v2883 = vpop.f32.mrb[0].mxu0
        %2884 = vdwg.mxu0
        %v2885 = vsel %vm1275, %v2882, -inf
        %2886 = vmax.xlane.f32.xlu0 %v2885
        %v2887 = vpop.xlane.xlu0 %2886
        %v2888 = vsub.f32 %v2882, %v2887
        %v2889 = vmul.f32 %v2888, 1.442695
        %v2890 = vpow.pop %v2889
        %v2891 = vsel %vm1275, %v2890, 0.0
        %2892 = vadd.xlane.f32.xlu0 %v2891
        %v2893 = vpop.xlane.xlu0 %2892
        %v2894 = vrcp.pop %v2893
        %v2895 = vmul.f32 %v2890, %v2894
        %2896 = vrot.lane.b32.xlu0 %v1186, 100
        %v2897 = vpop.permute.xlu0 %2896
        %v2900 = vsel %vm1275, %v2895, 0
        %2902 = vmatprep.subr.mxu0 0.0
        %2903 = vmatpush1.msra.mxu0 %v2897
        %2904 = vmatprep.subr.mxu0 0.0
        %2905 = vmatpush1.msra.mxu0 0.0
        %2906 = vmatprep.subr.mxu0 0.0
        %2907 = vmatpush1.msra.mxu0 0.0
        %2908 = vmatprep.subr.mxu0 0.0
        %2909 = vmatpush1.msra.mxu0 0.0
        %2910 = vmatprep.subr.mxu0 0.0
        %2911 = vmatpush1.msra.mxu0 0.0
        %2912 = vmatprep.subr.mxu0 0.0
        %2913 = vmatpush1.msra.mxu0 0.0
        %2914 = vmatprep.subr.mxu0 0.0
        %2915 = vmatpush1.msra.mxu0 0.0
        %2916 = vmatprep.subr.mxu0 0.0
        %2917 = vmatpush1.msra.mxu0 0.0
        %2918 = vmatprep.subr.mxu0 0.0
        %2919 = vmatpush1.msra.mxu0 0.0
        %2920 = vmatprep.subr.mxu0 0.0
        %2921 = vmatpush1.msra.mxu0 0.0
        %2922 = vmatprep.subr.mxu0 0.0
        %2923 = vmatpush1.msra.mxu0 0.0
        %2924 = vmatprep.subr.mxu0 0.0
        %2925 = vmatpush1.msra.mxu0 0.0
        %2926 = vmatprep.subr.mxu0 0.0
        %2927 = vmatpush1.msra.mxu0 0.0
        %2928 = vmatprep.subr.mxu0 0.0
        %2929 = vmatpush1.msra.mxu0 0.0
        %2930 = vmatprep.subr.mxu0 0.0
        %2931 = vmatpush1.msra.mxu0 0.0
        %2932 = vmatprep.subr.mxu0 0.0
        %2933 = vmatpush1.msra.mxu0 0.0
        %2934 = vmatprep.subr.mxu0 0.0
        %2935 = vmatpush1.msra.mxu0 0.0
        %2936 = vmatprep.subr.mxu0 0.0
        %2937 = vmatpush1.msra.mxu0 0.0
        %2938 = vmatprep.subr.mxu0 0.0
        %2939 = vmatpush1.msra.mxu0 0.0
        %2940 = vmatprep.subr.mxu0 0.0
        %2941 = vmatpush1.msra.mxu0 0.0
        %2942 = vmatprep.subr.mxu0 0.0
        %2943 = vmatpush1.msra.mxu0 0.0
        %2944 = vmatprep.subr.mxu0 0.0
        %2945 = vmatpush1.msra.mxu0 0.0
        %2946 = vmatprep.subr.mxu0 0.0
        %2947 = vmatpush1.msra.mxu0 0.0
        %2948 = vmatprep.subr.mxu0 0.0
        %2949 = vmatpush1.msra.mxu0 0.0
        %2950 = vmatprep.subr.mxu0 0.0
        %2951 = vmatpush1.msra.mxu0 0.0
        %2952 = vmatprep.subr.mxu0 0.0
        %2953 = vmatpush1.msra.mxu0 0.0
        %2954 = vmatprep.subr.mxu0 0.0
        %2955 = vmatpush1.msra.mxu0 0.0
        %2956 = vmatprep.subr.mxu0 0.0
        %2957 = vmatpush1.msra.mxu0 0.0
        %2958 = vmatprep.subr.mxu0 0.0
        %2959 = vmatpush1.msra.mxu0 0.0
        %2960 = vmatprep.subr.mxu0 0.0
        %2961 = vmatpush1.msra.mxu0 0.0
        %2962 = vmatprep.subr.mxu0 0.0
        %2963 = vmatpush1.msra.mxu0 0.0
        %2964 = vmatprep.subr.mxu0 0.0
        %2965 = vmatpush1.msra.mxu0 0.0
        %2966 = vmatprep.mubr.f32.mxu0 0.0
        %2967 = vmatmul.mubr.f32.gmra.mrb[0].mxu0 %v2900
        %v2968 = vpop.f32.mrb[0].mxu0
        %v2969 = vadd.f32 0.0, %v2968
        %v2970 = vpop.f32.mrb[0].mxu0
        %2971 = vdwg.mxu0
        %v2972 = vrot.slane %v1191, 4
        %v2974 = vsel %vm1199, %v2969, 0
        %v2976 = vsel %vm1184, %v2972, 0
        %2978 = vmatprep.subr.mxu0 0.0
        %2979 = vmatpush1.msra.mxu0 %v2976
        %2980 = vmatprep.subr.mxu0 0.0
        %2981 = vmatpush1.msra.mxu0 0.0
        %2982 = vmatprep.subr.mxu0 0.0
        %2983 = vmatpush1.msra.mxu0 0.0
        %2984 = vmatprep.subr.mxu0 0.0
        %2985 = vmatpush1.msra.mxu0 0.0
        %2986 = vmatprep.subr.mxu0 0.0
        %2987 = vmatpush1.msra.mxu0 0.0
        %2988 = vmatprep.subr.mxu0 0.0
        %2989 = vmatpush1.msra.mxu0 0.0
        %2990 = vmatprep.subr.mxu0 0.0
        %2991 = vmatpush1.msra.mxu0 0.0
        %2992 = vmatprep.subr.mxu0 0.0
        %2993 = vmatpush1.msra.mxu0 0.0
        %2994 = vmatprep.subr.mxu0 0.0
        %2995 = vmatpush1.msra.mxu0 0.0
        %2996 = vmatprep.subr.mxu0 0.0
        %2997 = vmatpush1.msra.mxu0 0.0
        %2998 = vmatprep.subr.mxu0 0.0
        %2999 = vmatpush1.msra.mxu0 0.0
        %3000 = vmatprep.subr.mxu0 0.0
        %3001 = vmatpush1.msra.mxu0 0.0
        %3002 = vmatprep.subr.mxu0 0.0
        %3003 = vmatpush1.msra.mxu0 0.0
        %3004 = vmatprep.subr.mxu0 0.0
        %3005 = vmatpush1.msra.mxu0 0.0
        %3006 = vmatprep.subr.mxu0 0.0
        %3007 = vmatpush1.msra.mxu0 0.0
        %3008 = vmatprep.subr.mxu0 0.0
        %3009 = vmatpush1.msra.mxu0 0.0
        %3010 = vmatprep.subr.mxu0 0.0
        %3011 = vmatpush1.msra.mxu0 0.0
        %3012 = vmatprep.subr.mxu0 0.0
        %3013 = vmatpush1.msra.mxu0 0.0
        %3014 = vmatprep.subr.mxu0 0.0
        %3015 = vmatpush1.msra.mxu0 0.0
        %3016 = vmatprep.subr.mxu0 0.0
        %3017 = vmatpush1.msra.mxu0 0.0
        %3018 = vmatprep.subr.mxu0 0.0
        %3019 = vmatpush1.msra.mxu0 0.0
        %3020 = vmatprep.subr.mxu0 0.0
        %3021 = vmatpush1.msra.mxu0 0.0
        %3022 = vmatprep.subr.mxu0 0.0
        %3023 = vmatpush1.msra.mxu0 0.0
        %3024 = vmatprep.subr.mxu0 0.0
        %3025 = vmatpush1.msra.mxu0 0.0
        %3026 = vmatprep.subr.mxu0 0.0
        %3027 = vmatpush1.msra.mxu0 0.0
        %3028 = vmatprep.subr.mxu0 0.0
        %3029 = vmatpush1.msra.mxu0 0.0
        %3030 = vmatprep.subr.mxu0 0.0
        %3031 = vmatpush1.msra.mxu0 0.0
        %3032 = vmatprep.subr.mxu0 0.0
        %3033 = vmatpush1.msra.mxu0 0.0
        %3034 = vmatprep.subr.mxu0 0.0
        %3035 = vmatpush1.msra.mxu0 0.0
        %3036 = vmatprep.subr.mxu0 0.0
        %3037 = vmatpush1.msra.mxu0 0.0
        %3038 = vmatprep.subr.mxu0 0.0
        %3039 = vmatpush1.msra.mxu0 0.0
        %3040 = vmatprep.subr.mxu0 0.0
        %3041 = vmatpush1.msra.mxu0 0.0
        %3042 = vmatprep.mubr.f32.mxu0 0.0
        %3043 = vmatmul.mubr.f32.gmra.mrb[0].mxu0 %v2974
        %v3044 = vpop.f32.mrb[0].mxu0
        %v3045 = vadd.f32 0.0, %v3044
        %v3046 = vpop.f32.mrb[0].mxu0
        %3047 = vdwg.mxu0
        %v3048 = vrot.slane %v1189, 4
        %v3050 = vsel %vm1199, %v1853, 0
        %v3052 = vsel %vm1184, %v3048, 0
        %3054 = vmatprep.subr.mxu0 0.0
        %3055 = vmatpush1.msra.mxu0 %v3052
        %3056 = vmatprep.subr.mxu0 0.0
        %3057 = vmatpush1.msra.mxu0 0.0
        %3058 = vmatprep.subr.mxu0 0.0
        %3059 = vmatpush1.msra.mxu0 0.0
        %3060 = vmatprep.subr.mxu0 0.0
        %3061 = vmatpush1.msra.mxu0 0.0
        %3062 = vmatprep.subr.mxu0 0.0
        %3063 = vmatpush1.msra.mxu0 0.0
        %3064 = vmatprep.subr.mxu0 0.0
        %3065 = vmatpush1.msra.mxu0 0.0
        %3066 = vmatprep.subr.mxu0 0.0
        %3067 = vmatpush1.msra.mxu0 0.0
        %3068 = vmatprep.subr.mxu0 0.0
        %3069 = vmatpush1.msra.mxu0 0.0
        %3070 = vmatprep.subr.mxu0 0.0
        %3071 = vmatpush1.msra.mxu0 0.0
        %3072 = vmatprep.subr.mxu0 0.0
        %3073 = vmatpush1.msra.mxu0 0.0
        %3074 = vmatprep.subr.mxu0 0.0
        %3075 = vmatpush1.msra.mxu0 0.0
        %3076 = vmatprep.subr.mxu0 0.0
        %3077 = vmatpush1.msra.mxu0 0.0
        %3078 = vmatprep.subr.mxu0 0.0
        %3079 = vmatpush1.msra.mxu0 0.0
        %3080 = vmatprep.subr.mxu0 0.0
        %3081 = vmatpush1.msra.mxu0 0.0
        %3082 = vmatprep.subr.mxu0 0.0
        %3083 = vmatpush1.msra.mxu0 0.0
        %3084 = vmatprep.subr.mxu0 0.0
        %3085 = vmatpush1.msra.mxu0 0.0
        %3086 = vmatprep.subr.mxu0 0.0
        %3087 = vmatpush1.msra.mxu0 0.0
        %3088 = vmatprep.subr.mxu0 0.0
        %3089 = vmatpush1.msra.mxu0 0.0
        %3090 = vmatprep.subr.mxu0 0.0
        %3091 = vmatpush1.msra.mxu0 0.0
        %3092 = vmatprep.subr.mxu0 0.0
        %3093 = vmatpush1.msra.mxu0 0.0
        %3094 = vmatprep.subr.mxu0 0.0
        %3095 = vmatpush1.msra.mxu0 0.0
        %3096 = vmatprep.subr.mxu0 0.0
        %3097 = vmatpush1.msra.mxu0 0.0
        %3098 = vmatprep.subr.mxu0 0.0
        %3099 = vmatpush1.msra.mxu0 0.0
        %3100 = vmatprep.subr.mxu0 0.0
        %3101 = vmatpush1.msra.mxu0 0.0
        %3102 = vmatprep.subr.mxu0 0.0
        %3103 = vmatpush1.msra.mxu0 0.0
        %3104 = vmatprep.subr.mxu0 0.0
        %3105 = vmatpush1.msra.mxu0 0.0
        %3106 = vmatprep.subr.mxu0 0.0
        %3107 = vmatpush1.msra.mxu0 0.0
        %3108 = vmatprep.subr.mxu0 0.0
        %3109 = vmatpush1.msra.mxu0 0.0
        %3110 = vmatprep.subr.mxu0 0.0
        %3111 = vmatpush1.msra.mxu0 0.0
        %3112 = vmatprep.subr.mxu0 0.0
        %3113 = vmatpush1.msra.mxu0 0.0
        %3114 = vmatprep.subr.mxu0 0.0
        %3115 = vmatpush1.msra.mxu0 0.0
        %3116 = vmatprep.subr.mxu0 0.0
        %3117 = vmatpush1.msra.mxu0 0.0
        %3118 = vmatprep.mubr.f32.mxu0 0.0
        %3119 = vmatmul.mubr.f32.gmra.mrb[0].mxu0 %v3050
        %v3120 = vpop.f32.mrb[0].mxu0
        %v3121 = vadd.f32 %v3045, %v3120
        %v3122 = vpop.f32.mrb[0].mxu0
        %3123 = vdwg.mxu0
        %3124 = vrot.lane.b32.xlu0 %v1187, 96
        %v3125 = vpop.permute.xlu0 %3124
        %3126 = vrot.lane.b32.xlu0 %v1185, 32
        %v3127 = vpop.permute.xlu0 %3126
        %v3128 = vsel %vm1199, %v3125, 0
        %v3130 = vsel %vm1199, %v3127, 0
        %3132 = vmatprep.subr.mxu0 0.0
        %3133 = vmatpush1.xpose.msra.mxu0 %v3130
        %3134 = vmatprep.subr.mxu0 0.0
        %3135 = vmatpush1.xpose.msra.mxu0 0.0
        %3136 = vmatprep.subr.mxu0 0.0
        %3137 = vmatpush1.xpose.msra.mxu0 0.0
        %3138 = vmatprep.subr.mxu0 0.0
        %3139 = vmatpush1.xpose.msra.mxu0 0.0
        %3140 = vmatprep.subr.mxu0 0.0
        %3141 = vmatpush1.xpose.msra.mxu0 0.0
        %3142 = vmatprep.subr.mxu0 0.0
        %3143 = vmatpush1.xpose.msra.mxu0 0.0
        %3144 = vmatprep.subr.mxu0 0.0
        %3145 = vmatpush1.xpose.msra.mxu0 0.0
        %3146 = vmatprep.subr.mxu0 0.0
        %3147 = vmatpush1.xpose.msra.mxu0 0.0
        %3148 = vmatprep.subr.mxu0 0.0
        %3149 = vmatpush1.xpose.msra.mxu0 0.0
        %3150 = vmatprep.subr.mxu0 0.0
        %3151 = vmatpush1.xpose.msra.mxu0 0.0
        %3152 = vmatprep.subr.mxu0 0.0
        %3153 = vmatpush1.xpose.msra.mxu0 0.0
        %3154 = vmatprep.subr.mxu0 0.0
        %3155 = vmatpush1.xpose.msra.mxu0 0.0
        %3156 = vmatprep.subr.mxu0 0.0
        %3157 = vmatpush1.xpose.msra.mxu0 0.0
        %3158 = vmatprep.subr.mxu0 0.0
        %3159 = vmatpush1.xpose.msra.mxu0 0.0
        %3160 = vmatprep.subr.mxu0 0.0
        %3161 = vmatpush1.xpose.msra.mxu0 0.0
        %3162 = vmatprep.subr.mxu0 0.0
        %3163 = vmatpush1.xpose.msra.mxu0 0.0
        %3164 = vmatprep.subr.mxu0 0.0
        %3165 = vmatpush1.xpose.msra.mxu0 0.0
        %3166 = vmatprep.subr.mxu0 0.0
        %3167 = vmatpush1.xpose.msra.mxu0 0.0
        %3168 = vmatprep.subr.mxu0 0.0
        %3169 = vmatpush1.xpose.msra.mxu0 0.0
        %3170 = vmatprep.subr.mxu0 0.0
        %3171 = vmatpush1.xpose.msra.mxu0 0.0
        %3172 = vmatprep.subr.mxu0 0.0
        %3173 = vmatpush1.xpose.msra.mxu0 0.0
        %3174 = vmatprep.subr.mxu0 0.0
        %3175 = vmatpush1.xpose.msra.mxu0 0.0
        %3176 = vmatprep.subr.mxu0 0.0
        %3177 = vmatpush1.xpose.msra.mxu0 0.0
        %3178 = vmatprep.subr.mxu0 0.0
        %3179 = vmatpush1.xpose.msra.mxu0 0.0
        %3180 = vmatprep.subr.mxu0 0.0
        %3181 = vmatpush1.xpose.msra.mxu0 0.0
        %3182 = vmatprep.subr.mxu0 0.0
        %3183 = vmatpush1.xpose.msra.mxu0 0.0
        %3184 = vmatprep.subr.mxu0 0.0
        %3185 = vmatpush1.xpose.msra.mxu0 0.0
        %3186 = vmatprep.subr.mxu0 0.0
        %3187 = vmatpush1.xpose.msra.mxu0 0.0
        %3188 = vmatprep.subr.mxu0 0.0
        %3189 = vmatpush1.xpose.msra.mxu0 0.0
        %3190 = vmatprep.subr.mxu0 0.0
        %3191 = vmatpush1.xpose.msra.mxu0 0.0
        %3192 = vmatprep.subr.mxu0 0.0
        %3193 = vmatpush1.xpose.msra.mxu0 0.0
        %3194 = vmatprep.subr.mxu0 0.0
        %3195 = vmatpush1.xpose.msra.mxu0 0.0
        %3196 = vmatprep.mubr.f32.mxu0 0.0
        %3197 = vmatmul.mubr.f32.gmra.mrb[0].mxu0 %v3128
        %v3198 = vpop.f32.mrb[0].mxu0
        %v3199 = vadd.f32 0.0, %v3198
        %v3200 = vpop.f32.mrb[0].mxu0
        %3201 = vdwg.mxu0
        %v3202 = vsel %vm1275, %v3199, -inf
        %3203 = vmax.xlane.f32.xlu0 %v3202
        %v3204 = vpop.xlane.xlu0 %3203
        %v3205 = vsub.f32 %v3199, %v3204
        %v3206 = vmul.f32 %v3205, 1.442695
        %v3207 = vpow.pop %v3206
        %v3208 = vsel %vm1275, %v3207, 0.0
        %3209 = vadd.xlane.f32.xlu0 %v3208
        %v3210 = vpop.xlane.xlu0 %3209
        %v3211 = vrcp.pop %v3210
        %v3212 = vmul.f32 %v3207, %v3211
        %3213 = vrot.lane.b32.xlu0 %v1186, 96
        %v3214 = vpop.permute.xlu0 %3213
        %v3217 = vsel %vm1275, %v3212, 0
        %3219 = vmatprep.subr.mxu0 0.0
        %3220 = vmatpush1.msra.mxu0 %v3214
        %3221 = vmatprep.subr.mxu0 0.0
        %3222 = vmatpush1.msra.mxu0 0.0
        %3223 = vmatprep.subr.mxu0 0.0
        %3224 = vmatpush1.msra.mxu0 0.0
        %3225 = vmatprep.subr.mxu0 0.0
        %3226 = vmatpush1.msra.mxu0 0.0
        %3227 = vmatprep.subr.mxu0 0.0
        %3228 = vmatpush1.msra.mxu0 0.0
        %3229 = vmatprep.subr.mxu0 0.0
        %3230 = vmatpush1.msra.mxu0 0.0
        %3231 = vmatprep.subr.mxu0 0.0
        %3232 = vmatpush1.msra.mxu0 0.0
        %3233 = vmatprep.subr.mxu0 0.0
        %3234 = vmatpush1.msra.mxu0 0.0
        %3235 = vmatprep.subr.mxu0 0.0
        %3236 = vmatpush1.msra.mxu0 0.0
        %3237 = vmatprep.subr.mxu0 0.0
        %3238 = vmatpush1.msra.mxu0 0.0
        %3239 = vmatprep.subr.mxu0 0.0
        %3240 = vmatpush1.msra.mxu0 0.0
        %3241 = vmatprep.subr.mxu0 0.0
        %3242 = vmatpush1.msra.mxu0 0.0
        %3243 = vmatprep.subr.mxu0 0.0
        %3244 = vmatpush1.msra.mxu0 0.0
        %3245 = vmatprep.subr.mxu0 0.0
        %3246 = vmatpush1.msra.mxu0 0.0
        %3247 = vmatprep.subr.mxu0 0.0
        %3248 = vmatpush1.msra.mxu0 0.0
        %3249 = vmatprep.subr.mxu0 0.0
        %3250 = vmatpush1.msra.mxu0 0.0
        %3251 = vmatprep.subr.mxu0 0.0
        %3252 = vmatpush1.msra.mxu0 0.0
        %3253 = vmatprep.subr.mxu0 0.0
        %3254 = vmatpush1.msra.mxu0 0.0
        %3255 = vmatprep.subr.mxu0 0.0
        %3256 = vmatpush1.msra.mxu0 0.0
        %3257 = vmatprep.subr.mxu0 0.0
        %3258 = vmatpush1.msra.mxu0 0.0
        %3259 = vmatprep.subr.mxu0 0.0
        %3260 = vmatpush1.msra.mxu0 0.0
        %3261 = vmatprep.subr.mxu0 0.0
        %3262 = vmatpush1.msra.mxu0 0.0
        %3263 = vmatprep.subr.mxu0 0.0
        %3264 = vmatpush1.msra.mxu0 0.0
        %3265 = vmatprep.subr.mxu0 0.0
        %3266 = vmatpush1.msra.mxu0 0.0
        %3267 = vmatprep.subr.mxu0 0.0
        %3268 = vmatpush1.msra.mxu0 0.0
        %3269 = vmatprep.subr.mxu0 0.0
        %3270 = vmatpush1.msra.mxu0 0.0
        %3271 = vmatprep.subr.mxu0 0.0
        %3272 = vmatpush1.msra.mxu0 0.0
        %3273 = vmatprep.subr.mxu0 0.0
        %3274 = vmatpush1.msra.mxu0 0.0
        %3275 = vmatprep.subr.mxu0 0.0
        %3276 = vmatpush1.msra.mxu0 0.0
        %3277 = vmatprep.subr.mxu0 0.0
        %3278 = vmatpush1.msra.mxu0 0.0
        %3279 = vmatprep.subr.mxu0 0.0
        %3280 = vmatpush1.msra.mxu0 0.0
        %3281 = vmatprep.subr.mxu0 0.0
        %3282 = vmatpush1.msra.mxu0 0.0
        %3283 = vmatprep.mubr.f32.mxu0 0.0
        %3284 = vmatmul.mubr.f32.gmra.mrb[0].mxu0 %v3217
        %v3285 = vpop.f32.mrb[0].mxu0
        %v3286 = vadd.f32 0.0, %v3285
        %v3287 = vpop.f32.mrb[0].mxu0
        %3288 = vdwg.mxu0
        %v3290 = vsel %vm1199, %v3286, 0
        %v3293 = vsel %vm1184, %v1192, 0
        %3295 = vmatprep.subr.mxu0 0.0
        %3296 = vmatpush1.msra.mxu0 %v3293
        %3297 = vmatprep.subr.mxu0 0.0
        %3298 = vmatpush1.msra.mxu0 0.0
        %3299 = vmatprep.subr.mxu0 0.0
        %3300 = vmatpush1.msra.mxu0 0.0
        %3301 = vmatprep.subr.mxu0 0.0
        %3302 = vmatpush1.msra.mxu0 0.0
        %3303 = vmatprep.subr.mxu0 0.0
        %3304 = vmatpush1.msra.mxu0 0.0
        %3305 = vmatprep.subr.mxu0 0.0
        %3306 = vmatpush1.msra.mxu0 0.0
        %3307 = vmatprep.subr.mxu0 0.0
        %3308 = vmatpush1.msra.mxu0 0.0
        %3309 = vmatprep.subr.mxu0 0.0
        %3310 = vmatpush1.msra.mxu0 0.0
        %3311 = vmatprep.subr.mxu0 0.0
        %3312 = vmatpush1.msra.mxu0 0.0
        %3313 = vmatprep.subr.mxu0 0.0
        %3314 = vmatpush1.msra.mxu0 0.0
        %3315 = vmatprep.subr.mxu0 0.0
        %3316 = vmatpush1.msra.mxu0 0.0
        %3317 = vmatprep.subr.mxu0 0.0
        %3318 = vmatpush1.msra.mxu0 0.0
        %3319 = vmatprep.subr.mxu0 0.0
        %3320 = vmatpush1.msra.mxu0 0.0
        %3321 = vmatprep.subr.mxu0 0.0
        %3322 = vmatpush1.msra.mxu0 0.0
        %3323 = vmatprep.subr.mxu0 0.0
        %3324 = vmatpush1.msra.mxu0 0.0
        %3325 = vmatprep.subr.mxu0 0.0
        %3326 = vmatpush1.msra.mxu0 0.0
        %3327 = vmatprep.subr.mxu0 0.0
        %3328 = vmatpush1.msra.mxu0 0.0
        %3329 = vmatprep.subr.mxu0 0.0
        %3330 = vmatpush1.msra.mxu0 0.0
        %3331 = vmatprep.subr.mxu0 0.0
        %3332 = vmatpush1.msra.mxu0 0.0
        %3333 = vmatprep.subr.mxu0 0.0
        %3334 = vmatpush1.msra.mxu0 0.0
        %3335 = vmatprep.subr.mxu0 0.0
        %3336 = vmatpush1.msra.mxu0 0.0
        %3337 = vmatprep.subr.mxu0 0.0
        %3338 = vmatpush1.msra.mxu0 0.0
        %3339 = vmatprep.subr.mxu0 0.0
        %3340 = vmatpush1.msra.mxu0 0.0
        %3341 = vmatprep.subr.mxu0 0.0
        %3342 = vmatpush1.msra.mxu0 0.0
        %3343 = vmatprep.subr.mxu0 0.0
        %3344 = vmatpush1.msra.mxu0 0.0
        %3345 = vmatprep.subr.mxu0 0.0
        %3346 = vmatpush1.msra.mxu0 0.0
        %3347 = vmatprep.subr.mxu0 0.0
        %3348 = vmatpush1.msra.mxu0 0.0
        %3349 = vmatprep.subr.mxu0 0.0
        %3350 = vmatpush1.msra.mxu0 0.0
        %3351 = vmatprep.subr.mxu0 0.0
        %3352 = vmatpush1.msra.mxu0 0.0
        %3353 = vmatprep.subr.mxu0 0.0
        %3354 = vmatpush1.msra.mxu0 0.0
        %3355 = vmatprep.subr.mxu0 0.0
        %3356 = vmatpush1.msra.mxu0 0.0
        %3357 = vmatprep.subr.mxu0 0.0
        %3358 = vmatpush1.msra.mxu0 0.0
        %3359 = vmatprep.mubr.f32.mxu0 0.0
        %3360 = vmatmul.mubr.f32.gmra.mrb[0].mxu0 %v3290
        %v3361 = vpop.f32.mrb[0].mxu0
        %v3362 = vadd.f32 0.0, %v3361
        %v3363 = vpop.f32.mrb[0].mxu0
        %3364 = vdwg.mxu0
        %v3365 = vadd.f32 %v2170, %v3362
        %3366 = vrot.lane.b32.xlu0 %v1187, 92
        %v3367 = vpop.permute.xlu0 %3366
        %3368 = vrot.lane.b32.xlu0 %v1185, 28
        %v3369 = vpop.permute.xlu0 %3368
        %v3370 = vsel %vm1199, %v3367, 0
        %v3372 = vsel %vm1199, %v3369, 0
        %3374 = vmatprep.subr.mxu0 0.0
        %3375 = vmatpush1.xpose.msra.mxu0 %v3372
        %3376 = vmatprep.subr.mxu0 0.0
        %3377 = vmatpush1.xpose.msra.mxu0 0.0
        %3378 = vmatprep.subr.mxu0 0.0
        %3379 = vmatpush1.xpose.msra.mxu0 0.0
        %3380 = vmatprep.subr.mxu0 0.0
        %3381 = vmatpush1.xpose.msra.mxu0 0.0
        %3382 = vmatprep.subr.mxu0 0.0
        %3383 = vmatpush1.xpose.msra.mxu0 0.0
        %3384 = vmatprep.subr.mxu0 0.0
        %3385 = vmatpush1.xpose.msra.mxu0 0.0
        %3386 = vmatprep.subr.mxu0 0.0
        %3387 = vmatpush1.xpose.msra.mxu0 0.0
        %3388 = vmatprep.subr.mxu0 0.0
        %3389 = vmatpush1.xpose.msra.mxu0 0.0
        %3390 = vmatprep.subr.mxu0 0.0
        %3391 = vmatpush1.xpose.msra.mxu0 0.0
        %3392 = vmatprep.subr.mxu0 0.0
        %3393 = vmatpush1.xpose.msra.mxu0 0.0
        %3394 = vmatprep.subr.mxu0 0.0
        %3395 = vmatpush1.xpose.msra.mxu0 0.0
        %3396 = vmatprep.subr.mxu0 0.0
        %3397 = vmatpush1.xpose.msra.mxu0 0.0
        %3398 = vmatprep.subr.mxu0 0.0
        %3399 = vmatpush1.xpose.msra.mxu0 0.0
        %3400 = vmatprep.subr.mxu0 0.0
        %3401 = vmatpush1.xpose.msra.mxu0 0.0
        %3402 = vmatprep.subr.mxu0 0.0
        %3403 = vmatpush1.xpose.msra.mxu0 0.0
        %3404 = vmatprep.subr.mxu0 0.0
        %3405 = vmatpush1.xpose.msra.mxu0 0.0
        %3406 = vmatprep.subr.mxu0 0.0
        %3407 = vmatpush1.xpose.msra.mxu0 0.0
        %3408 = vmatprep.subr.mxu0 0.0
        %3409 = vmatpush1.xpose.msra.mxu0 0.0
        %3410 = vmatprep.subr.mxu0 0.0
        %3411 = vmatpush1.xpose.msra.mxu0 0.0
        %3412 = vmatprep.subr.mxu0 0.0
        %3413 = vmatpush1.xpose.msra.mxu0 0.0
        %3414 = vmatprep.subr.mxu0 0.0
        %3415 = vmatpush1.xpose.msra.mxu0 0.0
        %3416 = vmatprep.subr.mxu0 0.0
        %3417 = vmatpush1.xpose.msra.mxu0 0.0
        %3418 = vmatprep.subr.mxu0 0.0
        %3419 = vmatpush1.xpose.msra.mxu0 0.0
        %3420 = vmatprep.subr.mxu0 0.0
        %3421 = vmatpush1.xpose.msra.mxu0 0.0
        %3422 = vmatprep.subr.mxu0 0.0
        %3423 = vmatpush1.xpose.msra.mxu0 0.0
        %3424 = vmatprep.subr.mxu0 0.0
        %3425 = vmatpush1.xpose.msra.mxu0 0.0
        %3426 = vmatprep.subr.mxu0 0.0
        %3427 = vmatpush1.xpose.msra.mxu0 0.0
        %3428 = vmatprep.subr.mxu0 0.0
        %3429 = vmatpush1.xpose.msra.mxu0 0.0
        %3430 = vmatprep.subr.mxu0 0.0
        %3431 = vmatpush1.xpose.msra.mxu0 0.0
        %3432 = vmatprep.subr.mxu0 0.0
        %3433 = vmatpush1.xpose.msra.mxu0 0.0
        %3434 = vmatprep.subr.mxu0 0.0
        %3435 = vmatpush1.xpose.msra.mxu0 0.0
        %3436 = vmatprep.subr.mxu0 0.0
        %3437 = vmatpush1.xpose.msra.mxu0 0.0
        %3438 = vmatprep.mubr.f32.mxu0 0.0
        %3439 = vmatmul.mubr.f32.gmra.mrb[0].mxu0 %v3370
        %v3440 = vpop.f32.mrb[0].mxu0
        %v3441 = vadd.f32 0.0, %v3440
        %v3442 = vpop.f32.mrb[0].mxu0
        %3443 = vdwg.mxu0
        %v3444 = vsel %vm1275, %v3441, -inf
        %3445 = vmax.xlane.f32.xlu0 %v3444
        %v3446 = vpop.xlane.xlu0 %3445
        %v3447 = vsub.f32 %v3441, %v3446
        %v3448 = vmul.f32 %v3447, 1.442695
        %v3449 = vpow.pop %v3448
        %v3450 = vsel %vm1275, %v3449, 0.0
        %3451 = vadd.xlane.f32.xlu0 %v3450
        %v3452 = vpop.xlane.xlu0 %3451
        %v3453 = vrcp.pop %v3452
        %v3454 = vmul.f32 %v3449, %v3453
        %3455 = vrot.lane.b32.xlu0 %v1186, 92
        %v3456 = vpop.permute.xlu0 %3455
        %v3459 = vsel %vm1275, %v3454, 0
        %3461 = vmatprep.subr.mxu0 0.0
        %3462 = vmatpush1.msra.mxu0 %v3456
        %3463 = vmatprep.subr.mxu0 0.0
        %3464 = vmatpush1.msra.mxu0 0.0
        %3465 = vmatprep.subr.mxu0 0.0
        %3466 = vmatpush1.msra.mxu0 0.0
        %3467 = vmatprep.subr.mxu0 0.0
        %3468 = vmatpush1.msra.mxu0 0.0
        %3469 = vmatprep.subr.mxu0 0.0
        %3470 = vmatpush1.msra.mxu0 0.0
        %3471 = vmatprep.subr.mxu0 0.0
        %3472 = vmatpush1.msra.mxu0 0.0
        %3473 = vmatprep.subr.mxu0 0.0
        %3474 = vmatpush1.msra.mxu0 0.0
        %3475 = vmatprep.subr.mxu0 0.0
        %3476 = vmatpush1.msra.mxu0 0.0
        %3477 = vmatprep.subr.mxu0 0.0
        %3478 = vmatpush1.msra.mxu0 0.0
        %3479 = vmatprep.subr.mxu0 0.0
        %3480 = vmatpush1.msra.mxu0 0.0
        %3481 = vmatprep.subr.mxu0 0.0
        %3482 = vmatpush1.msra.mxu0 0.0
        %3483 = vmatprep.subr.mxu0 0.0
        %3484 = vmatpush1.msra.mxu0 0.0
        %3485 = vmatprep.subr.mxu0 0.0
        %3486 = vmatpush1.msra.mxu0 0.0
        %3487 = vmatprep.subr.mxu0 0.0
        %3488 = vmatpush1.msra.mxu0 0.0
        %3489 = vmatprep.subr.mxu0 0.0
        %3490 = vmatpush1.msra.mxu0 0.0
        %3491 = vmatprep.subr.mxu0 0.0
        %3492 = vmatpush1.msra.mxu0 0.0
        %3493 = vmatprep.subr.mxu0 0.0
        %3494 = vmatpush1.msra.mxu0 0.0
        %3495 = vmatprep.subr.mxu0 0.0
        %3496 = vmatpush1.msra.mxu0 0.0
        %3497 = vmatprep.subr.mxu0 0.0
        %3498 = vmatpush1.msra.mxu0 0.0
        %3499 = vmatprep.subr.mxu0 0.0
        %3500 = vmatpush1.msra.mxu0 0.0
        %3501 = vmatprep.subr.mxu0 0.0
        %3502 = vmatpush1.msra.mxu0 0.0
        %3503 = vmatprep.subr.mxu0 0.0
        %3504 = vmatpush1.msra.mxu0 0.0
        %3505 = vmatprep.subr.mxu0 0.0
        %3506 = vmatpush1.msra.mxu0 0.0
        %3507 = vmatprep.subr.mxu0 0.0
        %3508 = vmatpush1.msra.mxu0 0.0
        %3509 = vmatprep.subr.mxu0 0.0
        %3510 = vmatpush1.msra.mxu0 0.0
        %3511 = vmatprep.subr.mxu0 0.0
        %3512 = vmatpush1.msra.mxu0 0.0
        %3513 = vmatprep.subr.mxu0 0.0
        %3514 = vmatpush1.msra.mxu0 0.0
        %3515 = vmatprep.subr.mxu0 0.0
        %3516 = vmatpush1.msra.mxu0 0.0
        %3517 = vmatprep.subr.mxu0 0.0
        %3518 = vmatpush1.msra.mxu0 0.0
        %3519 = vmatprep.subr.mxu0 0.0
        %3520 = vmatpush1.msra.mxu0 0.0
        %3521 = vmatprep.subr.mxu0 0.0
        %3522 = vmatpush1.msra.mxu0 0.0
        %3523 = vmatprep.subr.mxu0 0.0
        %3524 = vmatpush1.msra.mxu0 0.0
        %3525 = vmatprep.mubr.f32.mxu0 0.0
        %3526 = vmatmul.mubr.f32.gmra.mrb[0].mxu0 %v3459
        %v3527 = vpop.f32.mrb[0].mxu0
        %v3528 = vadd.f32 0.0, %v3527
        %v3529 = vpop.f32.mrb[0].mxu0
        %3530 = vdwg.mxu0
        %v3531 = vrot.slane %v1192, 4
        %v3533 = vsel %vm1199, %v3528, 0
        %v3535 = vsel %vm1184, %v3531, 0
        %3537 = vmatprep.subr.mxu0 0.0
        %3538 = vmatpush1.msra.mxu0 %v3535
        %3539 = vmatprep.subr.mxu0 0.0
        %3540 = vmatpush1.msra.mxu0 0.0
        %3541 = vmatprep.subr.mxu0 0.0
        %3542 = vmatpush1.msra.mxu0 0.0
        %3543 = vmatprep.subr.mxu0 0.0
        %3544 = vmatpush1.msra.mxu0 0.0
        %3545 = vmatprep.subr.mxu0 0.0
        %3546 = vmatpush1.msra.mxu0 0.0
        %3547 = vmatprep.subr.mxu0 0.0
        %3548 = vmatpush1.msra.mxu0 0.0
        %3549 = vmatprep.subr.mxu0 0.0
        %3550 = vmatpush1.msra.mxu0 0.0
        %3551 = vmatprep.subr.mxu0 0.0
        %3552 = vmatpush1.msra.mxu0 0.0
        %3553 = vmatprep.subr.mxu0 0.0
        %3554 = vmatpush1.msra.mxu0 0.0
        %3555 = vmatprep.subr.mxu0 0.0
        %3556 = vmatpush1.msra.mxu0 0.0
        %3557 = vmatprep.subr.mxu0 0.0
        %3558 = vmatpush1.msra.mxu0 0.0
        %3559 = vmatprep.subr.mxu0 0.0
        %3560 = vmatpush1.msra.mxu0 0.0
        %3561 = vmatprep.subr.mxu0 0.0
        %3562 = vmatpush1.msra.mxu0 0.0
        %3563 = vmatprep.subr.mxu0 0.0
        %3564 = vmatpush1.msra.mxu0 0.0
        %3565 = vmatprep.subr.mxu0 0.0
        %3566 = vmatpush1.msra.mxu0 0.0
        %3567 = vmatprep.subr.mxu0 0.0
        %3568 = vmatpush1.msra.mxu0 0.0
        %3569 = vmatprep.subr.mxu0 0.0
        %3570 = vmatpush1.msra.mxu0 0.0
        %3571 = vmatprep.subr.mxu0 0.0
        %3572 = vmatpush1.msra.mxu0 0.0
        %3573 = vmatprep.subr.mxu0 0.0
        %3574 = vmatpush1.msra.mxu0 0.0
        %3575 = vmatprep.subr.mxu0 0.0
        %3576 = vmatpush1.msra.mxu0 0.0
        %3577 = vmatprep.subr.mxu0 0.0
        %3578 = vmatpush1.msra.mxu0 0.0
        %3579 = vmatprep.subr.mxu0 0.0
        %3580 = vmatpush1.msra.mxu0 0.0
        %3581 = vmatprep.subr.mxu0 0.0
        %3582 = vmatpush1.msra.mxu0 0.0
        %3583 = vmatprep.subr.mxu0 0.0
        %3584 = vmatpush1.msra.mxu0 0.0
        %3585 = vmatprep.subr.mxu0 0.0
        %3586 = vmatpush1.msra.mxu0 0.0
        %3587 = vmatprep.subr.mxu0 0.0
        %3588 = vmatpush1.msra.mxu0 0.0
        %3589 = vmatprep.subr.mxu0 0.0
        %3590 = vmatpush1.msra.mxu0 0.0
        %3591 = vmatprep.subr.mxu0 0.0
        %3592 = vmatpush1.msra.mxu0 0.0
        %3593 = vmatprep.subr.mxu0 0.0
        %3594 = vmatpush1.msra.mxu0 0.0
        %3595 = vmatprep.subr.mxu0 0.0
        %3596 = vmatpush1.msra.mxu0 0.0
        %3597 = vmatprep.subr.mxu0 0.0
        %3598 = vmatpush1.msra.mxu0 0.0
        %3599 = vmatprep.subr.mxu0 0.0
        %3600 = vmatpush1.msra.mxu0 0.0
        %3601 = vmatprep.mubr.f32.mxu0 0.0
        %3602 = vmatmul.mubr.f32.gmra.mrb[0].mxu0 %v3533
        %v3603 = vpop.f32.mrb[0].mxu0
        %v3604 = vadd.f32 0.0, %v3603
        %v3605 = vpop.f32.mrb[0].mxu0
        %3606 = vdwg.mxu0
        %v3607 = vadd.f32 %v2487, %v3604
        %3608 = vrot.lane.b32.xlu0 %v1187, 88
        %v3609 = vpop.permute.xlu0 %3608
        %3610 = vrot.lane.b32.xlu0 %v1185, 24
        %v3611 = vpop.permute.xlu0 %3610
        %v3612 = vsel %vm1199, %v3609, 0
        %v3614 = vsel %vm1199, %v3611, 0
        %3616 = vmatprep.subr.mxu0 0.0
        %3617 = vmatpush1.xpose.msra.mxu0 %v3614
        %3618 = vmatprep.subr.mxu0 0.0
        %3619 = vmatpush1.xpose.msra.mxu0 0.0
        %3620 = vmatprep.subr.mxu0 0.0
        %3621 = vmatpush1.xpose.msra.mxu0 0.0
        %3622 = vmatprep.subr.mxu0 0.0
        %3623 = vmatpush1.xpose.msra.mxu0 0.0
        %3624 = vmatprep.subr.mxu0 0.0
        %3625 = vmatpush1.xpose.msra.mxu0 0.0
        %3626 = vmatprep.subr.mxu0 0.0
        %3627 = vmatpush1.xpose.msra.mxu0 0.0
        %3628 = vmatprep.subr.mxu0 0.0
        %3629 = vmatpush1.xpose.msra.mxu0 0.0
        %3630 = vmatprep.subr.mxu0 0.0
        %3631 = vmatpush1.xpose.msra.mxu0 0.0
        %3632 = vmatprep.subr.mxu0 0.0
        %3633 = vmatpush1.xpose.msra.mxu0 0.0
        %3634 = vmatprep.subr.mxu0 0.0
        %3635 = vmatpush1.xpose.msra.mxu0 0.0
        %3636 = vmatprep.subr.mxu0 0.0
        %3637 = vmatpush1.xpose.msra.mxu0 0.0
        %3638 = vmatprep.subr.mxu0 0.0
        %3639 = vmatpush1.xpose.msra.mxu0 0.0
        %3640 = vmatprep.subr.mxu0 0.0
        %3641 = vmatpush1.xpose.msra.mxu0 0.0
        %3642 = vmatprep.subr.mxu0 0.0
        %3643 = vmatpush1.xpose.msra.mxu0 0.0
        %3644 = vmatprep.subr.mxu0 0.0
        %3645 = vmatpush1.xpose.msra.mxu0 0.0
        %3646 = vmatprep.subr.mxu0 0.0
        %3647 = vmatpush1.xpose.msra.mxu0 0.0
        %3648 = vmatprep.subr.mxu0 0.0
        %3649 = vmatpush1.xpose.msra.mxu0 0.0
        %3650 = vmatprep.subr.mxu0 0.0
        %3651 = vmatpush1.xpose.msra.mxu0 0.0
        %3652 = vmatprep.subr.mxu0 0.0
        %3653 = vmatpush1.xpose.msra.mxu0 0.0
        %3654 = vmatprep.subr.mxu0 0.0
        %3655 = vmatpush1.xpose.msra.mxu0 0.0
        %3656 = vmatprep.subr.mxu0 0.0
        %3657 = vmatpush1.xpose.msra.mxu0 0.0
        %3658 = vmatprep.subr.mxu0 0.0
        %3659 = vmatpush1.xpose.msra.mxu0 0.0
        %3660 = vmatprep.subr.mxu0 0.0
        %3661 = vmatpush1.xpose.msra.mxu0 0.0
        %3662 = vmatprep.subr.mxu0 0.0
        %3663 = vmatpush1.xpose.msra.mxu0 0.0
        %3664 = vmatprep.subr.mxu0 0.0
        %3665 = vmatpush1.xpose.msra.mxu0 0.0
        %3666 = vmatprep.subr.mxu0 0.0
        %3667 = vmatpush1.xpose.msra.mxu0 0.0
        %3668 = vmatprep.subr.mxu0 0.0
        %3669 = vmatpush1.xpose.msra.mxu0 0.0
        %3670 = vmatprep.subr.mxu0 0.0
        %3671 = vmatpush1.xpose.msra.mxu0 0.0
        %3672 = vmatprep.subr.mxu0 0.0
        %3673 = vmatpush1.xpose.msra.mxu0 0.0
        %3674 = vmatprep.subr.mxu0 0.0
        %3675 = vmatpush1.xpose.msra.mxu0 0.0
        %3676 = vmatprep.subr.mxu0 0.0
        %3677 = vmatpush1.xpose.msra.mxu0 0.0
        %3678 = vmatprep.subr.mxu0 0.0
        %3679 = vmatpush1.xpose.msra.mxu0 0.0
        %3680 = vmatprep.mubr.f32.mxu0 0.0
        %3681 = vmatmul.mubr.f32.gmra.mrb[0].mxu0 %v3612
        %v3682 = vpop.f32.mrb[0].mxu0
        %v3683 = vadd.f32 0.0, %v3682
        %v3684 = vpop.f32.mrb[0].mxu0
        %3685 = vdwg.mxu0
        %v3686 = vsel %vm1275, %v3683, -inf
        %3687 = vmax.xlane.f32.xlu0 %v3686
        %v3688 = vpop.xlane.xlu0 %3687
        %v3689 = vsub.f32 %v3683, %v3688
        %v3690 = vmul.f32 %v3689, 1.442695
        %v3691 = vpow.pop %v3690
        %v3692 = vsel %vm1275, %v3691, 0.0
        %3693 = vadd.xlane.f32.xlu0 %v3692
        %v3694 = vpop.xlane.xlu0 %3693
        %v3695 = vrcp.pop %v3694
        %v3696 = vmul.f32 %v3691, %v3695
        %3697 = vrot.lane.b32.xlu0 %v1186, 88
        %v3698 = vpop.permute.xlu0 %3697
        %v3701 = vsel %vm1275, %v3696, 0
        %3703 = vmatprep.subr.mxu0 0.0
        %3704 = vmatpush1.msra.mxu0 %v3698
        %3705 = vmatprep.subr.mxu0 0.0
        %3706 = vmatpush1.msra.mxu0 0.0
        %3707 = vmatprep.subr.mxu0 0.0
        %3708 = vmatpush1.msra.mxu0 0.0
        %3709 = vmatprep.subr.mxu0 0.0
        %3710 = vmatpush1.msra.mxu0 0.0
        %3711 = vmatprep.subr.mxu0 0.0
        %3712 = vmatpush1.msra.mxu0 0.0
        %3713 = vmatprep.subr.mxu0 0.0
        %3714 = vmatpush1.msra.mxu0 0.0
        %3715 = vmatprep.subr.mxu0 0.0
        %3716 = vmatpush1.msra.mxu0 0.0
        %3717 = vmatprep.subr.mxu0 0.0
        %3718 = vmatpush1.msra.mxu0 0.0
        %3719 = vmatprep.subr.mxu0 0.0
        %3720 = vmatpush1.msra.mxu0 0.0
        %3721 = vmatprep.subr.mxu0 0.0
        %3722 = vmatpush1.msra.mxu0 0.0
        %3723 = vmatprep.subr.mxu0 0.0
        %3724 = vmatpush1.msra.mxu0 0.0
        %3725 = vmatprep.subr.mxu0 0.0
        %3726 = vmatpush1.msra.mxu0 0.0
        %3727 = vmatprep.subr.mxu0 0.0
        %3728 = vmatpush1.msra.mxu0 0.0
        %3729 = vmatprep.subr.mxu0 0.0
        %3730 = vmatpush1.msra.mxu0 0.0
        %3731 = vmatprep.subr.mxu0 0.0
        %3732 = vmatpush1.msra.mxu0 0.0
        %3733 = vmatprep.subr.mxu0 0.0
        %3734 = vmatpush1.msra.mxu0 0.0
        %3735 = vmatprep.subr.mxu0 0.0
        %3736 = vmatpush1.msra.mxu0 0.0
        %3737 = vmatprep.subr.mxu0 0.0
        %3738 = vmatpush1.msra.mxu0 0.0
        %3739 = vmatprep.subr.mxu0 0.0
        %3740 = vmatpush1.msra.mxu0 0.0
        %3741 = vmatprep.subr.mxu0 0.0
        %3742 = vmatpush1.msra.mxu0 0.0
        %3743 = vmatprep.subr.mxu0 0.0
        %3744 = vmatpush1.msra.mxu0 0.0
        %3745 = vmatprep.subr.mxu0 0.0
        %3746 = vmatpush1.msra.mxu0 0.0
        %3747 = vmatprep.subr.mxu0 0.0
        %3748 = vmatpush1.msra.mxu0 0.0
        %3749 = vmatprep.subr.mxu0 0.0
        %3750 = vmatpush1.msra.mxu0 0.0
        %3751 = vmatprep.subr.mxu0 0.0
        %3752 = vmatpush1.msra.mxu0 0.0
        %3753 = vmatprep.subr.mxu0 0.0
        %3754 = vmatpush1.msra.mxu0 0.0
        %3755 = vmatprep.subr.mxu0 0.0
        %3756 = vmatpush1.msra.mxu0 0.0
        %3757 = vmatprep.subr.mxu0 0.0
        %3758 = vmatpush1.msra.mxu0 0.0
        %3759 = vmatprep.subr.mxu0 0.0
        %3760 = vmatpush1.msra.mxu0 0.0
        %3761 = vmatprep.subr.mxu0 0.0
        %3762 = vmatpush1.msra.mxu0 0.0
        %3763 = vmatprep.subr.mxu0 0.0
        %3764 = vmatpush1.msra.mxu0 0.0
        %3765 = vmatprep.subr.mxu0 0.0
        %3766 = vmatpush1.msra.mxu0 0.0
        %3767 = vmatprep.mubr.f32.mxu0 0.0
        %3768 = vmatmul.mubr.f32.gmra.mrb[0].mxu0 %v3701
        %v3769 = vpop.f32.mrb[0].mxu0
        %v3770 = vadd.f32 0.0, %v3769
        %v3771 = vpop.f32.mrb[0].mxu0
        %3772 = vdwg.mxu0
        %v3774 = vsel %vm1199, %v3770, 0
        %v3777 = vsel %vm1184, %v1193, 0
        %3779 = vmatprep.subr.mxu0 0.0
        %3780 = vmatpush1.msra.mxu0 %v3777
        %3781 = vmatprep.subr.mxu0 0.0
        %3782 = vmatpush1.msra.mxu0 0.0
        %3783 = vmatprep.subr.mxu0 0.0
        %3784 = vmatpush1.msra.mxu0 0.0
        %3785 = vmatprep.subr.mxu0 0.0
        %3786 = vmatpush1.msra.mxu0 0.0
        %3787 = vmatprep.subr.mxu0 0.0
        %3788 = vmatpush1.msra.mxu0 0.0
        %3789 = vmatprep.subr.mxu0 0.0
        %3790 = vmatpush1.msra.mxu0 0.0
        %3791 = vmatprep.subr.mxu0 0.0
        %3792 = vmatpush1.msra.mxu0 0.0
        %3793 = vmatprep.subr.mxu0 0.0
        %3794 = vmatpush1.msra.mxu0 0.0
        %3795 = vmatprep.subr.mxu0 0.0
        %3796 = vmatpush1.msra.mxu0 0.0
        %3797 = vmatprep.subr.mxu0 0.0
        %3798 = vmatpush1.msra.mxu0 0.0
        %3799 = vmatprep.subr.mxu0 0.0
        %3800 = vmatpush1.msra.mxu0 0.0
        %3801 = vmatprep.subr.mxu0 0.0
        %3802 = vmatpush1.msra.mxu0 0.0
        %3803 = vmatprep.subr.mxu0 0.0
        %3804 = vmatpush1.msra.mxu0 0.0
        %3805 = vmatprep.subr.mxu0 0.0
        %3806 = vmatpush1.msra.mxu0 0.0
        %3807 = vmatprep.subr.mxu0 0.0
        %3808 = vmatpush1.msra.mxu0 0.0
        %3809 = vmatprep.subr.mxu0 0.0
        %3810 = vmatpush1.msra.mxu0 0.0
        %3811 = vmatprep.subr.mxu0 0.0
        %3812 = vmatpush1.msra.mxu0 0.0
        %3813 = vmatprep.subr.mxu0 0.0
        %3814 = vmatpush1.msra.mxu0 0.0
        %3815 = vmatprep.subr.mxu0 0.0
        %3816 = vmatpush1.msra.mxu0 0.0
        %3817 = vmatprep.subr.mxu0 0.0
        %3818 = vmatpush1.msra.mxu0 0.0
        %3819 = vmatprep.subr.mxu0 0.0
        %3820 = vmatpush1.msra.mxu0 0.0
        %3821 = vmatprep.subr.mxu0 0.0
        %3822 = vmatpush1.msra.mxu0 0.0
        %3823 = vmatprep.subr.mxu0 0.0
        %3824 = vmatpush1.msra.mxu0 0.0
        %3825 = vmatprep.subr.mxu0 0.0
        %3826 = vmatpush1.msra.mxu0 0.0
        %3827 = vmatprep.subr.mxu0 0.0
        %3828 = vmatpush1.msra.mxu0 0.0
        %3829 = vmatprep.subr.mxu0 0.0
        %3830 = vmatpush1.msra.mxu0 0.0
        %3831 = vmatprep.subr.mxu0 0.0
        %3832 = vmatpush1.msra.mxu0 0.0
        %3833 = vmatprep.subr.mxu0 0.0
        %3834 = vmatpush1.msra.mxu0 0.0
        %3835 = vmatprep.subr.mxu0 0.0
        %3836 = vmatpush1.msra.mxu0 0.0
        %3837 = vmatprep.subr.mxu0 0.0
        %3838 = vmatpush1.msra.mxu0 0.0
        %3839 = vmatprep.subr.mxu0 0.0
        %3840 = vmatpush1.msra.mxu0 0.0
        %3841 = vmatprep.subr.mxu0 0.0
        %3842 = vmatpush1.msra.mxu0 0.0
        %3843 = vmatprep.mubr.f32.mxu0 0.0
        %3844 = vmatmul.mubr.f32.gmra.mrb[0].mxu0 %v3774
        %v3845 = vpop.f32.mrb[0].mxu0
        %v3846 = vadd.f32 0.0, %v3845
        %v3847 = vpop.f32.mrb[0].mxu0
        %3848 = vdwg.mxu0
        %v3849 = vadd.f32 %v2804, %v3846
        %3850 = vrot.lane.b32.xlu0 %v1187, 84
        %v3851 = vpop.permute.xlu0 %3850
        %3852 = vrot.lane.b32.xlu0 %v1185, 20
        %v3853 = vpop.permute.xlu0 %3852
        %v3854 = vsel %vm1199, %v3851, 0
        %v3856 = vsel %vm1199, %v3853, 0
        %3858 = vmatprep.subr.mxu0 0.0
        %3859 = vmatpush1.xpose.msra.mxu0 %v3856
        %3860 = vmatprep.subr.mxu0 0.0
        %3861 = vmatpush1.xpose.msra.mxu0 0.0
        %3862 = vmatprep.subr.mxu0 0.0
        %3863 = vmatpush1.xpose.msra.mxu0 0.0
        %3864 = vmatprep.subr.mxu0 0.0
        %3865 = vmatpush1.xpose.msra.mxu0 0.0
        %3866 = vmatprep.subr.mxu0 0.0
        %3867 = vmatpush1.xpose.msra.mxu0 0.0
        %3868 = vmatprep.subr.mxu0 0.0
        %3869 = vmatpush1.xpose.msra.mxu0 0.0
        %3870 = vmatprep.subr.mxu0 0.0
        %3871 = vmatpush1.xpose.msra.mxu0 0.0
        %3872 = vmatprep.subr.mxu0 0.0
        %3873 = vmatpush1.xpose.msra.mxu0 0.0
        %3874 = vmatprep.subr.mxu0 0.0
        %3875 = vmatpush1.xpose.msra.mxu0 0.0
        %3876 = vmatprep.subr.mxu0 0.0
        %3877 = vmatpush1.xpose.msra.mxu0 0.0
        %3878 = vmatprep.subr.mxu0 0.0
        %3879 = vmatpush1.xpose.msra.mxu0 0.0
        %3880 = vmatprep.subr.mxu0 0.0
        %3881 = vmatpush1.xpose.msra.mxu0 0.0
        %3882 = vmatprep.subr.mxu0 0.0
        %3883 = vmatpush1.xpose.msra.mxu0 0.0
        %3884 = vmatprep.subr.mxu0 0.0
        %3885 = vmatpush1.xpose.msra.mxu0 0.0
        %3886 = vmatprep.subr.mxu0 0.0
        %3887 = vmatpush1.xpose.msra.mxu0 0.0
        %3888 = vmatprep.subr.mxu0 0.0
        %3889 = vmatpush1.xpose.msra.mxu0 0.0
        %3890 = vmatprep.subr.mxu0 0.0
        %3891 = vmatpush1.xpose.msra.mxu0 0.0
        %3892 = vmatprep.subr.mxu0 0.0
        %3893 = vmatpush1.xpose.msra.mxu0 0.0
        %3894 = vmatprep.subr.mxu0 0.0
        %3895 = vmatpush1.xpose.msra.mxu0 0.0
        %3896 = vmatprep.subr.mxu0 0.0
        %3897 = vmatpush1.xpose.msra.mxu0 0.0
        %3898 = vmatprep.subr.mxu0 0.0
        %3899 = vmatpush1.xpose.msra.mxu0 0.0
        %3900 = vmatprep.subr.mxu0 0.0
        %3901 = vmatpush1.xpose.msra.mxu0 0.0
        %3902 = vmatprep.subr.mxu0 0.0
        %3903 = vmatpush1.xpose.msra.mxu0 0.0
        %3904 = vmatprep.subr.mxu0 0.0
        %3905 = vmatpush1.xpose.msra.mxu0 0.0
        %3906 = vmatprep.subr.mxu0 0.0
        %3907 = vmatpush1.xpose.msra.mxu0 0.0
        %3908 = vmatprep.subr.mxu0 0.0
        %3909 = vmatpush1.xpose.msra.mxu0 0.0
        %3910 = vmatprep.subr.mxu0 0.0
        %3911 = vmatpush1.xpose.msra.mxu0 0.0
        %3912 = vmatprep.subr.mxu0 0.0
        %3913 = vmatpush1.xpose.msra.mxu0 0.0
        %3914 = vmatprep.subr.mxu0 0.0
        %3915 = vmatpush1.xpose.msra.mxu0 0.0
        %3916 = vmatprep.subr.mxu0 0.0
        %3917 = vmatpush1.xpose.msra.mxu0 0.0
        %3918 = vmatprep.subr.mxu0 0.0
        %3919 = vmatpush1.xpose.msra.mxu0 0.0
        %3920 = vmatprep.subr.mxu0 0.0
        %3921 = vmatpush1.xpose.msra.mxu0 0.0
        %3922 = vmatprep.mubr.f32.mxu0 0.0
        %3923 = vmatmul.mubr.f32.gmra.mrb[0].mxu0 %v3854
        %v3924 = vpop.f32.mrb[0].mxu0
        %v3925 = vadd.f32 0.0, %v3924
        %v3926 = vpop.f32.mrb[0].mxu0
        %3927 = vdwg.mxu0
        %v3928 = vsel %vm1275, %v3925, -inf
        %3929 = vmax.xlane.f32.xlu0 %v3928
        %v3930 = vpop.xlane.xlu0 %3929
        %v3931 = vsub.f32 %v3925, %v3930
        %v3932 = vmul.f32 %v3931, 1.442695
        %v3933 = vpow.pop %v3932
        %v3934 = vsel %vm1275, %v3933, 0.0
        %3935 = vadd.xlane.f32.xlu0 %v3934
        %v3936 = vpop.xlane.xlu0 %3935
        %v3937 = vrcp.pop %v3936
        %v3938 = vmul.f32 %v3933, %v3937
        %3939 = vrot.lane.b32.xlu0 %v1186, 84
        %v3940 = vpop.permute.xlu0 %3939
        %v3943 = vsel %vm1275, %v3938, 0
        %3945 = vmatprep.subr.mxu0 0.0
        %3946 = vmatpush1.msra.mxu0 %v3940
        %3947 = vmatprep.subr.mxu0 0.0
        %3948 = vmatpush1.msra.mxu0 0.0
        %3949 = vmatprep.subr.mxu0 0.0
        %3950 = vmatpush1.msra.mxu0 0.0
        %3951 = vmatprep.subr.mxu0 0.0
        %3952 = vmatpush1.msra.mxu0 0.0
        %3953 = vmatprep.subr.mxu0 0.0
        %3954 = vmatpush1.msra.mxu0 0.0
        %3955 = vmatprep.subr.mxu0 0.0
        %3956 = vmatpush1.msra.mxu0 0.0
        %3957 = vmatprep.subr.mxu0 0.0
        %3958 = vmatpush1.msra.mxu0 0.0
        %3959 = vmatprep.subr.mxu0 0.0
        %3960 = vmatpush1.msra.mxu0 0.0
        %3961 = vmatprep.subr.mxu0 0.0
        %3962 = vmatpush1.msra.mxu0 0.0
        %3963 = vmatprep.subr.mxu0 0.0
        %3964 = vmatpush1.msra.mxu0 0.0
        %3965 = vmatprep.subr.mxu0 0.0
        %3966 = vmatpush1.msra.mxu0 0.0
        %3967 = vmatprep.subr.mxu0 0.0
        %3968 = vmatpush1.msra.mxu0 0.0
        %3969 = vmatprep.subr.mxu0 0.0
        %3970 = vmatpush1.msra.mxu0 0.0
        %3971 = vmatprep.subr.mxu0 0.0
        %3972 = vmatpush1.msra.mxu0 0.0
        %3973 = vmatprep.subr.mxu0 0.0
        %3974 = vmatpush1.msra.mxu0 0.0
        %3975 = vmatprep.subr.mxu0 0.0
        %3976 = vmatpush1.msra.mxu0 0.0
        %3977 = vmatprep.subr.mxu0 0.0
        %3978 = vmatpush1.msra.mxu0 0.0
        %3979 = vmatprep.subr.mxu0 0.0
        %3980 = vmatpush1.msra.mxu0 0.0
        %3981 = vmatprep.subr.mxu0 0.0
        %3982 = vmatpush1.msra.mxu0 0.0
        %3983 = vmatprep.subr.mxu0 0.0
        %3984 = vmatpush1.msra.mxu0 0.0
        %3985 = vmatprep.subr.mxu0 0.0
        %3986 = vmatpush1.msra.mxu0 0.0
        %3987 = vmatprep.subr.mxu0 0.0
        %3988 = vmatpush1.msra.mxu0 0.0
        %3989 = vmatprep.subr.mxu0 0.0
        %3990 = vmatpush1.msra.mxu0 0.0
        %3991 = vmatprep.subr.mxu0 0.0
        %3992 = vmatpush1.msra.mxu0 0.0
        %3993 = vmatprep.subr.mxu0 0.0
        %3994 = vmatpush1.msra.mxu0 0.0
        %3995 = vmatprep.subr.mxu0 0.0
        %3996 = vmatpush1.msra.mxu0 0.0
        %3997 = vmatprep.subr.mxu0 0.0
        %3998 = vmatpush1.msra.mxu0 0.0
        %3999 = vmatprep.subr.mxu0 0.0
        %4000 = vmatpush1.msra.mxu0 0.0
        %4001 = vmatprep.subr.mxu0 0.0
        %4002 = vmatpush1.msra.mxu0 0.0
        %4003 = vmatprep.subr.mxu0 0.0
        %4004 = vmatpush1.msra.mxu0 0.0
        %4005 = vmatprep.subr.mxu0 0.0
        %4006 = vmatpush1.msra.mxu0 0.0
        %4007 = vmatprep.subr.mxu0 0.0
        %4008 = vmatpush1.msra.mxu0 0.0
        %4009 = vmatprep.mubr.f32.mxu0 0.0
        %4010 = vmatmul.mubr.f32.gmra.mrb[0].mxu0 %v3943
        %v4011 = vpop.f32.mrb[0].mxu0
        %v4012 = vadd.f32 0.0, %v4011
        %v4013 = vpop.f32.mrb[0].mxu0
        %4014 = vdwg.mxu0
        %v4015 = vrot.slane %v1193, 4
        %v4017 = vsel %vm1199, %v4012, 0
        %v4019 = vsel %vm1184, %v4015, 0
        %4021 = vmatprep.subr.mxu0 0.0
        %4022 = vmatpush1.msra.mxu0 %v4019
        %4023 = vmatprep.subr.mxu0 0.0
        %4024 = vmatpush1.msra.mxu0 0.0
        %4025 = vmatprep.subr.mxu0 0.0
        %4026 = vmatpush1.msra.mxu0 0.0
        %4027 = vmatprep.subr.mxu0 0.0
        %4028 = vmatpush1.msra.mxu0 0.0
        %4029 = vmatprep.subr.mxu0 0.0
        %4030 = vmatpush1.msra.mxu0 0.0
        %4031 = vmatprep.subr.mxu0 0.0
        %4032 = vmatpush1.msra.mxu0 0.0
        %4033 = vmatprep.subr.mxu0 0.0
        %4034 = vmatpush1.msra.mxu0 0.0
        %4035 = vmatprep.subr.mxu0 0.0
        %4036 = vmatpush1.msra.mxu0 0.0
        %4037 = vmatprep.subr.mxu0 0.0
        %4038 = vmatpush1.msra.mxu0 0.0
        %4039 = vmatprep.subr.mxu0 0.0
        %4040 = vmatpush1.msra.mxu0 0.0
        %4041 = vmatprep.subr.mxu0 0.0
        %4042 = vmatpush1.msra.mxu0 0.0
        %4043 = vmatprep.subr.mxu0 0.0
        %4044 = vmatpush1.msra.mxu0 0.0
        %4045 = vmatprep.subr.mxu0 0.0
        %4046 = vmatpush1.msra.mxu0 0.0
        %4047 = vmatprep.subr.mxu0 0.0
        %4048 = vmatpush1.msra.mxu0 0.0
        %4049 = vmatprep.subr.mxu0 0.0
        %4050 = vmatpush1.msra.mxu0 0.0
        %4051 = vmatprep.subr.mxu0 0.0
        %4052 = vmatpush1.msra.mxu0 0.0
        %4053 = vmatprep.subr.mxu0 0.0
        %4054 = vmatpush1.msra.mxu0 0.0
        %4055 = vmatprep.subr.mxu0 0.0
        %4056 = vmatpush1.msra.mxu0 0.0
        %4057 = vmatprep.subr.mxu0 0.0
        %4058 = vmatpush1.msra.mxu0 0.0
        %4059 = vmatprep.subr.mxu0 0.0
        %4060 = vmatpush1.msra.mxu0 0.0
        %4061 = vmatprep.subr.mxu0 0.0
        %4062 = vmatpush1.msra.mxu0 0.0
        %4063 = vmatprep.subr.mxu0 0.0
        %4064 = vmatpush1.msra.mxu0 0.0
        %4065 = vmatprep.subr.mxu0 0.0
        %4066 = vmatpush1.msra.mxu0 0.0
        %4067 = vmatprep.subr.mxu0 0.0
        %4068 = vmatpush1.msra.mxu0 0.0
        %4069 = vmatprep.subr.mxu0 0.0
        %4070 = vmatpush1.msra.mxu0 0.0
        %4071 = vmatprep.subr.mxu0 0.0
        %4072 = vmatpush1.msra.mxu0 0.0
        %4073 = vmatprep.subr.mxu0 0.0
        %4074 = vmatpush1.msra.mxu0 0.0
        %4075 = vmatprep.subr.mxu0 0.0
        %4076 = vmatpush1.msra.mxu0 0.0
        %4077 = vmatprep.subr.mxu0 0.0
        %4078 = vmatpush1.msra.mxu0 0.0
        %4079 = vmatprep.subr.mxu0 0.0
        %4080 = vmatpush1.msra.mxu0 0.0
        %4081 = vmatprep.subr.mxu0 0.0
        %4082 = vmatpush1.msra.mxu0 0.0
        %4083 = vmatprep.subr.mxu0 0.0
        %4084 = vmatpush1.msra.mxu0 0.0
        %4085 = vmatprep.mubr.f32.mxu0 0.0
        %4086 = vmatmul.mubr.f32.gmra.mrb[0].mxu0 %v4017
        %v4087 = vpop.f32.mrb[0].mxu0
        %v4088 = vadd.f32 0.0, %v4087
        %v4089 = vpop.f32.mrb[0].mxu0
        %4090 = vdwg.mxu0
        %v4091 = vadd.f32 %v3121, %v4088
        %4092 = vrot.lane.b32.xlu0 %v1187, 80
        %v4093 = vpop.permute.xlu0 %4092
        %4094 = vrot.lane.b32.xlu0 %v1185, 16
        %v4095 = vpop.permute.xlu0 %4094
        %v4096 = vsel %vm1199, %v4093, 0
        %v4098 = vsel %vm1199, %v4095, 0
        %4100 = vmatprep.subr.mxu0 0.0
        %4101 = vmatpush1.xpose.msra.mxu0 %v4098
        %4102 = vmatprep.subr.mxu0 0.0
        %4103 = vmatpush1.xpose.msra.mxu0 0.0
        %4104 = vmatprep.subr.mxu0 0.0
        %4105 = vmatpush1.xpose.msra.mxu0 0.0
        %4106 = vmatprep.subr.mxu0 0.0
        %4107 = vmatpush1.xpose.msra.mxu0 0.0
        %4108 = vmatprep.subr.mxu0 0.0
        %4109 = vmatpush1.xpose.msra.mxu0 0.0
        %4110 = vmatprep.subr.mxu0 0.0
        %4111 = vmatpush1.xpose.msra.mxu0 0.0
        %4112 = vmatprep.subr.mxu0 0.0
        %4113 = vmatpush1.xpose.msra.mxu0 0.0
        %4114 = vmatprep.subr.mxu0 0.0
        %4115 = vmatpush1.xpose.msra.mxu0 0.0
        %4116 = vmatprep.subr.mxu0 0.0
        %4117 = vmatpush1.xpose.msra.mxu0 0.0
        %4118 = vmatprep.subr.mxu0 0.0
        %4119 = vmatpush1.xpose.msra.mxu0 0.0
        %4120 = vmatprep.subr.mxu0 0.0
        %4121 = vmatpush1.xpose.msra.mxu0 0.0
        %4122 = vmatprep.subr.mxu0 0.0
        %4123 = vmatpush1.xpose.msra.mxu0 0.0
        %4124 = vmatprep.subr.mxu0 0.0
        %4125 = vmatpush1.xpose.msra.mxu0 0.0
        %4126 = vmatprep.subr.mxu0 0.0
        %4127 = vmatpush1.xpose.msra.mxu0 0.0
        %4128 = vmatprep.subr.mxu0 0.0
        %4129 = vmatpush1.xpose.msra.mxu0 0.0
        %4130 = vmatprep.subr.mxu0 0.0
        %4131 = vmatpush1.xpose.msra.mxu0 0.0
        %4132 = vmatprep.subr.mxu0 0.0
        %4133 = vmatpush1.xpose.msra.mxu0 0.0
        %4134 = vmatprep.subr.mxu0 0.0
        %4135 = vmatpush1.xpose.msra.mxu0 0.0
        %4136 = vmatprep.subr.mxu0 0.0
        %4137 = vmatpush1.xpose.msra.mxu0 0.0
        %4138 = vmatprep.subr.mxu0 0.0
        %4139 = vmatpush1.xpose.msra.mxu0 0.0
        %4140 = vmatprep.subr.mxu0 0.0
        %4141 = vmatpush1.xpose.msra.mxu0 0.0
        %4142 = vmatprep.subr.mxu0 0.0
        %4143 = vmatpush1.xpose.msra.mxu0 0.0
        %4144 = vmatprep.subr.mxu0 0.0
        %4145 = vmatpush1.xpose.msra.mxu0 0.0
        %4146 = vmatprep.subr.mxu0 0.0
        %4147 = vmatpush1.xpose.msra.mxu0 0.0
        %4148 = vmatprep.subr.mxu0 0.0
        %4149 = vmatpush1.xpose.msra.mxu0 0.0
        %4150 = vmatprep.subr.mxu0 0.0
        %4151 = vmatpush1.xpose.msra.mxu0 0.0
        %4152 = vmatprep.subr.mxu0 0.0
        %4153 = vmatpush1.xpose.msra.mxu0 0.0
        %4154 = vmatprep.subr.mxu0 0.0
        %4155 = vmatpush1.xpose.msra.mxu0 0.0
        %4156 = vmatprep.subr.mxu0 0.0
        %4157 = vmatpush1.xpose.msra.mxu0 0.0
        %4158 = vmatprep.subr.mxu0 0.0
        %4159 = vmatpush1.xpose.msra.mxu0 0.0
        %4160 = vmatprep.subr.mxu0 0.0
        %4161 = vmatpush1.xpose.msra.mxu0 0.0
        %4162 = vmatprep.subr.mxu0 0.0
        %4163 = vmatpush1.xpose.msra.mxu0 0.0
        %4164 = vmatprep.mubr.f32.mxu0 0.0
        %4165 = vmatmul.mubr.f32.gmra.mrb[0].mxu0 %v4096
        %v4166 = vpop.f32.mrb[0].mxu0
        %v4167 = vadd.f32 0.0, %v4166
        %v4168 = vpop.f32.mrb[0].mxu0
        %4169 = vdwg.mxu0
        %v4170 = vsel %vm1275, %v4167, -inf
        %4171 = vmax.xlane.f32.xlu0 %v4170
        %v4172 = vpop.xlane.xlu0 %4171
        %v4173 = vsub.f32 %v4167, %v4172
        %v4174 = vmul.f32 %v4173, 1.442695
        %v4175 = vpow.pop %v4174
        %v4176 = vsel %vm1275, %v4175, 0.0
        %4177 = vadd.xlane.f32.xlu0 %v4176
        %v4178 = vpop.xlane.xlu0 %4177
        %v4179 = vrcp.pop %v4178
        %v4180 = vmul.f32 %v4175, %v4179
        %4181 = vrot.lane.b32.xlu0 %v1186, 80
        %v4182 = vpop.permute.xlu0 %4181
        %v4185 = vsel %vm1275, %v4180, 0
        %4187 = vmatprep.subr.mxu0 0.0
        %4188 = vmatpush1.msra.mxu0 %v4182
        %4189 = vmatprep.subr.mxu0 0.0
        %4190 = vmatpush1.msra.mxu0 0.0
        %4191 = vmatprep.subr.mxu0 0.0
        %4192 = vmatpush1.msra.mxu0 0.0
        %4193 = vmatprep.subr.mxu0 0.0
        %4194 = vmatpush1.msra.mxu0 0.0
        %4195 = vmatprep.subr.mxu0 0.0
        %4196 = vmatpush1.msra.mxu0 0.0
        %4197 = vmatprep.subr.mxu0 0.0
        %4198 = vmatpush1.msra.mxu0 0.0
        %4199 = vmatprep.subr.mxu0 0.0
        %4200 = vmatpush1.msra.mxu0 0.0
        %4201 = vmatprep.subr.mxu0 0.0
        %4202 = vmatpush1.msra.mxu0 0.0
        %4203 = vmatprep.subr.mxu0 0.0
        %4204 = vmatpush1.msra.mxu0 0.0
        %4205 = vmatprep.subr.mxu0 0.0
        %4206 = vmatpush1.msra.mxu0 0.0
        %4207 = vmatprep.subr.mxu0 0.0
        %4208 = vmatpush1.msra.mxu0 0.0
        %4209 = vmatprep.subr.mxu0 0.0
        %4210 = vmatpush1.msra.mxu0 0.0
        %4211 = vmatprep.subr.mxu0 0.0
        %4212 = vmatpush1.msra.mxu0 0.0
        %4213 = vmatprep.subr.mxu0 0.0
        %4214 = vmatpush1.msra.mxu0 0.0
        %4215 = vmatprep.subr.mxu0 0.0
        %4216 = vmatpush1.msra.mxu0 0.0
        %4217 = vmatprep.subr.mxu0 0.0
        %4218 = vmatpush1.msra.mxu0 0.0
        %4219 = vmatprep.subr.mxu0 0.0
        %4220 = vmatpush1.msra.mxu0 0.0
        %4221 = vmatprep.subr.mxu0 0.0
        %4222 = vmatpush1.msra.mxu0 0.0
        %4223 = vmatprep.subr.mxu0 0.0
        %4224 = vmatpush1.msra.mxu0 0.0
        %4225 = vmatprep.subr.mxu0 0.0
        %4226 = vmatpush1.msra.mxu0 0.0
        %4227 = vmatprep.subr.mxu0 0.0
        %4228 = vmatpush1.msra.mxu0 0.0
        %4229 = vmatprep.subr.mxu0 0.0
        %4230 = vmatpush1.msra.mxu0 0.0
        %4231 = vmatprep.subr.mxu0 0.0
        %4232 = vmatpush1.msra.mxu0 0.0
        %4233 = vmatprep.subr.mxu0 0.0
        %4234 = vmatpush1.msra.mxu0 0.0
        %4235 = vmatprep.subr.mxu0 0.0
        %4236 = vmatpush1.msra.mxu0 0.0
        %4237 = vmatprep.subr.mxu0 0.0
        %4238 = vmatpush1.msra.mxu0 0.0
        %4239 = vmatprep.subr.mxu0 0.0
        %4240 = vmatpush1.msra.mxu0 0.0
        %4241 = vmatprep.subr.mxu0 0.0
        %4242 = vmatpush1.msra.mxu0 0.0
        %4243 = vmatprep.subr.mxu0 0.0
        %4244 = vmatpush1.msra.mxu0 0.0
        %4245 = vmatprep.subr.mxu0 0.0
        %4246 = vmatpush1.msra.mxu0 0.0
        %4247 = vmatprep.subr.mxu0 0.0
        %4248 = vmatpush1.msra.mxu0 0.0
        %4249 = vmatprep.subr.mxu0 0.0
        %4250 = vmatpush1.msra.mxu0 0.0
        %4251 = vmatprep.mubr.f32.mxu0 0.0
        %4252 = vmatmul.mubr.f32.gmra.mrb[0].mxu0 %v4185
        %v4253 = vpop.f32.mrb[0].mxu0
        %v4254 = vadd.f32 0.0, %v4253
        %v4255 = vpop.f32.mrb[0].mxu0
        %4256 = vdwg.mxu0
        %v4258 = vsel %vm1199, %v4254, 0
        %v4261 = vsel %vm1184, %v1194, 0
        %4263 = vmatprep.subr.mxu0 0.0
        %4264 = vmatpush1.msra.mxu0 %v4261
        %4265 = vmatprep.subr.mxu0 0.0
        %4266 = vmatpush1.msra.mxu0 0.0
        %4267 = vmatprep.subr.mxu0 0.0
        %4268 = vmatpush1.msra.mxu0 0.0
        %4269 = vmatprep.subr.mxu0 0.0
        %4270 = vmatpush1.msra.mxu0 0.0
        %4271 = vmatprep.subr.mxu0 0.0
        %4272 = vmatpush1.msra.mxu0 0.0
        %4273 = vmatprep.subr.mxu0 0.0
        %4274 = vmatpush1.msra.mxu0 0.0
        %4275 = vmatprep.subr.mxu0 0.0
        %4276 = vmatpush1.msra.mxu0 0.0
        %4277 = vmatprep.subr.mxu0 0.0
        %4278 = vmatpush1.msra.mxu0 0.0
        %4279 = vmatprep.subr.mxu0 0.0
        %4280 = vmatpush1.msra.mxu0 0.0
        %4281 = vmatprep.subr.mxu0 0.0
        %4282 = vmatpush1.msra.mxu0 0.0
        %4283 = vmatprep.subr.mxu0 0.0
        %4284 = vmatpush1.msra.mxu0 0.0
        %4285 = vmatprep.subr.mxu0 0.0
        %4286 = vmatpush1.msra.mxu0 0.0
        %4287 = vmatprep.subr.mxu0 0.0
        %4288 = vmatpush1.msra.mxu0 0.0
        %4289 = vmatprep.subr.mxu0 0.0
        %4290 = vmatpush1.msra.mxu0 0.0
        %4291 = vmatprep.subr.mxu0 0.0
        %4292 = vmatpush1.msra.mxu0 0.0
        %4293 = vmatprep.subr.mxu0 0.0
        %4294 = vmatpush1.msra.mxu0 0.0
        %4295 = vmatprep.subr.mxu0 0.0
        %4296 = vmatpush1.msra.mxu0 0.0
        %4297 = vmatprep.subr.mxu0 0.0
        %4298 = vmatpush1.msra.mxu0 0.0
        %4299 = vmatprep.subr.mxu0 0.0
        %4300 = vmatpush1.msra.mxu0 0.0
        %4301 = vmatprep.subr.mxu0 0.0
        %4302 = vmatpush1.msra.mxu0 0.0
        %4303 = vmatprep.subr.mxu0 0.0
        %4304 = vmatpush1.msra.mxu0 0.0
        %4305 = vmatprep.subr.mxu0 0.0
        %4306 = vmatpush1.msra.mxu0 0.0
        %4307 = vmatprep.subr.mxu0 0.0
        %4308 = vmatpush1.msra.mxu0 0.0
        %4309 = vmatprep.subr.mxu0 0.0
        %4310 = vmatpush1.msra.mxu0 0.0
        %4311 = vmatprep.subr.mxu0 0.0
        %4312 = vmatpush1.msra.mxu0 0.0
        %4313 = vmatprep.subr.mxu0 0.0
        %4314 = vmatpush1.msra.mxu0 0.0
        %4315 = vmatprep.subr.mxu0 0.0
        %4316 = vmatpush1.msra.mxu0 0.0
        %4317 = vmatprep.subr.mxu0 0.0
        %4318 = vmatpush1.msra.mxu0 0.0
        %4319 = vmatprep.subr.mxu0 0.0
        %4320 = vmatpush1.msra.mxu0 0.0
        %4321 = vmatprep.subr.mxu0 0.0
        %4322 = vmatpush1.msra.mxu0 0.0
        %4323 = vmatprep.subr.mxu0 0.0
        %4324 = vmatpush1.msra.mxu0 0.0
        %4325 = vmatprep.subr.mxu0 0.0
        %4326 = vmatpush1.msra.mxu0 0.0
        %4327 = vmatprep.mubr.f32.mxu0 0.0
        %4328 = vmatmul.mubr.f32.gmra.mrb[0].mxu0 %v4258
        %v4329 = vpop.f32.mrb[0].mxu0
        %v4330 = vadd.f32 0.0, %v4329
        %v4331 = vpop.f32.mrb[0].mxu0
        %4332 = vdwg.mxu0
        %v4333 = vadd.f32 %v3365, %v4330
        %4334 = vrot.lane.b32.xlu0 %v1187, 76
        %v4335 = vpop.permute.xlu0 %4334
        %4336 = vrot.lane.b32.xlu0 %v1185, 12
        %v4337 = vpop.permute.xlu0 %4336
        %v4338 = vsel %vm1199, %v4335, 0
        %v4340 = vsel %vm1199, %v4337, 0
        %4342 = vmatprep.subr.mxu0 0.0
        %4343 = vmatpush1.xpose.msra.mxu0 %v4340
        %4344 = vmatprep.subr.mxu0 0.0
        %4345 = vmatpush1.xpose.msra.mxu0 0.0
        %4346 = vmatprep.subr.mxu0 0.0
        %4347 = vmatpush1.xpose.msra.mxu0 0.0
        %4348 = vmatprep.subr.mxu0 0.0
        %4349 = vmatpush1.xpose.msra.mxu0 0.0
        %4350 = vmatprep.subr.mxu0 0.0
        %4351 = vmatpush1.xpose.msra.mxu0 0.0
        %4352 = vmatprep.subr.mxu0 0.0
        %4353 = vmatpush1.xpose.msra.mxu0 0.0
        %4354 = vmatprep.subr.mxu0 0.0
        %4355 = vmatpush1.xpose.msra.mxu0 0.0
        %4356 = vmatprep.subr.mxu0 0.0
        %4357 = vmatpush1.xpose.msra.mxu0 0.0
        %4358 = vmatprep.subr.mxu0 0.0
        %4359 = vmatpush1.xpose.msra.mxu0 0.0
        %4360 = vmatprep.subr.mxu0 0.0
        %4361 = vmatpush1.xpose.msra.mxu0 0.0
        %4362 = vmatprep.subr.mxu0 0.0
        %4363 = vmatpush1.xpose.msra.mxu0 0.0
        %4364 = vmatprep.subr.mxu0 0.0
        %4365 = vmatpush1.xpose.msra.mxu0 0.0
        %4366 = vmatprep.subr.mxu0 0.0
        %4367 = vmatpush1.xpose.msra.mxu0 0.0
        %4368 = vmatprep.subr.mxu0 0.0
        %4369 = vmatpush1.xpose.msra.mxu0 0.0
        %4370 = vmatprep.subr.mxu0 0.0
        %4371 = vmatpush1.xpose.msra.mxu0 0.0
        %4372 = vmatprep.subr.mxu0 0.0
        %4373 = vmatpush1.xpose.msra.mxu0 0.0
        %4374 = vmatprep.subr.mxu0 0.0
        %4375 = vmatpush1.xpose.msra.mxu0 0.0
        %4376 = vmatprep.subr.mxu0 0.0
        %4377 = vmatpush1.xpose.msra.mxu0 0.0
        %4378 = vmatprep.subr.mxu0 0.0
        %4379 = vmatpush1.xpose.msra.mxu0 0.0
        %4380 = vmatprep.subr.mxu0 0.0
        %4381 = vmatpush1.xpose.msra.mxu0 0.0
        %4382 = vmatprep.subr.mxu0 0.0
        %4383 = vmatpush1.xpose.msra.mxu0 0.0
        %4384 = vmatprep.subr.mxu0 0.0
        %4385 = vmatpush1.xpose.msra.mxu0 0.0
        %4386 = vmatprep.subr.mxu0 0.0
        %4387 = vmatpush1.xpose.msra.mxu0 0.0
        %4388 = vmatprep.subr.mxu0 0.0
        %4389 = vmatpush1.xpose.msra.mxu0 0.0
        %4390 = vmatprep.subr.mxu0 0.0
        %4391 = vmatpush1.xpose.msra.mxu0 0.0
        %4392 = vmatprep.subr.mxu0 0.0
        %4393 = vmatpush1.xpose.msra.mxu0 0.0
        %4394 = vmatprep.subr.mxu0 0.0
        %4395 = vmatpush1.xpose.msra.mxu0 0.0
        %4396 = vmatprep.subr.mxu0 0.0
        %4397 = vmatpush1.xpose.msra.mxu0 0.0
        %4398 = vmatprep.subr.mxu0 0.0
        %4399 = vmatpush1.xpose.msra.mxu0 0.0
        %4400 = vmatprep.subr.mxu0 0.0
        %4401 = vmatpush1.xpose.msra.mxu0 0.0
        %4402 = vmatprep.subr.mxu0 0.0
        %4403 = vmatpush1.xpose.msra.mxu0 0.0
        %4404 = vmatprep.subr.mxu0 0.0
        %4405 = vmatpush1.xpose.msra.mxu0 0.0
        %4406 = vmatprep.mubr.f32.mxu0 0.0
        %4407 = vmatmul.mubr.f32.gmra.mrb[0].mxu0 %v4338
        %v4408 = vpop.f32.mrb[0].mxu0
        %v4409 = vadd.f32 0.0, %v4408
        %v4410 = vpop.f32.mrb[0].mxu0
        %4411 = vdwg.mxu0
        %v4412 = vsel %vm1275, %v4409, -inf
        %4413 = vmax.xlane.f32.xlu0 %v4412
        %v4414 = vpop.xlane.xlu0 %4413
        %v4415 = vsub.f32 %v4409, %v4414
        %v4416 = vmul.f32 %v4415, 1.442695
        %v4417 = vpow.pop %v4416
        %v4418 = vsel %vm1275, %v4417, 0.0
        %4419 = vadd.xlane.f32.xlu0 %v4418
        %v4420 = vpop.xlane.xlu0 %4419
        %v4421 = vrcp.pop %v4420
        %v4422 = vmul.f32 %v4417, %v4421
        %4423 = vrot.lane.b32.xlu0 %v1186, 76
        %v4424 = vpop.permute.xlu0 %4423
        %v4427 = vsel %vm1275, %v4422, 0
        %4429 = vmatprep.subr.mxu0 0.0
        %4430 = vmatpush1.msra.mxu0 %v4424
        %4431 = vmatprep.subr.mxu0 0.0
        %4432 = vmatpush1.msra.mxu0 0.0
        %4433 = vmatprep.subr.mxu0 0.0
        %4434 = vmatpush1.msra.mxu0 0.0
        %4435 = vmatprep.subr.mxu0 0.0
        %4436 = vmatpush1.msra.mxu0 0.0
        %4437 = vmatprep.subr.mxu0 0.0
        %4438 = vmatpush1.msra.mxu0 0.0
        %4439 = vmatprep.subr.mxu0 0.0
        %4440 = vmatpush1.msra.mxu0 0.0
        %4441 = vmatprep.subr.mxu0 0.0
        %4442 = vmatpush1.msra.mxu0 0.0
        %4443 = vmatprep.subr.mxu0 0.0
        %4444 = vmatpush1.msra.mxu0 0.0
        %4445 = vmatprep.subr.mxu0 0.0
        %4446 = vmatpush1.msra.mxu0 0.0
        %4447 = vmatprep.subr.mxu0 0.0
        %4448 = vmatpush1.msra.mxu0 0.0
        %4449 = vmatprep.subr.mxu0 0.0
        %4450 = vmatpush1.msra.mxu0 0.0
        %4451 = vmatprep.subr.mxu0 0.0
        %4452 = vmatpush1.msra.mxu0 0.0
        %4453 = vmatprep.subr.mxu0 0.0
        %4454 = vmatpush1.msra.mxu0 0.0
        %4455 = vmatprep.subr.mxu0 0.0
        %4456 = vmatpush1.msra.mxu0 0.0
        %4457 = vmatprep.subr.mxu0 0.0
        %4458 = vmatpush1.msra.mxu0 0.0
        %4459 = vmatprep.subr.mxu0 0.0
        %4460 = vmatpush1.msra.mxu0 0.0
        %4461 = vmatprep.subr.mxu0 0.0
        %4462 = vmatpush1.msra.mxu0 0.0
        %4463 = vmatprep.subr.mxu0 0.0
        %4464 = vmatpush1.msra.mxu0 0.0
        %4465 = vmatprep.subr.mxu0 0.0
        %4466 = vmatpush1.msra.mxu0 0.0
        %4467 = vmatprep.subr.mxu0 0.0
        %4468 = vmatpush1.msra.mxu0 0.0
        %4469 = vmatprep.subr.mxu0 0.0
        %4470 = vmatpush1.msra.mxu0 0.0
        %4471 = vmatprep.subr.mxu0 0.0
        %4472 = vmatpush1.msra.mxu0 0.0
        %4473 = vmatprep.subr.mxu0 0.0
        %4474 = vmatpush1.msra.mxu0 0.0
        %4475 = vmatprep.subr.mxu0 0.0
        %4476 = vmatpush1.msra.mxu0 0.0
        %4477 = vmatprep.subr.mxu0 0.0
        %4478 = vmatpush1.msra.mxu0 0.0
        %4479 = vmatprep.subr.mxu0 0.0
        %4480 = vmatpush1.msra.mxu0 0.0
        %4481 = vmatprep.subr.mxu0 0.0
        %4482 = vmatpush1.msra.mxu0 0.0
        %4483 = vmatprep.subr.mxu0 0.0
        %4484 = vmatpush1.msra.mxu0 0.0
        %4485 = vmatprep.subr.mxu0 0.0
        %4486 = vmatpush1.msra.mxu0 0.0
        %4487 = vmatprep.subr.mxu0 0.0
        %4488 = vmatpush1.msra.mxu0 0.0
        %4489 = vmatprep.subr.mxu0 0.0
        %4490 = vmatpush1.msra.mxu0 0.0
        %4491 = vmatprep.subr.mxu0 0.0
        %4492 = vmatpush1.msra.mxu0 0.0
        %4493 = vmatprep.mubr.f32.mxu0 0.0
        %4494 = vmatmul.mubr.f32.gmra.mrb[0].mxu0 %v4427
        %v4495 = vpop.f32.mrb[0].mxu0
        %v4496 = vadd.f32 0.0, %v4495
        %v4497 = vpop.f32.mrb[0].mxu0
        %4498 = vdwg.mxu0
        %v4499 = vrot.slane %v1194, 4
        %v4501 = vsel %vm1199, %v4496, 0
        %v4503 = vsel %vm1184, %v4499, 0
        %4505 = vmatprep.subr.mxu0 0.0
        %4506 = vmatpush1.msra.mxu0 %v4503
        %4507 = vmatprep.subr.mxu0 0.0
        %4508 = vmatpush1.msra.mxu0 0.0
        %4509 = vmatprep.subr.mxu0 0.0
        %4510 = vmatpush1.msra.mxu0 0.0
        %4511 = vmatprep.subr.mxu0 0.0
        %4512 = vmatpush1.msra.mxu0 0.0
        %4513 = vmatprep.subr.mxu0 0.0
        %4514 = vmatpush1.msra.mxu0 0.0
        %4515 = vmatprep.subr.mxu0 0.0
        %4516 = vmatpush1.msra.mxu0 0.0
        %4517 = vmatprep.subr.mxu0 0.0
        %4518 = vmatpush1.msra.mxu0 0.0
        %4519 = vmatprep.subr.mxu0 0.0
        %4520 = vmatpush1.msra.mxu0 0.0
        %4521 = vmatprep.subr.mxu0 0.0
        %4522 = vmatpush1.msra.mxu0 0.0
        %4523 = vmatprep.subr.mxu0 0.0
        %4524 = vmatpush1.msra.mxu0 0.0
        %4525 = vmatprep.subr.mxu0 0.0
        %4526 = vmatpush1.msra.mxu0 0.0
        %4527 = vmatprep.subr.mxu0 0.0
        %4528 = vmatpush1.msra.mxu0 0.0
        %4529 = vmatprep.subr.mxu0 0.0
        %4530 = vmatpush1.msra.mxu0 0.0
        %4531 = vmatprep.subr.mxu0 0.0
        %4532 = vmatpush1.msra.mxu0 0.0
        %4533 = vmatprep.subr.mxu0 0.0
        %4534 = vmatpush1.msra.mxu0 0.0
        %4535 = vmatprep.subr.mxu0 0.0
        %4536 = vmatpush1.msra.mxu0 0.0
        %4537 = vmatprep.subr.mxu0 0.0
        %4538 = vmatpush1.msra.mxu0 0.0
        %4539 = vmatprep.subr.mxu0 0.0
        %4540 = vmatpush1.msra.mxu0 0.0
        %4541 = vmatprep.subr.mxu0 0.0
        %4542 = vmatpush1.msra.mxu0 0.0
        %4543 = vmatprep.subr.mxu0 0.0
        %4544 = vmatpush1.msra.mxu0 0.0
        %4545 = vmatprep.subr.mxu0 0.0
        %4546 = vmatpush1.msra.mxu0 0.0
        %4547 = vmatprep.subr.mxu0 0.0
        %4548 = vmatpush1.msra.mxu0 0.0
        %4549 = vmatprep.subr.mxu0 0.0
        %4550 = vmatpush1.msra.mxu0 0.0
        %4551 = vmatprep.subr.mxu0 0.0
        %4552 = vmatpush1.msra.mxu0 0.0
        %4553 = vmatprep.subr.mxu0 0.0
        %4554 = vmatpush1.msra.mxu0 0.0
        %4555 = vmatprep.subr.mxu0 0.0
        %4556 = vmatpush1.msra.mxu0 0.0
        %4557 = vmatprep.subr.mxu0 0.0
        %4558 = vmatpush1.msra.mxu0 0.0
        %4559 = vmatprep.subr.mxu0 0.0
        %4560 = vmatpush1.msra.mxu0 0.0
        %4561 = vmatprep.subr.mxu0 0.0
        %4562 = vmatpush1.msra.mxu0 0.0
        %4563 = vmatprep.subr.mxu0 0.0
        %4564 = vmatpush1.msra.mxu0 0.0
        %4565 = vmatprep.subr.mxu0 0.0
        %4566 = vmatpush1.msra.mxu0 0.0
        %4567 = vmatprep.subr.mxu0 0.0
        %4568 = vmatpush1.msra.mxu0 0.0
        %4569 = vmatprep.mubr.f32.mxu0 0.0
        %4570 = vmatmul.mubr.f32.gmra.mrb[0].mxu0 %v4501
        %v4571 = vpop.f32.mrb[0].mxu0
        %v4572 = vadd.f32 0.0, %v4571
        %v4573 = vpop.f32.mrb[0].mxu0
        %4574 = vdwg.mxu0
        %v4575 = vadd.f32 %v3607, %v4572
        %4576 = vrot.lane.b32.xlu0 %v1187, 72
        %v4577 = vpop.permute.xlu0 %4576
        %4578 = vrot.lane.b32.xlu0 %v1185, 8
        %v4579 = vpop.permute.xlu0 %4578
        %v4580 = vsel %vm1199, %v4577, 0
        %v4582 = vsel %vm1199, %v4579, 0
        %4584 = vmatprep.subr.mxu0 0.0
        %4585 = vmatpush1.xpose.msra.mxu0 %v4582
        %4586 = vmatprep.subr.mxu0 0.0
        %4587 = vmatpush1.xpose.msra.mxu0 0.0
        %4588 = vmatprep.subr.mxu0 0.0
        %4589 = vmatpush1.xpose.msra.mxu0 0.0
        %4590 = vmatprep.subr.mxu0 0.0
        %4591 = vmatpush1.xpose.msra.mxu0 0.0
        %4592 = vmatprep.subr.mxu0 0.0
        %4593 = vmatpush1.xpose.msra.mxu0 0.0
        %4594 = vmatprep.subr.mxu0 0.0
        %4595 = vmatpush1.xpose.msra.mxu0 0.0
        %4596 = vmatprep.subr.mxu0 0.0
        %4597 = vmatpush1.xpose.msra.mxu0 0.0
        %4598 = vmatprep.subr.mxu0 0.0
        %4599 = vmatpush1.xpose.msra.mxu0 0.0
        %4600 = vmatprep.subr.mxu0 0.0
        %4601 = vmatpush1.xpose.msra.mxu0 0.0
        %4602 = vmatprep.subr.mxu0 0.0
        %4603 = vmatpush1.xpose.msra.mxu0 0.0
        %4604 = vmatprep.subr.mxu0 0.0
        %4605 = vmatpush1.xpose.msra.mxu0 0.0
        %4606 = vmatprep.subr.mxu0 0.0
        %4607 = vmatpush1.xpose.msra.mxu0 0.0
        %4608 = vmatprep.subr.mxu0 0.0
        %4609 = vmatpush1.xpose.msra.mxu0 0.0
        %4610 = vmatprep.subr.mxu0 0.0
        %4611 = vmatpush1.xpose.msra.mxu0 0.0
        %4612 = vmatprep.subr.mxu0 0.0
        %4613 = vmatpush1.xpose.msra.mxu0 0.0
        %4614 = vmatprep.subr.mxu0 0.0
        %4615 = vmatpush1.xpose.msra.mxu0 0.0
        %4616 = vmatprep.subr.mxu0 0.0
        %4617 = vmatpush1.xpose.msra.mxu0 0.0
        %4618 = vmatprep.subr.mxu0 0.0
        %4619 = vmatpush1.xpose.msra.mxu0 0.0
        %4620 = vmatprep.subr.mxu0 0.0
        %4621 = vmatpush1.xpose.msra.mxu0 0.0
        %4622 = vmatprep.subr.mxu0 0.0
        %4623 = vmatpush1.xpose.msra.mxu0 0.0
        %4624 = vmatprep.subr.mxu0 0.0
        %4625 = vmatpush1.xpose.msra.mxu0 0.0
        %4626 = vmatprep.subr.mxu0 0.0
        %4627 = vmatpush1.xpose.msra.mxu0 0.0
        %4628 = vmatprep.subr.mxu0 0.0
        %4629 = vmatpush1.xpose.msra.mxu0 0.0
        %4630 = vmatprep.subr.mxu0 0.0
        %4631 = vmatpush1.xpose.msra.mxu0 0.0
        %4632 = vmatprep.subr.mxu0 0.0
        %4633 = vmatpush1.xpose.msra.mxu0 0.0
        %4634 = vmatprep.subr.mxu0 0.0
        %4635 = vmatpush1.xpose.msra.mxu0 0.0
        %4636 = vmatprep.subr.mxu0 0.0
        %4637 = vmatpush1.xpose.msra.mxu0 0.0
        %4638 = vmatprep.subr.mxu0 0.0
        %4639 = vmatpush1.xpose.msra.mxu0 0.0
        %4640 = vmatprep.subr.mxu0 0.0
        %4641 = vmatpush1.xpose.msra.mxu0 0.0
        %4642 = vmatprep.subr.mxu0 0.0
        %4643 = vmatpush1.xpose.msra.mxu0 0.0
        %4644 = vmatprep.subr.mxu0 0.0
        %4645 = vmatpush1.xpose.msra.mxu0 0.0
        %4646 = vmatprep.subr.mxu0 0.0
        %4647 = vmatpush1.xpose.msra.mxu0 0.0
        %4648 = vmatprep.mubr.f32.mxu0 0.0
        %4649 = vmatmul.mubr.f32.gmra.mrb[0].mxu0 %v4580
        %v4650 = vpop.f32.mrb[0].mxu0
        %v4651 = vadd.f32 0.0, %v4650
        %v4652 = vpop.f32.mrb[0].mxu0
        %4653 = vdwg.mxu0
        %v4654 = vsel %vm1275, %v4651, -inf
        %4655 = vmax.xlane.f32.xlu0 %v4654
        %v4656 = vpop.xlane.xlu0 %4655
        %v4657 = vsub.f32 %v4651, %v4656
        %v4658 = vmul.f32 %v4657, 1.442695
        %v4659 = vpow.pop %v4658
        %v4660 = vsel %vm1275, %v4659, 0.0
        %4661 = vadd.xlane.f32.xlu0 %v4660
        %v4662 = vpop.xlane.xlu0 %4661
        %v4663 = vrcp.pop %v4662
        %v4664 = vmul.f32 %v4659, %v4663
        %4665 = vrot.lane.b32.xlu0 %v1186, 72
        %v4666 = vpop.permute.xlu0 %4665
        %v4669 = vsel %vm1275, %v4664, 0
        %4671 = vmatprep.subr.mxu0 0.0
        %4672 = vmatpush1.msra.mxu0 %v4666
        %4673 = vmatprep.subr.mxu0 0.0
        %4674 = vmatpush1.msra.mxu0 0.0
        %4675 = vmatprep.subr.mxu0 0.0
        %4676 = vmatpush1.msra.mxu0 0.0
        %4677 = vmatprep.subr.mxu0 0.0
        %4678 = vmatpush1.msra.mxu0 0.0
        %4679 = vmatprep.subr.mxu0 0.0
        %4680 = vmatpush1.msra.mxu0 0.0
        %4681 = vmatprep.subr.mxu0 0.0
        %4682 = vmatpush1.msra.mxu0 0.0
        %4683 = vmatprep.subr.mxu0 0.0
        %4684 = vmatpush1.msra.mxu0 0.0
        %4685 = vmatprep.subr.mxu0 0.0
        %4686 = vmatpush1.msra.mxu0 0.0
        %4687 = vmatprep.subr.mxu0 0.0
        %4688 = vmatpush1.msra.mxu0 0.0
        %4689 = vmatprep.subr.mxu0 0.0
        %4690 = vmatpush1.msra.mxu0 0.0
        %4691 = vmatprep.subr.mxu0 0.0
        %4692 = vmatpush1.msra.mxu0 0.0
        %4693 = vmatprep.subr.mxu0 0.0
        %4694 = vmatpush1.msra.mxu0 0.0
        %4695 = vmatprep.subr.mxu0 0.0
        %4696 = vmatpush1.msra.mxu0 0.0
        %4697 = vmatprep.subr.mxu0 0.0
        %4698 = vmatpush1.msra.mxu0 0.0
        %4699 = vmatprep.subr.mxu0 0.0
        %4700 = vmatpush1.msra.mxu0 0.0
        %4701 = vmatprep.subr.mxu0 0.0
        %4702 = vmatpush1.msra.mxu0 0.0
        %4703 = vmatprep.subr.mxu0 0.0
        %4704 = vmatpush1.msra.mxu0 0.0
        %4705 = vmatprep.subr.mxu0 0.0
        %4706 = vmatpush1.msra.mxu0 0.0
        %4707 = vmatprep.subr.mxu0 0.0
        %4708 = vmatpush1.msra.mxu0 0.0
        %4709 = vmatprep.subr.mxu0 0.0
        %4710 = vmatpush1.msra.mxu0 0.0
        %4711 = vmatprep.subr.mxu0 0.0
        %4712 = vmatpush1.msra.mxu0 0.0
        %4713 = vmatprep.subr.mxu0 0.0
        %4714 = vmatpush1.msra.mxu0 0.0
        %4715 = vmatprep.subr.mxu0 0.0
        %4716 = vmatpush1.msra.mxu0 0.0
        %4717 = vmatprep.subr.mxu0 0.0
        %4718 = vmatpush1.msra.mxu0 0.0
        %4719 = vmatprep.subr.mxu0 0.0
        %4720 = vmatpush1.msra.mxu0 0.0
        %4721 = vmatprep.subr.mxu0 0.0
        %4722 = vmatpush1.msra.mxu0 0.0
        %4723 = vmatprep.subr.mxu0 0.0
        %4724 = vmatpush1.msra.mxu0 0.0
        %4725 = vmatprep.subr.mxu0 0.0
        %4726 = vmatpush1.msra.mxu0 0.0
        %4727 = vmatprep.subr.mxu0 0.0
        %4728 = vmatpush1.msra.mxu0 0.0
        %4729 = vmatprep.subr.mxu0 0.0
        %4730 = vmatpush1.msra.mxu0 0.0
        %4731 = vmatprep.subr.mxu0 0.0
        %4732 = vmatpush1.msra.mxu0 0.0
        %4733 = vmatprep.subr.mxu0 0.0
        %4734 = vmatpush1.msra.mxu0 0.0
        %4735 = vmatprep.mubr.f32.mxu0 0.0
        %4736 = vmatmul.mubr.f32.gmra.mrb[0].mxu0 %v4669
        %v4737 = vpop.f32.mrb[0].mxu0
        %v4738 = vadd.f32 0.0, %v4737
        %v4739 = vpop.f32.mrb[0].mxu0
        %4740 = vdwg.mxu0
        %v4742 = vsel %vm1199, %v4738, 0
        %v4745 = vsel %vm1184, %v1195, 0
        %4747 = vmatprep.subr.mxu0 0.0
        %4748 = vmatpush1.msra.mxu0 %v4745
        %4749 = vmatprep.subr.mxu0 0.0
        %4750 = vmatpush1.msra.mxu0 0.0
        %4751 = vmatprep.subr.mxu0 0.0
        %4752 = vmatpush1.msra.mxu0 0.0
        %4753 = vmatprep.subr.mxu0 0.0
        %4754 = vmatpush1.msra.mxu0 0.0
        %4755 = vmatprep.subr.mxu0 0.0
        %4756 = vmatpush1.msra.mxu0 0.0
        %4757 = vmatprep.subr.mxu0 0.0
        %4758 = vmatpush1.msra.mxu0 0.0
        %4759 = vmatprep.subr.mxu0 0.0
        %4760 = vmatpush1.msra.mxu0 0.0
        %4761 = vmatprep.subr.mxu0 0.0
        %4762 = vmatpush1.msra.mxu0 0.0
        %4763 = vmatprep.subr.mxu0 0.0
        %4764 = vmatpush1.msra.mxu0 0.0
        %4765 = vmatprep.subr.mxu0 0.0
        %4766 = vmatpush1.msra.mxu0 0.0
        %4767 = vmatprep.subr.mxu0 0.0
        %4768 = vmatpush1.msra.mxu0 0.0
        %4769 = vmatprep.subr.mxu0 0.0
        %4770 = vmatpush1.msra.mxu0 0.0
        %4771 = vmatprep.subr.mxu0 0.0
        %4772 = vmatpush1.msra.mxu0 0.0
        %4773 = vmatprep.subr.mxu0 0.0
        %4774 = vmatpush1.msra.mxu0 0.0
        %4775 = vmatprep.subr.mxu0 0.0
        %4776 = vmatpush1.msra.mxu0 0.0
        %4777 = vmatprep.subr.mxu0 0.0
        %4778 = vmatpush1.msra.mxu0 0.0
        %4779 = vmatprep.subr.mxu0 0.0
        %4780 = vmatpush1.msra.mxu0 0.0
        %4781 = vmatprep.subr.mxu0 0.0
        %4782 = vmatpush1.msra.mxu0 0.0
        %4783 = vmatprep.subr.mxu0 0.0
        %4784 = vmatpush1.msra.mxu0 0.0
        %4785 = vmatprep.subr.mxu0 0.0
        %4786 = vmatpush1.msra.mxu0 0.0
        %4787 = vmatprep.subr.mxu0 0.0
        %4788 = vmatpush1.msra.mxu0 0.0
        %4789 = vmatprep.subr.mxu0 0.0
        %4790 = vmatpush1.msra.mxu0 0.0
        %4791 = vmatprep.subr.mxu0 0.0
        %4792 = vmatpush1.msra.mxu0 0.0
        %4793 = vmatprep.subr.mxu0 0.0
        %4794 = vmatpush1.msra.mxu0 0.0
        %4795 = vmatprep.subr.mxu0 0.0
        %4796 = vmatpush1.msra.mxu0 0.0
        %4797 = vmatprep.subr.mxu0 0.0
        %4798 = vmatpush1.msra.mxu0 0.0
        %4799 = vmatprep.subr.mxu0 0.0
        %4800 = vmatpush1.msra.mxu0 0.0
        %4801 = vmatprep.subr.mxu0 0.0
        %4802 = vmatpush1.msra.mxu0 0.0
        %4803 = vmatprep.subr.mxu0 0.0
        %4804 = vmatpush1.msra.mxu0 0.0
        %4805 = vmatprep.subr.mxu0 0.0
        %4806 = vmatpush1.msra.mxu0 0.0
        %4807 = vmatprep.subr.mxu0 0.0
        %4808 = vmatpush1.msra.mxu0 0.0
        %4809 = vmatprep.subr.mxu0 0.0
        %4810 = vmatpush1.msra.mxu0 0.0
        %4811 = vmatprep.mubr.f32.mxu0 0.0
        %4812 = vmatmul.mubr.f32.gmra.mrb[0].mxu0 %v4742
        %v4813 = vpop.f32.mrb[0].mxu0
        %v4814 = vadd.f32 0.0, %v4813
        %v4815 = vpop.f32.mrb[0].mxu0
        %4816 = vdwg.mxu0
        %v4817 = vadd.f32 %v3849, %v4814
        %4818 = vrot.lane.b32.xlu0 %v1187, 68
        %v4819 = vpop.permute.xlu0 %4818
        %4820 = vrot.lane.b32.xlu0 %v1185, 4
        %v4821 = vpop.permute.xlu0 %4820
        %v4822 = vsel %vm1199, %v4819, 0
        %v4824 = vsel %vm1199, %v4821, 0
        %4826 = vmatprep.subr.mxu0 0.0
        %4827 = vmatpush1.xpose.msra.mxu0 %v4824
        %4828 = vmatprep.subr.mxu0 0.0
        %4829 = vmatpush1.xpose.msra.mxu0 0.0
        %4830 = vmatprep.subr.mxu0 0.0
        %4831 = vmatpush1.xpose.msra.mxu0 0.0
        %4832 = vmatprep.subr.mxu0 0.0
        %4833 = vmatpush1.xpose.msra.mxu0 0.0
        %4834 = vmatprep.subr.mxu0 0.0
        %4835 = vmatpush1.xpose.msra.mxu0 0.0
        %4836 = vmatprep.subr.mxu0 0.0
        %4837 = vmatpush1.xpose.msra.mxu0 0.0
        %4838 = vmatprep.subr.mxu0 0.0
        %4839 = vmatpush1.xpose.msra.mxu0 0.0
        %4840 = vmatprep.subr.mxu0 0.0
        %4841 = vmatpush1.xpose.msra.mxu0 0.0
        %4842 = vmatprep.subr.mxu0 0.0
        %4843 = vmatpush1.xpose.msra.mxu0 0.0
        %4844 = vmatprep.subr.mxu0 0.0
        %4845 = vmatpush1.xpose.msra.mxu0 0.0
        %4846 = vmatprep.subr.mxu0 0.0
        %4847 = vmatpush1.xpose.msra.mxu0 0.0
        %4848 = vmatprep.subr.mxu0 0.0
        %4849 = vmatpush1.xpose.msra.mxu0 0.0
        %4850 = vmatprep.subr.mxu0 0.0
        %4851 = vmatpush1.xpose.msra.mxu0 0.0
        %4852 = vmatprep.subr.mxu0 0.0
        %4853 = vmatpush1.xpose.msra.mxu0 0.0
        %4854 = vmatprep.subr.mxu0 0.0
        %4855 = vmatpush1.xpose.msra.mxu0 0.0
        %4856 = vmatprep.subr.mxu0 0.0
        %4857 = vmatpush1.xpose.msra.mxu0 0.0
        %4858 = vmatprep.subr.mxu0 0.0
        %4859 = vmatpush1.xpose.msra.mxu0 0.0
        %4860 = vmatprep.subr.mxu0 0.0
        %4861 = vmatpush1.xpose.msra.mxu0 0.0
        %4862 = vmatprep.subr.mxu0 0.0
        %4863 = vmatpush1.xpose.msra.mxu0 0.0
        %4864 = vmatprep.subr.mxu0 0.0
        %4865 = vmatpush1.xpose.msra.mxu0 0.0
        %4866 = vmatprep.subr.mxu0 0.0
        %4867 = vmatpush1.xpose.msra.mxu0 0.0
        %4868 = vmatprep.subr.mxu0 0.0
        %4869 = vmatpush1.xpose.msra.mxu0 0.0
        %4870 = vmatprep.subr.mxu0 0.0
        %4871 = vmatpush1.xpose.msra.mxu0 0.0
        %4872 = vmatprep.subr.mxu0 0.0
        %4873 = vmatpush1.xpose.msra.mxu0 0.0
        %4874 = vmatprep.subr.mxu0 0.0
        %4875 = vmatpush1.xpose.msra.mxu0 0.0
        %4876 = vmatprep.subr.mxu0 0.0
        %4877 = vmatpush1.xpose.msra.mxu0 0.0
        %4878 = vmatprep.subr.mxu0 0.0
        %4879 = vmatpush1.xpose.msra.mxu0 0.0
        %4880 = vmatprep.subr.mxu0 0.0
        %4881 = vmatpush1.xpose.msra.mxu0 0.0
        %4882 = vmatprep.subr.mxu0 0.0
        %4883 = vmatpush1.xpose.msra.mxu0 0.0
        %4884 = vmatprep.subr.mxu0 0.0
        %4885 = vmatpush1.xpose.msra.mxu0 0.0
        %4886 = vmatprep.subr.mxu0 0.0
        %4887 = vmatpush1.xpose.msra.mxu0 0.0
        %4888 = vmatprep.subr.mxu0 0.0
        %4889 = vmatpush1.xpose.msra.mxu0 0.0
        %4890 = vmatprep.mubr.f32.mxu0 0.0
        %4891 = vmatmul.mubr.f32.gmra.mrb[0].mxu0 %v4822
        %v4892 = vpop.f32.mrb[0].mxu0
        %v4893 = vadd.f32 0.0, %v4892
        %v4894 = vpop.f32.mrb[0].mxu0
        %4895 = vdwg.mxu0
        %v4896 = vsel %vm1275, %v4893, -inf
        %4897 = vmax.xlane.f32.xlu0 %v4896
        %v4898 = vpop.xlane.xlu0 %4897
        %v4899 = vsub.f32 %v4893, %v4898
        %v4900 = vmul.f32 %v4899, 1.442695
        %v4901 = vpow.pop %v4900
        %v4902 = vsel %vm1275, %v4901, 0.0
        %4903 = vadd.xlane.f32.xlu0 %v4902
        %v4904 = vpop.xlane.xlu0 %4903
        %v4905 = vrcp.pop %v4904
        %v4906 = vmul.f32 %v4901, %v4905
        %4907 = vrot.lane.b32.xlu0 %v1186, 68
        %v4908 = vpop.permute.xlu0 %4907
        %v4911 = vsel %vm1275, %v4906, 0
        %4913 = vmatprep.subr.mxu0 0.0
        %4914 = vmatpush1.msra.mxu0 %v4908
        %4915 = vmatprep.subr.mxu0 0.0
        %4916 = vmatpush1.msra.mxu0 0.0
        %4917 = vmatprep.subr.mxu0 0.0
        %4918 = vmatpush1.msra.mxu0 0.0
        %4919 = vmatprep.subr.mxu0 0.0
        %4920 = vmatpush1.msra.mxu0 0.0
        %4921 = vmatprep.subr.mxu0 0.0
        %4922 = vmatpush1.msra.mxu0 0.0
        %4923 = vmatprep.subr.mxu0 0.0
        %4924 = vmatpush1.msra.mxu0 0.0
        %4925 = vmatprep.subr.mxu0 0.0
        %4926 = vmatpush1.msra.mxu0 0.0
        %4927 = vmatprep.subr.mxu0 0.0
        %4928 = vmatpush1.msra.mxu0 0.0
        %4929 = vmatprep.subr.mxu0 0.0
        %4930 = vmatpush1.msra.mxu0 0.0
        %4931 = vmatprep.subr.mxu0 0.0
        %4932 = vmatpush1.msra.mxu0 0.0
        %4933 = vmatprep.subr.mxu0 0.0
        %4934 = vmatpush1.msra.mxu0 0.0
        %4935 = vmatprep.subr.mxu0 0.0
        %4936 = vmatpush1.msra.mxu0 0.0
        %4937 = vmatprep.subr.mxu0 0.0
        %4938 = vmatpush1.msra.mxu0 0.0
        %4939 = vmatprep.subr.mxu0 0.0
        %4940 = vmatpush1.msra.mxu0 0.0
        %4941 = vmatprep.subr.mxu0 0.0
        %4942 = vmatpush1.msra.mxu0 0.0
        %4943 = vmatprep.subr.mxu0 0.0
        %4944 = vmatpush1.msra.mxu0 0.0
        %4945 = vmatprep.subr.mxu0 0.0
        %4946 = vmatpush1.msra.mxu0 0.0
        %4947 = vmatprep.subr.mxu0 0.0
        %4948 = vmatpush1.msra.mxu0 0.0
        %4949 = vmatprep.subr.mxu0 0.0
        %4950 = vmatpush1.msra.mxu0 0.0
        %4951 = vmatprep.subr.mxu0 0.0
        %4952 = vmatpush1.msra.mxu0 0.0
        %4953 = vmatprep.subr.mxu0 0.0
        %4954 = vmatpush1.msra.mxu0 0.0
        %4955 = vmatprep.subr.mxu0 0.0
        %4956 = vmatpush1.msra.mxu0 0.0
        %4957 = vmatprep.subr.mxu0 0.0
        %4958 = vmatpush1.msra.mxu0 0.0
        %4959 = vmatprep.subr.mxu0 0.0
        %4960 = vmatpush1.msra.mxu0 0.0
        %4961 = vmatprep.subr.mxu0 0.0
        %4962 = vmatpush1.msra.mxu0 0.0
        %4963 = vmatprep.subr.mxu0 0.0
        %4964 = vmatpush1.msra.mxu0 0.0
        %4965 = vmatprep.subr.mxu0 0.0
        %4966 = vmatpush1.msra.mxu0 0.0
        %4967 = vmatprep.subr.mxu0 0.0
        %4968 = vmatpush1.msra.mxu0 0.0
        %4969 = vmatprep.subr.mxu0 0.0
        %4970 = vmatpush1.msra.mxu0 0.0
        %4971 = vmatprep.subr.mxu0 0.0
        %4972 = vmatpush1.msra.mxu0 0.0
        %4973 = vmatprep.subr.mxu0 0.0
        %4974 = vmatpush1.msra.mxu0 0.0
        %4975 = vmatprep.subr.mxu0 0.0
        %4976 = vmatpush1.msra.mxu0 0.0
        %4977 = vmatprep.mubr.f32.mxu0 0.0
        %4978 = vmatmul.mubr.f32.gmra.mrb[0].mxu0 %v4911
        %v4979 = vpop.f32.mrb[0].mxu0
        %v4980 = vadd.f32 0.0, %v4979
        %v4981 = vpop.f32.mrb[0].mxu0
        %4982 = vdwg.mxu0
        %v4983 = vrot.slane %v1195, 4
        %v4985 = vsel %vm1199, %v4980, 0
        %v4987 = vsel %vm1184, %v4983, 0
        %4989 = vmatprep.subr.mxu0 0.0
        %4990 = vmatpush1.msra.mxu0 %v4987
        %4991 = vmatprep.subr.mxu0 0.0
        %4992 = vmatpush1.msra.mxu0 0.0
        %4993 = vmatprep.subr.mxu0 0.0
        %4994 = vmatpush1.msra.mxu0 0.0
        %4995 = vmatprep.subr.mxu0 0.0
        %4996 = vmatpush1.msra.mxu0 0.0
        %4997 = vmatprep.subr.mxu0 0.0
        %4998 = vmatpush1.msra.mxu0 0.0
        %4999 = vmatprep.subr.mxu0 0.0
        %5000 = vmatpush1.msra.mxu0 0.0
        %5001 = vmatprep.subr.mxu0 0.0
        %5002 = vmatpush1.msra.mxu0 0.0
        %5003 = vmatprep.subr.mxu0 0.0
        %5004 = vmatpush1.msra.mxu0 0.0
        %5005 = vmatprep.subr.mxu0 0.0
        %5006 = vmatpush1.msra.mxu0 0.0
        %5007 = vmatprep.subr.mxu0 0.0
        %5008 = vmatpush1.msra.mxu0 0.0
        %5009 = vmatprep.subr.mxu0 0.0
        %5010 = vmatpush1.msra.mxu0 0.0
        %5011 = vmatprep.subr.mxu0 0.0
        %5012 = vmatpush1.msra.mxu0 0.0
        %5013 = vmatprep.subr.mxu0 0.0
        %5014 = vmatpush1.msra.mxu0 0.0
        %5015 = vmatprep.subr.mxu0 0.0
        %5016 = vmatpush1.msra.mxu0 0.0
        %5017 = vmatprep.subr.mxu0 0.0
        %5018 = vmatpush1.msra.mxu0 0.0
        %5019 = vmatprep.subr.mxu0 0.0
        %5020 = vmatpush1.msra.mxu0 0.0
        %5021 = vmatprep.subr.mxu0 0.0
        %5022 = vmatpush1.msra.mxu0 0.0
        %5023 = vmatprep.subr.mxu0 0.0
        %5024 = vmatpush1.msra.mxu0 0.0
        %5025 = vmatprep.subr.mxu0 0.0
        %5026 = vmatpush1.msra.mxu0 0.0
        %5027 = vmatprep.subr.mxu0 0.0
        %5028 = vmatpush1.msra.mxu0 0.0
        %5029 = vmatprep.subr.mxu0 0.0
        %5030 = vmatpush1.msra.mxu0 0.0
        %5031 = vmatprep.subr.mxu0 0.0
        %5032 = vmatpush1.msra.mxu0 0.0
        %5033 = vmatprep.subr.mxu0 0.0
        %5034 = vmatpush1.msra.mxu0 0.0
        %5035 = vmatprep.subr.mxu0 0.0
        %5036 = vmatpush1.msra.mxu0 0.0
        %5037 = vmatprep.subr.mxu0 0.0
        %5038 = vmatpush1.msra.mxu0 0.0
        %5039 = vmatprep.subr.mxu0 0.0
        %5040 = vmatpush1.msra.mxu0 0.0
        %5041 = vmatprep.subr.mxu0 0.0
        %5042 = vmatpush1.msra.mxu0 0.0
        %5043 = vmatprep.subr.mxu0 0.0
        %5044 = vmatpush1.msra.mxu0 0.0
        %5045 = vmatprep.subr.mxu0 0.0
        %5046 = vmatpush1.msra.mxu0 0.0
        %5047 = vmatprep.subr.mxu0 0.0
        %5048 = vmatpush1.msra.mxu0 0.0
        %5049 = vmatprep.subr.mxu0 0.0
        %5050 = vmatpush1.msra.mxu0 0.0
        %5051 = vmatprep.subr.mxu0 0.0
        %5052 = vmatpush1.msra.mxu0 0.0
        %5053 = vmatprep.mubr.f32.mxu0 0.0
        %5054 = vmatmul.mubr.f32.gmra.mrb[0].mxu0 %v4985
        %v5055 = vpop.f32.mrb[0].mxu0
        %v5056 = vadd.f32 0.0, %v5055
        %v5057 = vpop.f32.mrb[0].mxu0
        %5058 = vdwg.mxu0
        %v5059 = vadd.f32 %v4091, %v5056
        %v5060 = vadd.f32 %v4333, %v4575
        %v5061 = vadd.f32 %v4817, %v5059
        %v5062 = vadd.f32 %v5060, %v5061
        %v5063 = vld [vmem:[%s12] sm:$0x1]
        %v5065 = vlaneseq
        %v5066 = vshrl.u32 %v5065, 7
        %v5067 = vsub.s32 0, %v5066
        %v5068 = vrot.slane %v5063, %v5067
        %v5070 = vadd.f32 %v5062, %v5068
        %5071 = vst.msk [vmem:[%s461] sm:$0xff] %vm476, %v5070
        %s5072 = sand.u32 %s315, 1
        %s5073 = scalar_lea.sflag [#allocation6], %s5072
        %s5074 = sand.u32 %s315, 1
        %s5075 = smul.addr %s5074, 8
        %s5076 = scalar_lea.vmem [#allocation9], %s5075
        // Predicated region
        $region81: #{tpu_custom_call.1} parent=71 // pred_check
          %p5077 = pneg %p325
        $region82: #{tpu_custom_call.1} parent=71 // pred_check_branch
          %5079 = sbr.rel (%p5077) target = $region84
        $region83: #{tpu_custom_call.1} parent=71 // pred_region
          %s5081 = ssub.s32 128, 128
          %5082 = vsyncadd %s5073, %s5081
          %s5083 = smul.addr %s29, 128
          %s5084 = scalar_lea.hbm %s13, %s5083
          %s5086 = sshll.u32 %s5076, 4
          %s5087 = int_to_ptr.vmem [resolvable:$true] %s5086
          %5089 = dma.vmem_to_hbm [thread:$0]  %s5087, 128, %s5084, %s5073
        $region84: #{tpu_custom_call.1} parent=71 // pred_fallthru
          _
      $region72: #{tpu_custom_call.1} parent=5 // pred_fallthru
        _
      %p5090 = scmp.le.s32.totalorder 2, %s24
      // Predicated region
      $region85: #{tpu_custom_call.1} parent=5 // pred_check
        %p5091 = pneg %p5090
      $region86: #{tpu_custom_call.1} parent=5 // pred_check_branch
        %5093 = sbr.rel (%p5091) target = $region88
      $region87: #{tpu_custom_call.1} parent=5 // pred_region
        %s5094 = ssub.s32 %s24, 2
        // Predicated region
        $region89: #{tpu_custom_call.1} parent=87 // pred_check
          %p5095 = pneg %p331
        $region90: #{tpu_custom_call.1} parent=87 // pred_check_branch
          %5097 = sbr.rel (%p5095) target = $region92
        $region91: #{tpu_custom_call.1} parent=87 // pred_region
          %s5098 = sand.u32 %s316, 1
          %s5099 = scalar_lea.sflag [#allocation6], %s5098
          %s5100 = sand.u32 %s316, 1
          %s5101 = smul.addr %s5100, 8
          %s5102 = scalar_lea.vmem [#allocation9], %s5101
          %5103 = dma.done %s5099, 128
        $region92: #{tpu_custom_call.1} parent=87 // pred_fallthru
          _
      $region88: #{tpu_custom_call.1} parent=5 // pred_fallthru
        _
    $region6: #{tpu_custom_call.1} parent=1 // loop_footer
      %s28 = sadd.s32 1, %s24
    $region7: #{tpu_custom_call.1} parent=1 // loop_footer_branch
      %23 = sbr.rel target = $region3
    $region8: #{tpu_custom_call.1} parent=1 // loop_exit
      _
    %5104 = vsyncpa [#allocation5], 1
    %s5105 = scalar_lea.sflag [#allocation5], 1
    %5106 = vsyncpa %s5105, 1
    %5107 = vsyncpa [#allocation8], 1
    %5108 = vsyncpa [#allocation6], 1
    %s5109 = scalar_lea.sflag [#allocation6], 1
    %5110 = vsyncpa %s5109, 1

</llo_original>
